<compile_context>
chip_gen: v7x
topology: tpu7x:2x2x1
jax: 0.10.0
libtpu: 0.0.40
codegen_flags: <defaults>
</compile_context>

<pallas_src>
import functools

import jax
import jax.numpy as jnp
from jax.experimental import pallas as pl
from jax.experimental.pallas import tpu as pltpu


def attention_kernel(x_ref, wqkv_ref, wo_ref, bo_ref, o_ref, *, num_heads):
    """One batch element per grid step; all heads processed together."""
    N = x_ref.shape[1]
    C = x_ref.shape[2]
    D = C // num_heads

    x = x_ref[0]                                                   # (N, C) bf16

    # Single fused QKV projection (softmax scale already folded into the Q
    # columns host-side).  Output (N, 3C) is lane-dense: one MXU pass.
    qkv = jnp.dot(x, wqkv_ref[...], preferred_element_type=jnp.float32)

    # Lane-aligned (multiple-of-128) column slices, then head-major layout.
    q = jnp.transpose(qkv[:, :C].reshape(N, num_heads, D),
                      (1, 0, 2)).astype(jnp.bfloat16)              # (H, N, D)
    k = jnp.transpose(qkv[:, C:2 * C].reshape(N, num_heads, D),
                      (1, 0, 2)).astype(jnp.bfloat16)              # (H, N, D)
    v = jnp.transpose(qkv[:, 2 * C:].reshape(N, num_heads, D),
                      (1, 0, 2)).astype(jnp.bfloat16)              # (H, N, D)

    # Scores batched over heads; contraction over d (no explicit k^T).
    att = jnp.einsum('hnd,hmd->hnm', q, k,
                     preferred_element_type=jnp.float32)           # (H, N, N)
    att = att - jnp.max(att, axis=-1, keepdims=True)
    p = jnp.exp(att)
    p = p * pl.reciprocal(jnp.sum(p, axis=-1, keepdims=True), approx=True)

    # P @ V batched over heads, then back to per-token head-concat layout.
    head = jnp.einsum('hnm,hmd->hnd', p.astype(jnp.bfloat16), v,
                      preferred_element_type=jnp.float32)          # (H, N, D)
    head = jnp.transpose(head, (1, 0, 2)).reshape(N, C).astype(jnp.bfloat16)

    # Output projection + bias, written once, lane-dense, into the out block.
    o_ref[0] = (jnp.dot(head, wo_ref[...], preferred_element_type=jnp.float32)
                + bo_ref[...]).astype(o_ref.dtype)


def attention_forward(x, params, *, num_heads):
    B, N, C = x.shape
    assert C % num_heads == 0
    D = C // num_heads
    scale = D ** -0.5

    # Fused QKV weight (C, 3C).  The module's qkv output column order is
    # already (3, H, D) flattened, so q/k/v are the 1st/2nd/3rd C-wide column
    # blocks.  Fold the softmax scale into the Q columns (zero in-kernel cost).
    wqkv = params["wqkv"].astype(jnp.float32)
    wqkv = jnp.concatenate([wqkv[:, :C] * scale, wqkv[:, C:]], axis=1)
    wqkv = wqkv.astype(jnp.bfloat16)                               # (C, 3C)
    wo = params["wproj"].astype(jnp.bfloat16)                      # (C, C)
    bo = params["bproj"].astype(jnp.float32)                       # (1, C)
    xb = x.astype(jnp.bfloat16)

    # Real working-set estimate (double-buffered blocks + f32 temporaries).
    est = (2 * N * C * 2                # x block (bf16)
           + 2 * N * C * 4              # out block (f32)
           + 2 * C * 3 * C * 2          # fused Wqkv (bf16)
           + 2 * C * C * 2              # Wproj (bf16)
           + 2 * C * 4                  # bias
           + N * 3 * C * 4              # fused qkv f32 temporary
           + 3 * num_heads * N * N * 4  # att / p temporaries
           + 8 * N * C * 4)             # q/k/v/head temporaries
    vmem_limit = int(min(max(2 * est, 4 * 1024 * 1024), 32 * 1024 * 1024))

    return pl.pallas_call(
        functools.partial(attention_kernel, num_heads=num_heads),
        out_shape=jax.ShapeDtypeStruct((B, N, C), jnp.float32),
        grid_spec=pltpu.PrefetchScalarGridSpec(
            num_scalar_prefetch=0,
            grid=(B,),
            in_specs=[
                pl.BlockSpec((1, N, C), lambda b: (b, 0, 0)),   # x
                pl.BlockSpec((C, 3 * C), lambda b: (0, 0)),     # fused Wqkv (resident)
                pl.BlockSpec((C, C), lambda b: (0, 0)),         # Wproj (resident)
                pl.BlockSpec((1, C), lambda b: (0, 0)),         # proj bias
            ],
            out_specs=pl.BlockSpec((1, N, C), lambda b: (b, 0, 0)),
        ),
        compiler_params=pltpu.CompilerParams(
            dimension_semantics=("parallel",),
            vmem_limit_bytes=vmem_limit),
    )(xb, wqkv, wo, bo)


def attention_reference(x, params, *, num_heads):
    """Pure-JAX f32 reference mirroring the PyTorch forward."""
    B, N, C = x.shape
    D = C // num_heads
    scale = D ** -0.5
    qkv = x @ params["wqkv"]                                       # (B, N, 3C)
    qkv = qkv.reshape(B, N, 3, num_heads, D).transpose(2, 0, 3, 1, 4)
    q, k, v = qkv[0], qkv[1], qkv[2]                               # (B, H, N, D)
    att = jnp.einsum("bhnd,bhmd->bhnm", q, k) * scale
    att = jax.nn.softmax(att, axis=-1)
    out = jnp.einsum("bhnm,bhmd->bhnd", att, v)
    out = out.transpose(0, 2, 1, 3).reshape(B, N, C)
    return out @ params["wproj"] + params["bproj"]


def make_params(key, dim):
    ks = jax.random.split(key, 3)
    f32 = jnp.float32
    return {
        "wqkv": 0.02 * jax.random.normal(ks[0], (dim, 3 * dim), f32),  # qkv_bias=False
        "wproj": 0.02 * jax.random.normal(ks[1], (dim, dim), f32),
        "bproj": 0.02 * jax.random.normal(ks[2], (1, dim), f32),
    }


if __name__ == "__main__":
    B, N, C = 2, 16, 128      # C=128 -> lane-dense blocks everywhere
    NUM_HEADS = 8             # module default; head_dim = 16

    key = jax.random.PRNGKey(0)
    kx, kp = jax.random.split(key)
    x = jax.random.normal(kx, (B, N, C), jnp.float32)
    params = make_params(kp, C)

    out = attention_forward(x, params, num_heads=NUM_HEADS)
    out = jax.block_until_ready(out)

    ref = attention_reference(x, params, num_heads=NUM_HEADS)
    assert out.shape == (B, N, C)
    max_err = float(jnp.max(jnp.abs(out - ref)))
    # bf16 MXU operands + approx reciprocal vs f32 reference.
    assert max_err < 1e-2, max_err

    print("KERNEL_OK")
</pallas_src>

<mosaic_0001>
module attributes {stable_mosaic.version = 11 : i64} {
  func.func @attention_kernel(%arg0: i32, %arg1: memref<1x16x128xbf16, #tpu.memory_space<vmem>>, %arg2: memref<128x384xbf16, #tpu.memory_space<vmem>>, %arg3: memref<128x128xbf16, #tpu.memory_space<vmem>>, %arg4: memref<1x128xf32, #tpu.memory_space<vmem>>, %arg5: memref<1x16x128xf32, #tpu.memory_space<vmem>>) attributes {dimension_semantics = [#tpu.dimension_semantics<parallel>], iteration_bounds = array<i64: 2>, scalar_prefetch = 0 : i64, scratch_operands = 0 : i64, tpu.core_type = #tpu.core_type<tc>, window_params = [{transform_indices = @transform_0, window_bounds = array<i64: 1, 16, 128>}, {pipeline_mode = #tpu.pipeline_mode<synchronous>, transform_indices = @transform_1, window_bounds = array<i64: 128, 384>}, {pipeline_mode = #tpu.pipeline_mode<synchronous>, transform_indices = @transform_2, window_bounds = array<i64: 128, 128>}, {pipeline_mode = #tpu.pipeline_mode<synchronous>, transform_indices = @transform_3, window_bounds = array<i64: 1, 128>}, {transform_indices = @transform_4, window_bounds = array<i64: 1, 16, 128>}]} {
    %c0 = arith.constant 0 : index
    %c0_0 = arith.constant 0 : index
    %c0_1 = arith.constant 0 : index
    %0 = vector.load %arg1[%c0, %c0_0, %c0_1] : memref<1x16x128xbf16, #tpu.memory_space<vmem>>, vector<1x16x128xbf16>
    %1 = vector.shape_cast %0 : vector<1x16x128xbf16> to vector<16x128xbf16>
    %c0_2 = arith.constant 0 : index
    %c0_3 = arith.constant 0 : index
    %2 = vector.load %arg2[%c0_2, %c0_3] : memref<128x384xbf16, #tpu.memory_space<vmem>>, vector<128x384xbf16>
    %cst = arith.constant dense<0.000000e+00> : vector<16x384xf32>
    %3 = tpu.matmul %1, %2, %cst {dimension_numbers = #tpu.dot_dimension_numbers<[1], [0], [0], [1], [0, 0, 1, 1], [], []>} : vector<16x128xbf16>, vector<128x384xbf16>, vector<16x384xf32> -> vector<16x384xf32>
    %4 = vector.extract_strided_slice %3 {offsets = [0, 0], sizes = [16, 128], strides = [1, 1]} : vector<16x384xf32> to vector<16x128xf32>
    %5 = vector.shape_cast %4 : vector<16x128xf32> to vector<16x8x16xf32>
    %6 = tpu.transpose %5, [1, 0, 2] : vector<16x8x16xf32> -> vector<8x16x16xf32>
    %7 = arith.truncf %6 : vector<8x16x16xf32> to vector<8x16x16xbf16>
    %8 = vector.extract_strided_slice %3 {offsets = [0, 128], sizes = [16, 128], strides = [1, 1]} : vector<16x384xf32> to vector<16x128xf32>
    %9 = vector.shape_cast %8 : vector<16x128xf32> to vector<16x8x16xf32>
    %10 = tpu.transpose %9, [1, 0, 2] : vector<16x8x16xf32> -> vector<8x16x16xf32>
    %11 = arith.truncf %10 : vector<8x16x16xf32> to vector<8x16x16xbf16>
    %12 = vector.extract_strided_slice %3 {offsets = [0, 256], sizes = [16, 128], strides = [1, 1]} : vector<16x384xf32> to vector<16x128xf32>
    %13 = vector.shape_cast %12 : vector<16x128xf32> to vector<16x8x16xf32>
    %14 = tpu.transpose %13, [1, 0, 2] : vector<16x8x16xf32> -> vector<8x16x16xf32>
    %15 = arith.truncf %14 : vector<8x16x16xf32> to vector<8x16x16xbf16>
    "tpu.trace_start"() <{level = 10 : i32, message = "hnd,hmd->hnm"}> : () -> ()
    %cst_4 = arith.constant dense<0.000000e+00> : vector<8x16x16xf32>
    %16 = tpu.matmul %7, %11, %cst_4 {dimension_numbers = #tpu.dot_dimension_numbers<[2], [2], [1], [1], [0, 0, 0, 1, 1, 1], [0], [0]>} : vector<8x16x16xbf16>, vector<8x16x16xbf16>, vector<8x16x16xf32> -> vector<8x16x16xf32>
    "tpu.trace_stop"() : () -> ()
    %cst_5 = arith.constant dense<0xFF800000> : vector<8x16xf32>
    %17 = vector.multi_reduction <maximumf>, %16, %cst_5 [2] : vector<8x16x16xf32> to vector<8x16xf32>
    %18 = vector.shape_cast %17 : vector<8x16xf32> to vector<8x16x1xf32>
    %19 = vector.broadcast %18 : vector<8x16x1xf32> to vector<8x16x16xf32>
    %20 = arith.subf %16, %19 : vector<8x16x16xf32>
    %21 = math.exp %20 : vector<8x16x16xf32>
    %cst_6 = arith.constant dense<0.000000e+00> : vector<8x16xf32>
    %22 = vector.multi_reduction <add>, %21, %cst_6 [2] : vector<8x16x16xf32> to vector<8x16xf32>
    %23 = vector.shape_cast %22 : vector<8x16xf32> to vector<8x16x1xf32>
    %24 = tpu.reciprocal %23 {approx = true} : vector<8x16x1xf32> -> vector<8x16x1xf32>
    %25 = vector.broadcast %24 : vector<8x16x1xf32> to vector<8x16x16xf32>
    %26 = arith.mulf %21, %25 : vector<8x16x16xf32>
    %27 = arith.truncf %26 : vector<8x16x16xf32> to vector<8x16x16xbf16>
    "tpu.trace_start"() <{level = 10 : i32, message = "hnm,hmd->hnd"}> : () -> ()
    %cst_7 = arith.constant dense<0.000000e+00> : vector<8x16x16xf32>
    %28 = tpu.matmul %27, %15, %cst_7 {dimension_numbers = #tpu.dot_dimension_numbers<[2], [1], [1], [2], [0, 0, 0, 1, 1, 2], [0], [0]>} : vector<8x16x16xbf16>, vector<8x16x16xbf16>, vector<8x16x16xf32> -> vector<8x16x16xf32>
    "tpu.trace_stop"() : () -> ()
    %29 = tpu.transpose %28, [1, 0, 2] : vector<8x16x16xf32> -> vector<16x8x16xf32>
    %30 = vector.shape_cast %29 : vector<16x8x16xf32> to vector<16x128xf32>
    %31 = arith.truncf %30 : vector<16x128xf32> to vector<16x128xbf16>
    %c0_8 = arith.constant 0 : index
    %c0_9 = arith.constant 0 : index
    %32 = vector.load %arg3[%c0_8, %c0_9] : memref<128x128xbf16, #tpu.memory_space<vmem>>, vector<128x128xbf16>
    %cst_10 = arith.constant dense<0.000000e+00> : vector<16x128xf32>
    %33 = tpu.matmul %31, %32, %cst_10 {dimension_numbers = #tpu.dot_dimension_numbers<[1], [0], [0], [1], [0, 0, 1, 1], [], []>} : vector<16x128xbf16>, vector<128x128xbf16>, vector<16x128xf32> -> vector<16x128xf32>
    %c0_11 = arith.constant 0 : index
    %c0_12 = arith.constant 0 : index
    %34 = vector.load %arg4[%c0_11, %c0_12] : memref<1x128xf32, #tpu.memory_space<vmem>>, vector<1x128xf32>
    %35 = vector.broadcast %34 : vector<1x128xf32> to vector<16x128xf32>
    %36 = arith.addf %33, %35 : vector<16x128xf32>
    %c0_13 = arith.constant 0 : index
    %c0_14 = arith.constant 0 : index
    %c0_15 = arith.constant 0 : index
    %37 = vector.load %arg5[%c0_13, %c0_14, %c0_15] : memref<1x16x128xf32, #tpu.memory_space<vmem>>, vector<1x16x128xf32>
    %38 = vector.shape_cast %37 : vector<1x16x128xf32> to vector<16x128xf32>
    %39 = vector.shape_cast %36 : vector<16x128xf32> to vector<1x16x128xf32>
    tpu.vector_store %arg5[%c0_13, %c0_14, %c0_15], %39 {strides = array<i32>} : memref<1x16x128xf32, #tpu.memory_space<vmem>>, vector<1x16x128xf32>,
    return
  }
  func.func @transform_0(%arg0: i32) -> (i32, i32, i32) {
    %c0_i32 = arith.constant 0 : i32
    %c0_i32_0 = arith.constant 0 : i32
    %c0_i32_1 = arith.constant 0 : i32
    return %arg0, %c0_i32, %c0_i32_0 : i32, i32, i32
  }
  func.func @transform_1(%arg0: i32) -> (i32, i32) {
    %c0_i32 = arith.constant 0 : i32
    %c0_i32_0 = arith.constant 0 : i32
    %c0_i32_1 = arith.constant 0 : i32
    return %c0_i32, %c0_i32_0 : i32, i32
  }
  func.func @transform_2(%arg0: i32) -> (i32, i32) {
    %c0_i32 = arith.constant 0 : i32
    %c0_i32_0 = arith.constant 0 : i32
    %c0_i32_1 = arith.constant 0 : i32
    return %c0_i32, %c0_i32_0 : i32, i32
  }
  func.func @transform_3(%arg0: i32) -> (i32, i32) {
    %c0_i32 = arith.constant 0 : i32
    %c0_i32_0 = arith.constant 0 : i32
    %c0_i32_1 = arith.constant 0 : i32
    return %c0_i32, %c0_i32_0 : i32, i32
  }
  func.func @transform_4(%arg0: i32) -> (i32, i32, i32) {
    %c0_i32 = arith.constant 0 : i32
    %c0_i32_0 = arith.constant 0 : i32
    %c0_i32_1 = arith.constant 0 : i32
    return %arg0, %c0_i32, %c0_i32_0 : i32, i32, i32
  }
}

</mosaic_0001>

<llo_original>
// kernel: tpu_custom_call.1
$region0: #{tpu_custom_call.1}
  #allocation0 [shape = 'u32[]', space=smem, size = 0x4, offset = 0x4, fixed_abs, tag = 'smem constant byte address 0x4 - core index']
  #allocation1 [shape = 'u32[144,128]{1,0:T(1,128)}', space=vmem, size = 0x12000, scoped, tag = 'internal scratch']
  %s0 = inlined_call_operand.hbm [shape: bf16[2,16,128], index: 0, kind: input, shape index: {}]
  %s1 = inlined_call_operand.hbm [shape: bf16[128,384], index: 1, kind: input, shape index: {}]
  %s2 = inlined_call_operand.hbm [shape: bf16[128,128], index: 2, kind: input, shape index: {}]
  %s3 = inlined_call_operand.vmem [shape: f32[1,128], index: 3, kind: input, shape index: {}]
  %s4 = inlined_call_operand.hbm [shape: f32[2,16,128], index: 4, kind: output, shape index: {}]
  %s5 = sld [smem:[#allocation0]]
  $region61: #{tpu_custom_call.1} parent=0
    _
  %s7 = ssub.s32 1, %s5
  %s8 = scalar_select 0, %s7, %s5
  $region1: #{tpu_custom_call.1} parent=0
    #allocation2 [shape = 'u8[8192]{0}', space=vmem, size = 0x2000, scoped, tag = 'input window, operand 0']
    #allocation3 [shape = 's32[2]{0}', space=sflag, size = 0x8, scoped, tag = 'scoped memory for tpu_custom_call.1']
    #allocation4 [shape = 's32[2]{0}', space=sflag, size = 0x8, scoped, tag = 'scoped memory for tpu_custom_call.1']
    #allocation5 [shape = 'u8[98304]{0}', space=vmem, size = 0x18000, scoped, tag = 'input window, operand 1, single buffered']
    #allocation6 [shape = 's32[1]{0}', space=sflag, size = 0x4, scoped, tag = 'scoped memory for tpu_custom_call.1']
    #allocation7 [shape = 'u8[32768]{0}', space=vmem, size = 0x8000, scoped, tag = 'input window, operand 2, single buffered']
    #allocation8 [shape = 'u8[16384]{0}', space=vmem, size = 0x4000, scoped, tag = 'output window, operand 0']
    %9 = vsyncpa [#allocation3], 0
    %s10 = scalar_lea.sflag [#allocation3], 1
    %11 = vsyncpa %s10, 0
    %12 = vsyncpa [#allocation6], 0
    %13 = vsyncpa [#allocation4], 0
    %s14 = scalar_lea.sflag [#allocation4], 1
    %15 = vsyncpa %s14, 0
    loop: start=0, step=1, limit=4
    $region2: #{tpu_custom_call.1} parent=1 // loop_pre_header
      _
    $region3: #{tpu_custom_call.1} parent=1 // loop_header
      %s17 = sphi 0, %s21
      %p18 = scmp.ge.s32.totalorder %s17, 4
      %s27 = sphi 0, %s29
      %s30 = sphi 0, %s27
      %s31 = sphi 0, %s30
      %s47 = sphi 0, %s31
      %s51 = sphi 0, %s51
      %s53 = sphi 0, %s51
      %s54 = sphi 0, %s53
      %s68 = sphi 0, %s54
      %s72 = sphi 0, %s72
      %s74 = sphi 0, %s72
      %s75 = sphi 0, %s74
      %s89 = sphi 0, %s75
      %s93 = sphi 0, %s93
      %s95 = sphi 0, %s93
      %s96 = sphi 0, %s95
      %s110 = sphi 0, %s96
      %s116 = sphi 0, %s118
      %s119 = sphi 0, %s116
      %s120 = sphi 0, %s119
      %s136 = sphi 0, %s120
    $region4: #{tpu_custom_call.1} parent=1 // loop_header_branch
      %20 = sbr.rel (%p18) target = $region8
    $region5: #{tpu_custom_call.1} parent=1 // loop_body
      %s22 = ssub.s32 %s17, 1
      %s23 = ssub.s32 %s17, 2
      %s24 = sadd.s32 %s17, 1
      %s25 = ssub.s32 %s17, %s24
      %p26 = scmp.eq.s32.totalorder %s25, 0
      %s28 = sadd.s32 %s27, 1
      %s29 = scalar_select %p26, %s27, %s28
      %p32 = pneg %p26
      %p33 = scmp.eq.s32.totalorder %s17, 1
      %p34 = por %p32, %p33
      %p35 = scmp.ne.s32.totalorder %s27, %s30
      %p36 = scmp.eq.s32.totalorder %s17, 0
      %p37 = por %p35, %p36
      %p38 = scmp.ne.s32.totalorder %s27, %s30
      %p39 = scmp.eq.s32.totalorder %s22, 1
      %p40 = por %p38, %p39
      %p41 = scmp.ne.s32.totalorder %s30, %s31
      %p42 = scmp.eq.s32.totalorder %s22, 0
      %p43 = por %p41, %p42
      %p44 = scmp.ne.s32.totalorder %s30, %s31
      %p45 = scmp.eq.s32.totalorder %s23, 1
      %p46 = por %p44, %p45
      %p48 = scmp.ne.s32.totalorder %s31, %s47
      %p49 = scmp.eq.s32.totalorder %s23, 0
      %p50 = por %p48, %p49
      %s52 = sadd.s32 %s51, 1
      %p55 = scmp.eq.s32.totalorder %s17, 1
      %p56 = scmp.ne.s32.totalorder %s51, %s53
      %p57 = scmp.eq.s32.totalorder %s17, 0
      %p58 = por %p56, %p57
      %p59 = scmp.ne.s32.totalorder %s51, %s53
      %p60 = scmp.eq.s32.totalorder %s22, 1
      %p61 = por %p59, %p60
      %p62 = scmp.ne.s32.totalorder %s53, %s54
      %p63 = scmp.eq.s32.totalorder %s22, 0
      %p64 = por %p62, %p63
      %p65 = scmp.ne.s32.totalorder %s53, %s54
      %p66 = scmp.eq.s32.totalorder %s23, 1
      %p67 = por %p65, %p66
      %p69 = scmp.ne.s32.totalorder %s54, %s68
      %p70 = scmp.eq.s32.totalorder %s23, 0
      %p71 = por %p69, %p70
      %s73 = sadd.s32 %s72, 1
      %p76 = scmp.eq.s32.totalorder %s17, 1
      %p77 = scmp.ne.s32.totalorder %s72, %s74
      %p78 = scmp.eq.s32.totalorder %s17, 0
      %p79 = por %p77, %p78
      %p80 = scmp.ne.s32.totalorder %s72, %s74
      %p81 = scmp.eq.s32.totalorder %s22, 1
      %p82 = por %p80, %p81
      %p83 = scmp.ne.s32.totalorder %s74, %s75
      %p84 = scmp.eq.s32.totalorder %s22, 0
      %p85 = por %p83, %p84
      %p86 = scmp.ne.s32.totalorder %s74, %s75
      %p87 = scmp.eq.s32.totalorder %s23, 1
      %p88 = por %p86, %p87
      %p90 = scmp.ne.s32.totalorder %s75, %s89
      %p91 = scmp.eq.s32.totalorder %s23, 0
      %p92 = por %p90, %p91
      %s94 = sadd.s32 %s93, 1
      %p97 = scmp.eq.s32.totalorder %s17, 1
      %p98 = scmp.ne.s32.totalorder %s93, %s95
      %p99 = scmp.eq.s32.totalorder %s17, 0
      %p100 = por %p98, %p99
      %p101 = scmp.ne.s32.totalorder %s93, %s95
      %p102 = scmp.eq.s32.totalorder %s22, 1
      %p103 = por %p101, %p102
      %p104 = scmp.ne.s32.totalorder %s95, %s96
      %p105 = scmp.eq.s32.totalorder %s22, 0
      %p106 = por %p104, %p105
      %p107 = scmp.ne.s32.totalorder %s95, %s96
      %p108 = scmp.eq.s32.totalorder %s23, 1
      %p109 = por %p107, %p108
      %p111 = scmp.ne.s32.totalorder %s96, %s110
      %p112 = scmp.eq.s32.totalorder %s23, 0
      %p113 = por %p111, %p112
      %s114 = ssub.s32 %s17, %s24
      %p115 = scmp.eq.s32.totalorder %s114, 0
      %s117 = sadd.s32 %s116, 1
      %s118 = scalar_select %p115, %s116, %s117
      %p121 = pneg %p115
      %p122 = scmp.eq.s32.totalorder %s17, 1
      %p123 = por %p121, %p122
      %p124 = scmp.ne.s32.totalorder %s116, %s119
      %p125 = scmp.eq.s32.totalorder %s17, 0
      %p126 = por %p124, %p125
      %p127 = scmp.ne.s32.totalorder %s116, %s119
      %p128 = scmp.eq.s32.totalorder %s22, 1
      %p129 = por %p127, %p128
      %p130 = scmp.ne.s32.totalorder %s119, %s120
      %p131 = scmp.eq.s32.totalorder %s22, 0
      %p132 = por %p130, %p131
      %p133 = scmp.ne.s32.totalorder %s119, %s120
      %p134 = scmp.eq.s32.totalorder %s23, 1
      %p135 = por %p133, %p134
      %p137 = scmp.ne.s32.totalorder %s120, %s136
      %p138 = scmp.eq.s32.totalorder %s23, 0
      %p139 = por %p137, %p138
      %p140 = scmp.le.s32.totalorder 1, %s17
      %p141 = scmp.lt.s32.totalorder %s17, 3
      %p142 = pnand %p140, %p141
      %p143 = pneg %p142
      // Predicated region
      $region9: #{tpu_custom_call.1} parent=5 // pred_check
        _
      $region10: #{tpu_custom_call.1} parent=5 // pred_check_branch
        %145 = sbr.rel (%p142) target = $region12
      $region11: #{tpu_custom_call.1} parent=5 // pred_region
        %s146 = ssub.s32 %s17, 1
        // Predicated region
        $region13: #{tpu_custom_call.1} parent=11 // pred_check
          %p147 = pneg %p64
        $region14: #{tpu_custom_call.1} parent=11 // pred_check_branch
          %149 = sbr.rel (%p147) target = $region16
        $region15: #{tpu_custom_call.1} parent=11 // pred_region
          %s151 = ssub.s32 3072, 3072
          %152 = vsyncadd [#allocation6], %s151
          %s153 = sshll.u32 [#allocation5], 4
          %s154 = int_to_ptr.vmem [resolvable:$true] %s153
          %159 = dma.hbm_to_vmem [thread:$0]  %s1, 3072, %s154, [#allocation6], 192, 192, 12
        $region16: #{tpu_custom_call.1} parent=11 // pred_fallthru
          _
        // Predicated region
        $region17: #{tpu_custom_call.1} parent=11 // pred_check
          %p160 = pneg %p85
        $region18: #{tpu_custom_call.1} parent=11 // pred_check_branch
          %162 = sbr.rel (%p160) target = $region20
        $region19: #{tpu_custom_call.1} parent=11 // pred_region
          %s164 = ssub.s32 1024, 1024
          %165 = vsyncadd [#allocation6], %s164
          %s166 = sshll.u32 [#allocation7], 4
          %s167 = int_to_ptr.vmem [resolvable:$true] %s166
          %172 = dma.hbm_to_vmem [thread:$0]  %s2, 1024, %s167, [#allocation6], 64, 64, 4
        $region20: #{tpu_custom_call.1} parent=11 // pred_fallthru
          _
        // Predicated region
        $region21: #{tpu_custom_call.1} parent=11 // pred_check
          %p173 = pneg %p106
        $region22: #{tpu_custom_call.1} parent=11 // pred_check_branch
          %175 = sbr.rel (%p173) target = $region24
        $region23: #{tpu_custom_call.1} parent=11 // pred_region
          _
        $region24: #{tpu_custom_call.1} parent=11 // pred_fallthru
          _
      $region12: #{tpu_custom_call.1} parent=5 // pred_fallthru
        _
      %p176 = scmp.lt.s32.totalorder %s17, 2
      // Predicated region
      $region25: #{tpu_custom_call.1} parent=5 // pred_check
        %p177 = pneg %p176
      $region26: #{tpu_custom_call.1} parent=5 // pred_check_branch
        %179 = sbr.rel (%p177) target = $region28
      $region27: #{tpu_custom_call.1} parent=5 // pred_region
        // Predicated region
        $region29: #{tpu_custom_call.1} parent=27 // pred_check
          %p180 = pneg %p37
        $region30: #{tpu_custom_call.1} parent=27 // pred_check_branch
          %182 = sbr.rel (%p180) target = $region32
        $region31: #{tpu_custom_call.1} parent=27 // pred_region
          %s183 = sand.u32 %s27, 1
          %s184 = scalar_lea.sflag [#allocation3], %s183
          %s185 = sand.u32 %s27, 1
          %s186 = smul.addr %s185, 8
          %s187 = scalar_lea.vmem [#allocation2], %s186
          %s189 = ssub.s32 128, 128
          %190 = vsyncadd %s184, %s189
          %s191 = smul.addr %s17, 2
          %s192 = smul.addr %s191, 64
          %s193 = scalar_lea.hbm %s0, %s192
          %s194 = sshll.u32 %s187, 4
          %s195 = int_to_ptr.vmem [resolvable:$true] %s194
          %200 = dma.hbm_to_vmem [thread:$0]  %s193, 128, %s195, %s184, 64, 64, 4
        $region32: #{tpu_custom_call.1} parent=27 // pred_fallthru
          _
      $region28: #{tpu_custom_call.1} parent=5 // pred_fallthru
        _
      %p201 = scmp.le.s32.totalorder 1, %s17
      %p202 = scmp.lt.s32.totalorder %s17, 3
      %p203 = pnand %p201, %p202
      %p204 = pneg %p203
      // Predicated region
      $region33: #{tpu_custom_call.1} parent=5 // pred_check
        _
      $region34: #{tpu_custom_call.1} parent=5 // pred_check_branch
        %206 = sbr.rel (%p203) target = $region36
      $region35: #{tpu_custom_call.1} parent=5 // pred_region
        %s207 = ssub.s32 %s17, 1
        %s208 = sand.u32 %s30, 1
        %s209 = scalar_lea.sflag [#allocation3], %s208
        %s210 = sand.u32 %s30, 1
        %s211 = smul.addr %s210, 8
        %s212 = scalar_lea.vmem [#allocation2], %s211
        // Predicated region
        $region37: #{tpu_custom_call.1} parent=35 // pred_check
          %p213 = pneg %p43
        $region38: #{tpu_custom_call.1} parent=35 // pred_check_branch
          %215 = sbr.rel (%p213) target = $region40
        $region39: #{tpu_custom_call.1} parent=35 // pred_region
          %216 = dma.done %s209, 128
        $region40: #{tpu_custom_call.1} parent=35 // pred_fallthru
          _
        // Predicated region
        $region41: #{tpu_custom_call.1} parent=35 // pred_check
          %p217 = pneg %p64
        $region42: #{tpu_custom_call.1} parent=35 // pred_check_branch
          %219 = sbr.rel (%p217) target = $region44
        $region43: #{tpu_custom_call.1} parent=35 // pred_region
          %220 = dma.done [#allocation6], 3072
        $region44: #{tpu_custom_call.1} parent=35 // pred_fallthru
          _
        // Predicated region
        $region45: #{tpu_custom_call.1} parent=35 // pred_check
          %p221 = pneg %p85
        $region46: #{tpu_custom_call.1} parent=35 // pred_check_branch
          %223 = sbr.rel (%p221) target = $region48
        $region47: #{tpu_custom_call.1} parent=35 // pred_region
          %224 = dma.done [#allocation6], 1024
        $region48: #{tpu_custom_call.1} parent=35 // pred_fallthru
          _
        %s225 = sand.u32 %s30, 1
        %s226 = scalar_lea.sflag [#allocation3], %s225
        %s227 = sand.u32 %s30, 1
        %s228 = smul.addr %s227, 8
        %s229 = scalar_lea.vmem [#allocation2], %s228
        %p230 = pneg %p43
        %p231 = pneg %p40
        %p232 = pneg %p64
        %p233 = pneg %p61
        %p234 = pneg %p85
        %p235 = pneg %p82
        %p236 = pneg %p106
        %p237 = pneg %p103
        %p238 = pneg %p132
        %p239 = pneg %p129
        %s240 = sand.u32 %s119, 1
        %s241 = scalar_lea.sflag [#allocation4], %s240
        %s242 = sand.u32 %s119, 1
        %s243 = smul.addr %s242, 16
        %s244 = scalar_lea.vmem [#allocation8], %s243
        %v246 = vld [vmem:[%s212] sm:$0xf]
        %v247 = vld [vmem:[%s212 + $0x4] sm:$0xf]
        %v248 = vld [vmem:[#allocation5] sm:$0xff]
        %v249 = vld [vmem:[#allocation5 + $0x8] sm:$0xf]
        %v250 = vld [vmem:[#allocation5 + $0xc] sm:$0xff]
        %v251 = vld [vmem:[#allocation5 + $0x14] sm:$0xf]
        %v252 = vld [vmem:[#allocation5 + $0x18] sm:$0xff]
        %v253 = vld [vmem:[#allocation5 + $0x20] sm:$0xf]
        %v254 = vld [vmem:[#allocation5 + $0x24] sm:$0xff]
        %v255 = vld [vmem:[#allocation5 + $0x2c] sm:$0xf]
        %v256 = vld [vmem:[#allocation5 + $0x30] sm:$0xff]
        %v257 = vld [vmem:[#allocation5 + $0x38] sm:$0xf]
        %v258 = vld [vmem:[#allocation5 + $0x3c] sm:$0xff]
        %v259 = vld [vmem:[#allocation5 + $0x44] sm:$0xf]
        %v260 = vld [vmem:[#allocation5 + $0x48] sm:$0xff]
        %v261 = vld [vmem:[#allocation5 + $0x50] sm:$0xf]
        %v262 = vld [vmem:[#allocation5 + $0x54] sm:$0xff]
        %v263 = vld [vmem:[#allocation5 + $0x5c] sm:$0xf]
        %v264 = vld [vmem:[#allocation5 + $0x60] sm:$0xff]
        %v265 = vld [vmem:[#allocation5 + $0x68] sm:$0xf]
        %v266 = vld [vmem:[#allocation5 + $0x6c] sm:$0xff]
        %v267 = vld [vmem:[#allocation5 + $0x74] sm:$0xf]
        %v268 = vld [vmem:[#allocation5 + $0x78] sm:$0xff]
        %v269 = vld [vmem:[#allocation5 + $0x80] sm:$0xf]
        %v270 = vld [vmem:[#allocation5 + $0x84] sm:$0xff]
        %v271 = vld [vmem:[#allocation5 + $0x8c] sm:$0xf]
        %v272 = vld [vmem:[#allocation5 + $0x90] sm:$0xff]
        %v273 = vld [vmem:[#allocation5 + $0x98] sm:$0xf]
        %v274 = vld [vmem:[#allocation5 + $0x9c] sm:$0xff]
        %v275 = vld [vmem:[#allocation5 + $0xa4] sm:$0xf]
        %v276 = vld [vmem:[#allocation5 + $0xa8] sm:$0xff]
        %v277 = vld [vmem:[#allocation5 + $0xb0] sm:$0xf]
        %v278 = vld [vmem:[#allocation5 + $0xb4] sm:$0xff]
        %v279 = vld [vmem:[#allocation5 + $0xbc] sm:$0xf]
        %v282 = vunpack.c.l.b16 %v246
        %v283 = vunpack.c.l.b16 %v247
        %v284 = vpack.c.b16 %v283, %v282
        %v318 = vunpack.c.l.b16 %v248
        %v319 = vunpack.c.h.b16 %v248
        %v320 = vunpack.c.l.b16 %v249
        %v321 = vunpack.c.l.b16 %v250
        %v322 = vunpack.c.h.b16 %v250
        %v323 = vunpack.c.l.b16 %v251
        %v324 = vunpack.c.l.b16 %v252
        %v325 = vunpack.c.h.b16 %v252
        %v326 = vunpack.c.l.b16 %v253
        %v327 = vunpack.c.l.b16 %v254
        %v328 = vunpack.c.h.b16 %v254
        %v329 = vunpack.c.l.b16 %v255
        %v330 = vunpack.c.l.b16 %v256
        %v331 = vunpack.c.h.b16 %v256
        %v332 = vunpack.c.l.b16 %v257
        %v333 = vunpack.c.l.b16 %v258
        %v334 = vunpack.c.h.b16 %v258
        %v335 = vunpack.c.l.b16 %v259
        %v336 = vunpack.c.l.b16 %v260
        %v337 = vunpack.c.h.b16 %v260
        %v338 = vunpack.c.l.b16 %v261
        %v339 = vunpack.c.l.b16 %v262
        %v340 = vunpack.c.h.b16 %v262
        %v341 = vunpack.c.l.b16 %v263
        %v342 = vunpack.c.l.b16 %v264
        %v343 = vunpack.c.h.b16 %v264
        %v344 = vunpack.c.l.b16 %v265
        %v345 = vunpack.c.l.b16 %v266
        %v346 = vunpack.c.h.b16 %v266
        %v347 = vunpack.c.l.b16 %v267
        %v348 = vunpack.c.l.b16 %v268
        %v349 = vunpack.c.h.b16 %v268
        %v350 = vunpack.c.l.b16 %v269
        %v351 = vunpack.c.l.b16 %v270
        %v352 = vunpack.c.h.b16 %v270
        %v353 = vunpack.c.l.b16 %v271
        %v354 = vunpack.c.l.b16 %v272
        %v355 = vunpack.c.h.b16 %v272
        %v356 = vunpack.c.l.b16 %v273
        %v357 = vunpack.c.l.b16 %v274
        %v358 = vunpack.c.h.b16 %v274
        %v359 = vunpack.c.l.b16 %v275
        %v360 = vunpack.c.l.b16 %v276
        %v361 = vunpack.c.h.b16 %v276
        %v362 = vunpack.c.l.b16 %v277
        %v363 = vunpack.c.l.b16 %v278
        %v364 = vunpack.c.h.b16 %v278
        %v365 = vunpack.c.l.b16 %v279
        %v366 = vpack.c.b16 %v321, %v318
        %v367 = vpack.c.b16 %v322, %v319
        %v368 = vpack.c.b16 %v323, %v320
        %v369 = vpack.c.b16 %v327, %v324
        %v370 = vpack.c.b16 %v328, %v325
        %v371 = vpack.c.b16 %v329, %v326
        %v372 = vpack.c.b16 %v333, %v330
        %v373 = vpack.c.b16 %v334, %v331
        %v374 = vpack.c.b16 %v335, %v332
        %v375 = vpack.c.b16 %v339, %v336
        %v376 = vpack.c.b16 %v340, %v337
        %v377 = vpack.c.b16 %v341, %v338
        %v378 = vpack.c.b16 %v345, %v342
        %v379 = vpack.c.b16 %v346, %v343
        %v380 = vpack.c.b16 %v347, %v344
        %v381 = vpack.c.b16 %v351, %v348
        %v382 = vpack.c.b16 %v352, %v349
        %v383 = vpack.c.b16 %v353, %v350
        %v384 = vpack.c.b16 %v357, %v354
        %v385 = vpack.c.b16 %v358, %v355
        %v386 = vpack.c.b16 %v359, %v356
        %v387 = vpack.c.b16 %v363, %v360
        %v388 = vpack.c.b16 %v364, %v361
        %v389 = vpack.c.b16 %v365, %v362
        %414 = vmatprep.subr.bf16.mxu0 %v367
        %415 = vmatpush1.bf16.msra.mxu0 %v366
        %416 = vmatprep.subr.bf16.mxu0 %v370
        %417 = vmatpush1.bf16.msra.mxu0 %v369
        %418 = vmatprep.subr.bf16.mxu0 %v373
        %419 = vmatpush1.bf16.msra.mxu0 %v372
        %420 = vmatprep.subr.bf16.mxu0 %v376
        %421 = vmatpush1.bf16.msra.mxu0 %v375
        %422 = vmatprep.subr.bf16.mxu0 %v379
        %423 = vmatpush1.bf16.msra.mxu0 %v378
        %424 = vmatprep.subr.bf16.mxu0 %v382
        %425 = vmatpush1.bf16.msra.mxu0 %v381
        %426 = vmatprep.subr.bf16.mxu0 %v385
        %427 = vmatpush1.bf16.msra.mxu0 %v384
        %428 = vmatprep.subr.bf16.mxu0 %v388
        %429 = vmatpush1.bf16.msra.mxu0 %v387
        %430 = vmatprep.subr.bf16.mxu0 0
        %431 = vmatpush1.bf16.msra.mxu0 0
        %432 = vmatprep.subr.bf16.mxu0 0
        %433 = vmatpush1.bf16.msra.mxu0 0
        %434 = vmatprep.subr.bf16.mxu0 0
        %435 = vmatpush1.bf16.msra.mxu0 0
        %436 = vmatprep.subr.bf16.mxu0 0
        %437 = vmatpush1.bf16.msra.mxu0 0
        %438 = vmatprep.subr.bf16.mxu0 0
        %439 = vmatpush1.bf16.msra.mxu0 0
        %440 = vmatprep.subr.bf16.mxu0 0
        %441 = vmatpush1.bf16.msra.mxu0 0
        %442 = vmatprep.subr.bf16.mxu0 0
        %443 = vmatpush1.bf16.msra.mxu0 0
        %444 = vmatprep.subr.bf16.mxu0 0
        %445 = vmatpush1.bf16.msra.mxu0 0
        %446 = vmatprep.mubr.bf16.mxu0 0
        %447 = vmatmul.mubr.bf16.gmra.mrb[0].mxu0 %v284
        %v448 = vpop.f32.mrb[0].mxu0
        %v449 = vadd.f32 0.0, %v448
        %v450 = vpop.f32.mrb[0].mxu0
        %v451 = vadd.f32 0.0, %v450
        %v452 = vpop.f32.mrb[0].mxu0
        %v453 = vadd.f32 0.0, %v452
        %v454 = vpop.f32.mrb[0].mxu0
        %v455 = vadd.f32 0.0, %v454
        %456 = vdwg.mxu0
        %457 = vmatprep.subr.bf16.mxu0 0
        %458 = vmatpush1.bf16.msra.mxu0 %v368
        %459 = vmatprep.subr.bf16.mxu0 0
        %460 = vmatpush1.bf16.msra.mxu0 %v371
        %461 = vmatprep.subr.bf16.mxu0 0
        %462 = vmatpush1.bf16.msra.mxu0 %v374
        %463 = vmatprep.subr.bf16.mxu0 0
        %464 = vmatpush1.bf16.msra.mxu0 %v377
        %465 = vmatprep.subr.bf16.mxu0 0
        %466 = vmatpush1.bf16.msra.mxu0 %v380
        %467 = vmatprep.subr.bf16.mxu0 0
        %468 = vmatpush1.bf16.msra.mxu0 %v383
        %469 = vmatprep.subr.bf16.mxu0 0
        %470 = vmatpush1.bf16.msra.mxu0 %v386
        %471 = vmatprep.subr.bf16.mxu0 0
        %472 = vmatpush1.bf16.msra.mxu0 %v389
        %473 = vmatprep.subr.bf16.mxu0 0
        %474 = vmatpush1.bf16.msra.mxu0 0
        %475 = vmatprep.subr.bf16.mxu0 0
        %476 = vmatpush1.bf16.msra.mxu0 0
        %477 = vmatprep.subr.bf16.mxu0 0
        %478 = vmatpush1.bf16.msra.mxu0 0
        %479 = vmatprep.subr.bf16.mxu0 0
        %480 = vmatpush1.bf16.msra.mxu0 0
        %481 = vmatprep.subr.bf16.mxu0 0
        %482 = vmatpush1.bf16.msra.mxu0 0
        %483 = vmatprep.subr.bf16.mxu0 0
        %484 = vmatpush1.bf16.msra.mxu0 0
        %485 = vmatprep.subr.bf16.mxu0 0
        %486 = vmatpush1.bf16.msra.mxu0 0
        %487 = vmatprep.subr.bf16.mxu0 0
        %488 = vmatpush1.bf16.msra.mxu0 0
        %489 = vmatprep.mubr.bf16.mxu0 0
        %490 = vmatmul.mubr.bf16.gmra.mrb[0].mxu0 %v284
        %v491 = vpop.f32.mrb[0].mxu0
        %v492 = vadd.f32 0.0, %v491
        %v493 = vpop.f32.mrb[0].mxu0
        %v494 = vpop.f32.mrb[0].mxu0
        %v495 = vadd.f32 0.0, %v494
        %v496 = vpop.f32.mrb[0].mxu0
        %497 = vdwg.mxu0
        %500 = vrot.lane.b32.xlu0 %v449, 112
        %v501 = vpop.permute.xlu0 %500
        %502 = vrot.lane.b32.xlu0 %v453, 112
        %v503 = vpop.permute.xlu0 %502
        %506 = vrot.lane.b32.xlu0 %v449, 96
        %v507 = vpop.permute.xlu0 %506
        %508 = vrot.lane.b32.xlu0 %v453, 96
        %v509 = vpop.permute.xlu0 %508
        %512 = vrot.lane.b32.xlu0 %v449, 80
        %v513 = vpop.permute.xlu0 %512
        %514 = vrot.lane.b32.xlu0 %v453, 80
        %v515 = vpop.permute.xlu0 %514
        %518 = vrot.lane.b32.xlu0 %v449, 64
        %v519 = vpop.permute.xlu0 %518
        %520 = vrot.lane.b32.xlu0 %v453, 64
        %v521 = vpop.permute.xlu0 %520
        %524 = vrot.lane.b32.xlu0 %v449, 48
        %v525 = vpop.permute.xlu0 %524
        %526 = vrot.lane.b32.xlu0 %v453, 48
        %v527 = vpop.permute.xlu0 %526
        %530 = vrot.lane.b32.xlu0 %v449, 32
        %v531 = vpop.permute.xlu0 %530
        %532 = vrot.lane.b32.xlu0 %v453, 32
        %v533 = vpop.permute.xlu0 %532
        %536 = vrot.lane.b32.xlu0 %v449, 16
        %v537 = vpop.permute.xlu0 %536
        %538 = vrot.lane.b32.xlu0 %v453, 16
        %v539 = vpop.permute.xlu0 %538
        %v542 = vcombine.low %v449, %v507
        %v543 = vcombine.high %v449, %v507
        %v545 = vunpack.c.l.s4 1983009808
        %v546 = vunpack.c.0.s8 %v545
        %v547 = vlaneseq
        %v548 = vshrl.u32 %v547, 7
        %v549 = vsub.s32 %v546, %v548
        %v550 = vrot.slane %v542, %v549
        %v552 = vunpack.c.l.s4 1983009808
        %v553 = vunpack.c.0.s8 %v552
        %v554 = vlaneseq
        %v555 = vshrl.u32 %v554, 7
        %v556 = vsub.s32 %v553, %v555
        %v557 = vrot.slane %v543, %v556
        %v558 = vcombine.low %v501, %v513
        %v559 = vcombine.high %v501, %v513
        %v561 = vunpack.c.l.s4 1983009808
        %v562 = vunpack.c.0.s8 %v561
        %v563 = vlaneseq
        %v564 = vshrl.u32 %v563, 7
        %v565 = vsub.s32 %v562, %v564
        %v566 = vrot.slane %v558, %v565
        %v568 = vunpack.c.l.s4 1983009808
        %v569 = vunpack.c.0.s8 %v568
        %v570 = vlaneseq
        %v571 = vshrl.u32 %v570, 7
        %v572 = vsub.s32 %v569, %v571
        %v573 = vrot.slane %v559, %v572
        %v574 = vcombine.low %v519, %v531
        %v575 = vcombine.high %v519, %v531
        %v577 = vunpack.c.l.s4 1983009808
        %v578 = vunpack.c.0.s8 %v577
        %v579 = vlaneseq
        %v580 = vshrl.u32 %v579, 7
        %v581 = vsub.s32 %v578, %v580
        %v582 = vrot.slane %v574, %v581
        %v584 = vunpack.c.l.s4 1983009808
        %v585 = vunpack.c.0.s8 %v584
        %v586 = vlaneseq
        %v587 = vshrl.u32 %v586, 7
        %v588 = vsub.s32 %v585, %v587
        %v589 = vrot.slane %v575, %v588
        %v590 = vcombine.low %v525, %v537
        %v591 = vcombine.high %v525, %v537
        %v593 = vunpack.c.l.s4 1983009808
        %v594 = vunpack.c.0.s8 %v593
        %v595 = vlaneseq
        %v596 = vshrl.u32 %v595, 7
        %v597 = vsub.s32 %v594, %v596
        %v598 = vrot.slane %v590, %v597
        %v600 = vunpack.c.l.s4 1983009808
        %v601 = vunpack.c.0.s8 %v600
        %v602 = vlaneseq
        %v603 = vshrl.u32 %v602, 7
        %v604 = vsub.s32 %v601, %v603
        %v605 = vrot.slane %v591, %v604
        %v606 = vcombine.low %v550, %v566
        %v607 = vcombine.high %v550, %v566
        %v609 = vunpack.c.l.s4 1934713408
        %v610 = vunpack.c.0.s8 %v609
        %v611 = vlaneseq
        %v612 = vshrl.u32 %v611, 7
        %v613 = vsub.s32 %v610, %v612
        %v614 = vrot.slane %v606, %v613
        %v616 = vunpack.c.l.s4 1934713408
        %v617 = vunpack.c.0.s8 %v616
        %v618 = vlaneseq
        %v619 = vshrl.u32 %v618, 7
        %v620 = vsub.s32 %v617, %v619
        %v621 = vrot.slane %v607, %v620
        %v622 = vcombine.low %v557, %v573
        %v623 = vcombine.high %v557, %v573
        %v625 = vunpack.c.l.s4 1934713408
        %v626 = vunpack.c.0.s8 %v625
        %v627 = vlaneseq
        %v628 = vshrl.u32 %v627, 7
        %v629 = vsub.s32 %v626, %v628
        %v630 = vrot.slane %v622, %v629
        %v632 = vunpack.c.l.s4 1934713408
        %v633 = vunpack.c.0.s8 %v632
        %v634 = vlaneseq
        %v635 = vshrl.u32 %v634, 7
        %v636 = vsub.s32 %v633, %v635
        %v637 = vrot.slane %v623, %v636
        %v638 = vcombine.low %v582, %v598
        %v639 = vcombine.high %v582, %v598
        %v641 = vunpack.c.l.s4 1934713408
        %v642 = vunpack.c.0.s8 %v641
        %v643 = vlaneseq
        %v644 = vshrl.u32 %v643, 7
        %v645 = vsub.s32 %v642, %v644
        %v646 = vrot.slane %v638, %v645
        %v648 = vunpack.c.l.s4 1934713408
        %v649 = vunpack.c.0.s8 %v648
        %v650 = vlaneseq
        %v651 = vshrl.u32 %v650, 7
        %v652 = vsub.s32 %v649, %v651
        %v653 = vrot.slane %v639, %v652
        %v654 = vcombine.low %v589, %v605
        %v655 = vcombine.high %v589, %v605
        %v657 = vunpack.c.l.s4 1934713408
        %v658 = vunpack.c.0.s8 %v657
        %v659 = vlaneseq
        %v660 = vshrl.u32 %v659, 7
        %v661 = vsub.s32 %v658, %v660
        %v662 = vrot.slane %v654, %v661
        %v664 = vunpack.c.l.s4 1934713408
        %v665 = vunpack.c.0.s8 %v664
        %v666 = vlaneseq
        %v667 = vshrl.u32 %v666, 7
        %v668 = vsub.s32 %v665, %v667
        %v669 = vrot.slane %v655, %v668
        %v670 = vcombine.low %v614, %v646
        %v671 = vcombine.high %v614, %v646
        %v672 = vcombine.low %v621, %v653
        %v673 = vcombine.high %v621, %v653
        %v674 = vcombine.low %v630, %v662
        %v675 = vcombine.high %v630, %v662
        %v676 = vcombine.low %v637, %v669
        %v677 = vcombine.high %v637, %v669
        %v678 = vcombine.low %v453, %v509
        %v679 = vcombine.high %v453, %v509
        %v681 = vunpack.c.l.s4 1983009808
        %v682 = vunpack.c.0.s8 %v681
        %v683 = vlaneseq
        %v684 = vshrl.u32 %v683, 7
        %v685 = vsub.s32 %v682, %v684
        %v686 = vrot.slane %v678, %v685
        %v688 = vunpack.c.l.s4 1983009808
        %v689 = vunpack.c.0.s8 %v688
        %v690 = vlaneseq
        %v691 = vshrl.u32 %v690, 7
        %v692 = vsub.s32 %v689, %v691
        %v693 = vrot.slane %v679, %v692
        %v694 = vcombine.low %v503, %v515
        %v695 = vcombine.high %v503, %v515
        %v697 = vunpack.c.l.s4 1983009808
        %v698 = vunpack.c.0.s8 %v697
        %v699 = vlaneseq
        %v700 = vshrl.u32 %v699, 7
        %v701 = vsub.s32 %v698, %v700
        %v702 = vrot.slane %v694, %v701
        %v704 = vunpack.c.l.s4 1983009808
        %v705 = vunpack.c.0.s8 %v704
        %v706 = vlaneseq
        %v707 = vshrl.u32 %v706, 7
        %v708 = vsub.s32 %v705, %v707
        %v709 = vrot.slane %v695, %v708
        %v710 = vcombine.low %v521, %v533
        %v711 = vcombine.high %v521, %v533
        %v713 = vunpack.c.l.s4 1983009808
        %v714 = vunpack.c.0.s8 %v713
        %v715 = vlaneseq
        %v716 = vshrl.u32 %v715, 7
        %v717 = vsub.s32 %v714, %v716
        %v718 = vrot.slane %v710, %v717
        %v720 = vunpack.c.l.s4 1983009808
        %v721 = vunpack.c.0.s8 %v720
        %v722 = vlaneseq
        %v723 = vshrl.u32 %v722, 7
        %v724 = vsub.s32 %v721, %v723
        %v725 = vrot.slane %v711, %v724
        %v726 = vcombine.low %v527, %v539
        %v727 = vcombine.high %v527, %v539
        %v729 = vunpack.c.l.s4 1983009808
        %v730 = vunpack.c.0.s8 %v729
        %v731 = vlaneseq
        %v732 = vshrl.u32 %v731, 7
        %v733 = vsub.s32 %v730, %v732
        %v734 = vrot.slane %v726, %v733
        %v736 = vunpack.c.l.s4 1983009808
        %v737 = vunpack.c.0.s8 %v736
        %v738 = vlaneseq
        %v739 = vshrl.u32 %v738, 7
        %v740 = vsub.s32 %v737, %v739
        %v741 = vrot.slane %v727, %v740
        %v742 = vcombine.low %v686, %v702
        %v743 = vcombine.high %v686, %v702
        %v745 = vunpack.c.l.s4 1934713408
        %v746 = vunpack.c.0.s8 %v745
        %v747 = vlaneseq
        %v748 = vshrl.u32 %v747, 7
        %v749 = vsub.s32 %v746, %v748
        %v750 = vrot.slane %v742, %v749
        %v752 = vunpack.c.l.s4 1934713408
        %v753 = vunpack.c.0.s8 %v752
        %v754 = vlaneseq
        %v755 = vshrl.u32 %v754, 7
        %v756 = vsub.s32 %v753, %v755
        %v757 = vrot.slane %v743, %v756
        %v758 = vcombine.low %v693, %v709
        %v759 = vcombine.high %v693, %v709
        %v761 = vunpack.c.l.s4 1934713408
        %v762 = vunpack.c.0.s8 %v761
        %v763 = vlaneseq
        %v764 = vshrl.u32 %v763, 7
        %v765 = vsub.s32 %v762, %v764
        %v766 = vrot.slane %v758, %v765
        %v768 = vunpack.c.l.s4 1934713408
        %v769 = vunpack.c.0.s8 %v768
        %v770 = vlaneseq
        %v771 = vshrl.u32 %v770, 7
        %v772 = vsub.s32 %v769, %v771
        %v773 = vrot.slane %v759, %v772
        %v774 = vcombine.low %v718, %v734
        %v775 = vcombine.high %v718, %v734
        %v777 = vunpack.c.l.s4 1934713408
        %v778 = vunpack.c.0.s8 %v777
        %v779 = vlaneseq
        %v780 = vshrl.u32 %v779, 7
        %v781 = vsub.s32 %v778, %v780
        %v782 = vrot.slane %v774, %v781
        %v784 = vunpack.c.l.s4 1934713408
        %v785 = vunpack.c.0.s8 %v784
        %v786 = vlaneseq
        %v787 = vshrl.u32 %v786, 7
        %v788 = vsub.s32 %v785, %v787
        %v789 = vrot.slane %v775, %v788
        %v790 = vcombine.low %v725, %v741
        %v791 = vcombine.high %v725, %v741
        %v793 = vunpack.c.l.s4 1934713408
        %v794 = vunpack.c.0.s8 %v793
        %v795 = vlaneseq
        %v796 = vshrl.u32 %v795, 7
        %v797 = vsub.s32 %v794, %v796
        %v798 = vrot.slane %v790, %v797
        %v800 = vunpack.c.l.s4 1934713408
        %v801 = vunpack.c.0.s8 %v800
        %v802 = vlaneseq
        %v803 = vshrl.u32 %v802, 7
        %v804 = vsub.s32 %v801, %v803
        %v805 = vrot.slane %v791, %v804
        %v806 = vcombine.low %v750, %v782
        %v807 = vcombine.high %v750, %v782
        %v808 = vcombine.low %v757, %v789
        %v809 = vcombine.high %v757, %v789
        %v810 = vcombine.low %v766, %v798
        %v811 = vcombine.high %v766, %v798
        %v812 = vcombine.low %v773, %v805
        %v813 = vcombine.high %v773, %v805
        %v814 = vcombine.low %v670, %v672
        %v815 = vcombine.high %v670, %v672
        %v817 = vunpack.c.l.s4 1983009808
        %v818 = vunpack.c.0.s8 %v817
        %v819 = vlaneseq
        %v820 = vshrl.u32 %v819, 7
        %v821 = vsub.s32 %v818, %v820
        %v822 = vrot.slane %v814, %v821
        %v824 = vunpack.c.l.s4 1983009808
        %v825 = vunpack.c.0.s8 %v824
        %v826 = vlaneseq
        %v827 = vshrl.u32 %v826, 7
        %v828 = vsub.s32 %v825, %v827
        %v829 = vrot.slane %v815, %v828
        %v830 = vcombine.low %v671, %v673
        %v831 = vcombine.high %v671, %v673
        %v833 = vunpack.c.l.s4 1983009808
        %v834 = vunpack.c.0.s8 %v833
        %v835 = vlaneseq
        %v836 = vshrl.u32 %v835, 7
        %v837 = vsub.s32 %v834, %v836
        %v838 = vrot.slane %v830, %v837
        %v840 = vunpack.c.l.s4 1983009808
        %v841 = vunpack.c.0.s8 %v840
        %v842 = vlaneseq
        %v843 = vshrl.u32 %v842, 7
        %v844 = vsub.s32 %v841, %v843
        %v845 = vrot.slane %v831, %v844
        %v846 = vcombine.low %v674, %v676
        %v847 = vcombine.high %v674, %v676
        %v849 = vunpack.c.l.s4 1983009808
        %v850 = vunpack.c.0.s8 %v849
        %v851 = vlaneseq
        %v852 = vshrl.u32 %v851, 7
        %v853 = vsub.s32 %v850, %v852
        %v854 = vrot.slane %v846, %v853
        %v856 = vunpack.c.l.s4 1983009808
        %v857 = vunpack.c.0.s8 %v856
        %v858 = vlaneseq
        %v859 = vshrl.u32 %v858, 7
        %v860 = vsub.s32 %v857, %v859
        %v861 = vrot.slane %v847, %v860
        %v862 = vcombine.low %v675, %v677
        %v863 = vcombine.high %v675, %v677
        %v865 = vunpack.c.l.s4 1983009808
        %v866 = vunpack.c.0.s8 %v865
        %v867 = vlaneseq
        %v868 = vshrl.u32 %v867, 7
        %v869 = vsub.s32 %v866, %v868
        %v870 = vrot.slane %v862, %v869
        %v872 = vunpack.c.l.s4 1983009808
        %v873 = vunpack.c.0.s8 %v872
        %v874 = vlaneseq
        %v875 = vshrl.u32 %v874, 7
        %v876 = vsub.s32 %v873, %v875
        %v877 = vrot.slane %v863, %v876
        %v878 = vcombine.low %v822, %v838
        %v879 = vcombine.high %v822, %v838
        %v881 = vunpack.c.l.s4 1934713408
        %v882 = vunpack.c.0.s8 %v881
        %v883 = vlaneseq
        %v884 = vshrl.u32 %v883, 7
        %v885 = vsub.s32 %v882, %v884
        %v886 = vrot.slane %v878, %v885
        %v888 = vunpack.c.l.s4 1934713408
        %v889 = vunpack.c.0.s8 %v888
        %v890 = vlaneseq
        %v891 = vshrl.u32 %v890, 7
        %v892 = vsub.s32 %v889, %v891
        %v893 = vrot.slane %v879, %v892
        %v894 = vcombine.low %v829, %v845
        %v895 = vcombine.high %v829, %v845
        %v897 = vunpack.c.l.s4 1934713408
        %v898 = vunpack.c.0.s8 %v897
        %v899 = vlaneseq
        %v900 = vshrl.u32 %v899, 7
        %v901 = vsub.s32 %v898, %v900
        %v902 = vrot.slane %v894, %v901
        %v904 = vunpack.c.l.s4 1934713408
        %v905 = vunpack.c.0.s8 %v904
        %v906 = vlaneseq
        %v907 = vshrl.u32 %v906, 7
        %v908 = vsub.s32 %v905, %v907
        %v909 = vrot.slane %v895, %v908
        %v910 = vcombine.low %v854, %v870
        %v911 = vcombine.high %v854, %v870
        %v913 = vunpack.c.l.s4 1934713408
        %v914 = vunpack.c.0.s8 %v913
        %v915 = vlaneseq
        %v916 = vshrl.u32 %v915, 7
        %v917 = vsub.s32 %v914, %v916
        %v918 = vrot.slane %v910, %v917
        %v920 = vunpack.c.l.s4 1934713408
        %v921 = vunpack.c.0.s8 %v920
        %v922 = vlaneseq
        %v923 = vshrl.u32 %v922, 7
        %v924 = vsub.s32 %v921, %v923
        %v925 = vrot.slane %v911, %v924
        %v926 = vcombine.low %v861, %v877
        %v927 = vcombine.high %v861, %v877
        %v929 = vunpack.c.l.s4 1934713408
        %v930 = vunpack.c.0.s8 %v929
        %v931 = vlaneseq
        %v932 = vshrl.u32 %v931, 7
        %v933 = vsub.s32 %v930, %v932
        %v934 = vrot.slane %v926, %v933
        %v936 = vunpack.c.l.s4 1934713408
        %v937 = vunpack.c.0.s8 %v936
        %v938 = vlaneseq
        %v939 = vshrl.u32 %v938, 7
        %v940 = vsub.s32 %v937, %v939
        %v941 = vrot.slane %v927, %v940
        %v942 = vcombine.low %v886, %v918
        %v943 = vcombine.high %v886, %v918
        %v944 = vcombine.low %v893, %v925
        %v945 = vcombine.high %v893, %v925
        %v946 = vcombine.low %v902, %v934
        %v947 = vcombine.high %v902, %v934
        %v948 = vcombine.low %v909, %v941
        %v949 = vcombine.high %v909, %v941
        %v950 = vcombine.low %v806, %v808
        %v951 = vcombine.high %v806, %v808
        %v953 = vunpack.c.l.s4 1983009808
        %v954 = vunpack.c.0.s8 %v953
        %v955 = vlaneseq
        %v956 = vshrl.u32 %v955, 7
        %v957 = vsub.s32 %v954, %v956
        %v958 = vrot.slane %v950, %v957
        %v960 = vunpack.c.l.s4 1983009808
        %v961 = vunpack.c.0.s8 %v960
        %v962 = vlaneseq
        %v963 = vshrl.u32 %v962, 7
        %v964 = vsub.s32 %v961, %v963
        %v965 = vrot.slane %v951, %v964
        %v966 = vcombine.low %v807, %v809
        %v967 = vcombine.high %v807, %v809
        %v969 = vunpack.c.l.s4 1983009808
        %v970 = vunpack.c.0.s8 %v969
        %v971 = vlaneseq
        %v972 = vshrl.u32 %v971, 7
        %v973 = vsub.s32 %v970, %v972
        %v974 = vrot.slane %v966, %v973
        %v976 = vunpack.c.l.s4 1983009808
        %v977 = vunpack.c.0.s8 %v976
        %v978 = vlaneseq
        %v979 = vshrl.u32 %v978, 7
        %v980 = vsub.s32 %v977, %v979
        %v981 = vrot.slane %v967, %v980
        %v982 = vcombine.low %v810, %v812
        %v983 = vcombine.high %v810, %v812
        %v985 = vunpack.c.l.s4 1983009808
        %v986 = vunpack.c.0.s8 %v985
        %v987 = vlaneseq
        %v988 = vshrl.u32 %v987, 7
        %v989 = vsub.s32 %v986, %v988
        %v990 = vrot.slane %v982, %v989
        %v992 = vunpack.c.l.s4 1983009808
        %v993 = vunpack.c.0.s8 %v992
        %v994 = vlaneseq
        %v995 = vshrl.u32 %v994, 7
        %v996 = vsub.s32 %v993, %v995
        %v997 = vrot.slane %v983, %v996
        %v998 = vcombine.low %v811, %v813
        %v999 = vcombine.high %v811, %v813
        %v1001 = vunpack.c.l.s4 1983009808
        %v1002 = vunpack.c.0.s8 %v1001
        %v1003 = vlaneseq
        %v1004 = vshrl.u32 %v1003, 7
        %v1005 = vsub.s32 %v1002, %v1004
        %v1006 = vrot.slane %v998, %v1005
        %v1008 = vunpack.c.l.s4 1983009808
        %v1009 = vunpack.c.0.s8 %v1008
        %v1010 = vlaneseq
        %v1011 = vshrl.u32 %v1010, 7
        %v1012 = vsub.s32 %v1009, %v1011
        %v1013 = vrot.slane %v999, %v1012
        %v1014 = vcombine.low %v958, %v974
        %v1015 = vcombine.high %v958, %v974
        %v1017 = vunpack.c.l.s4 1934713408
        %v1018 = vunpack.c.0.s8 %v1017
        %v1019 = vlaneseq
        %v1020 = vshrl.u32 %v1019, 7
        %v1021 = vsub.s32 %v1018, %v1020
        %v1022 = vrot.slane %v1014, %v1021
        %v1024 = vunpack.c.l.s4 1934713408
        %v1025 = vunpack.c.0.s8 %v1024
        %v1026 = vlaneseq
        %v1027 = vshrl.u32 %v1026, 7
        %v1028 = vsub.s32 %v1025, %v1027
        %v1029 = vrot.slane %v1015, %v1028
        %v1030 = vcombine.low %v965, %v981
        %v1031 = vcombine.high %v965, %v981
        %v1033 = vunpack.c.l.s4 1934713408
        %v1034 = vunpack.c.0.s8 %v1033
        %v1035 = vlaneseq
        %v1036 = vshrl.u32 %v1035, 7
        %v1037 = vsub.s32 %v1034, %v1036
        %v1038 = vrot.slane %v1030, %v1037
        %v1040 = vunpack.c.l.s4 1934713408
        %v1041 = vunpack.c.0.s8 %v1040
        %v1042 = vlaneseq
        %v1043 = vshrl.u32 %v1042, 7
        %v1044 = vsub.s32 %v1041, %v1043
        %v1045 = vrot.slane %v1031, %v1044
        %v1046 = vcombine.low %v990, %v1006
        %v1047 = vcombine.high %v990, %v1006
        %v1049 = vunpack.c.l.s4 1934713408
        %v1050 = vunpack.c.0.s8 %v1049
        %v1051 = vlaneseq
        %v1052 = vshrl.u32 %v1051, 7
        %v1053 = vsub.s32 %v1050, %v1052
        %v1054 = vrot.slane %v1046, %v1053
        %v1056 = vunpack.c.l.s4 1934713408
        %v1057 = vunpack.c.0.s8 %v1056
        %v1058 = vlaneseq
        %v1059 = vshrl.u32 %v1058, 7
        %v1060 = vsub.s32 %v1057, %v1059
        %v1061 = vrot.slane %v1047, %v1060
        %v1062 = vcombine.low %v997, %v1013
        %v1063 = vcombine.high %v997, %v1013
        %v1065 = vunpack.c.l.s4 1934713408
        %v1066 = vunpack.c.0.s8 %v1065
        %v1067 = vlaneseq
        %v1068 = vshrl.u32 %v1067, 7
        %v1069 = vsub.s32 %v1066, %v1068
        %v1070 = vrot.slane %v1062, %v1069
        %v1072 = vunpack.c.l.s4 1934713408
        %v1073 = vunpack.c.0.s8 %v1072
        %v1074 = vlaneseq
        %v1075 = vshrl.u32 %v1074, 7
        %v1076 = vsub.s32 %v1073, %v1075
        %v1077 = vrot.slane %v1063, %v1076
        %v1078 = vcombine.low %v1022, %v1054
        %v1079 = vcombine.high %v1022, %v1054
        %v1080 = vcombine.low %v1029, %v1061
        %v1081 = vcombine.high %v1029, %v1061
        %v1082 = vcombine.low %v1038, %v1070
        %v1083 = vcombine.high %v1038, %v1070
        %v1084 = vcombine.low %v1045, %v1077
        %v1085 = vcombine.high %v1045, %v1077
        %v1086 = vpack.c.bf16 %v1078, %v942
        %v1087 = vpack.c.bf16 %v1079, %v943
        %v1088 = vpack.c.bf16 %v1080, %v944
        %v1089 = vpack.c.bf16 %v1081, %v945
        %v1090 = vpack.c.bf16 %v1082, %v946
        %v1091 = vpack.c.bf16 %v1083, %v947
        %v1092 = vpack.c.bf16 %v1084, %v948
        %v1093 = vpack.c.bf16 %v1085, %v949
        %1096 = vrot.lane.b32.xlu0 %v451, 112
        %v1097 = vpop.permute.xlu0 %1096
        %1098 = vrot.lane.b32.xlu0 %v455, 112
        %v1099 = vpop.permute.xlu0 %1098
        %1102 = vrot.lane.b32.xlu0 %v451, 96
        %v1103 = vpop.permute.xlu0 %1102
        %1104 = vrot.lane.b32.xlu0 %v455, 96
        %v1105 = vpop.permute.xlu0 %1104
        %1108 = vrot.lane.b32.xlu0 %v451, 80
        %v1109 = vpop.permute.xlu0 %1108
        %1110 = vrot.lane.b32.xlu0 %v455, 80
        %v1111 = vpop.permute.xlu0 %1110
        %1114 = vrot.lane.b32.xlu0 %v451, 64
        %v1115 = vpop.permute.xlu0 %1114
        %1116 = vrot.lane.b32.xlu0 %v455, 64
        %v1117 = vpop.permute.xlu0 %1116
        %1120 = vrot.lane.b32.xlu0 %v451, 48
        %v1121 = vpop.permute.xlu0 %1120
        %1122 = vrot.lane.b32.xlu0 %v455, 48
        %v1123 = vpop.permute.xlu0 %1122
        %1126 = vrot.lane.b32.xlu0 %v451, 32
        %v1127 = vpop.permute.xlu0 %1126
        %1128 = vrot.lane.b32.xlu0 %v455, 32
        %v1129 = vpop.permute.xlu0 %1128
        %1132 = vrot.lane.b32.xlu0 %v451, 16
        %v1133 = vpop.permute.xlu0 %1132
        %1134 = vrot.lane.b32.xlu0 %v455, 16
        %v1135 = vpop.permute.xlu0 %1134
        %v1138 = vcombine.low %v451, %v1103
        %v1139 = vcombine.high %v451, %v1103
        %v1141 = vunpack.c.l.s4 1983009808
        %v1142 = vunpack.c.0.s8 %v1141
        %v1143 = vlaneseq
        %v1144 = vshrl.u32 %v1143, 7
        %v1145 = vsub.s32 %v1142, %v1144
        %v1146 = vrot.slane %v1138, %v1145
        %v1148 = vunpack.c.l.s4 1983009808
        %v1149 = vunpack.c.0.s8 %v1148
        %v1150 = vlaneseq
        %v1151 = vshrl.u32 %v1150, 7
        %v1152 = vsub.s32 %v1149, %v1151
        %v1153 = vrot.slane %v1139, %v1152
        %v1154 = vcombine.low %v1097, %v1109
        %v1155 = vcombine.high %v1097, %v1109
        %v1157 = vunpack.c.l.s4 1983009808
        %v1158 = vunpack.c.0.s8 %v1157
        %v1159 = vlaneseq
        %v1160 = vshrl.u32 %v1159, 7
        %v1161 = vsub.s32 %v1158, %v1160
        %v1162 = vrot.slane %v1154, %v1161
        %v1164 = vunpack.c.l.s4 1983009808
        %v1165 = vunpack.c.0.s8 %v1164
        %v1166 = vlaneseq
        %v1167 = vshrl.u32 %v1166, 7
        %v1168 = vsub.s32 %v1165, %v1167
        %v1169 = vrot.slane %v1155, %v1168
        %v1170 = vcombine.low %v1115, %v1127
        %v1171 = vcombine.high %v1115, %v1127
        %v1173 = vunpack.c.l.s4 1983009808
        %v1174 = vunpack.c.0.s8 %v1173
        %v1175 = vlaneseq
        %v1176 = vshrl.u32 %v1175, 7
        %v1177 = vsub.s32 %v1174, %v1176
        %v1178 = vrot.slane %v1170, %v1177
        %v1180 = vunpack.c.l.s4 1983009808
        %v1181 = vunpack.c.0.s8 %v1180
        %v1182 = vlaneseq
        %v1183 = vshrl.u32 %v1182, 7
        %v1184 = vsub.s32 %v1181, %v1183
        %v1185 = vrot.slane %v1171, %v1184
        %v1186 = vcombine.low %v1121, %v1133
        %v1187 = vcombine.high %v1121, %v1133
        %v1189 = vunpack.c.l.s4 1983009808
        %v1190 = vunpack.c.0.s8 %v1189
        %v1191 = vlaneseq
        %v1192 = vshrl.u32 %v1191, 7
        %v1193 = vsub.s32 %v1190, %v1192
        %v1194 = vrot.slane %v1186, %v1193
        %v1196 = vunpack.c.l.s4 1983009808
        %v1197 = vunpack.c.0.s8 %v1196
        %v1198 = vlaneseq
        %v1199 = vshrl.u32 %v1198, 7
        %v1200 = vsub.s32 %v1197, %v1199
        %v1201 = vrot.slane %v1187, %v1200
        %v1202 = vcombine.low %v1146, %v1162
        %v1203 = vcombine.high %v1146, %v1162
        %v1205 = vunpack.c.l.s4 1934713408
        %v1206 = vunpack.c.0.s8 %v1205
        %v1207 = vlaneseq
        %v1208 = vshrl.u32 %v1207, 7
        %v1209 = vsub.s32 %v1206, %v1208
        %v1210 = vrot.slane %v1202, %v1209
        %v1212 = vunpack.c.l.s4 1934713408
        %v1213 = vunpack.c.0.s8 %v1212
        %v1214 = vlaneseq
        %v1215 = vshrl.u32 %v1214, 7
        %v1216 = vsub.s32 %v1213, %v1215
        %v1217 = vrot.slane %v1203, %v1216
        %v1218 = vcombine.low %v1153, %v1169
        %v1219 = vcombine.high %v1153, %v1169
        %v1221 = vunpack.c.l.s4 1934713408
        %v1222 = vunpack.c.0.s8 %v1221
        %v1223 = vlaneseq
        %v1224 = vshrl.u32 %v1223, 7
        %v1225 = vsub.s32 %v1222, %v1224
        %v1226 = vrot.slane %v1218, %v1225
        %v1228 = vunpack.c.l.s4 1934713408
        %v1229 = vunpack.c.0.s8 %v1228
        %v1230 = vlaneseq
        %v1231 = vshrl.u32 %v1230, 7
        %v1232 = vsub.s32 %v1229, %v1231
        %v1233 = vrot.slane %v1219, %v1232
        %v1234 = vcombine.low %v1178, %v1194
        %v1235 = vcombine.high %v1178, %v1194
        %v1237 = vunpack.c.l.s4 1934713408
        %v1238 = vunpack.c.0.s8 %v1237
        %v1239 = vlaneseq
        %v1240 = vshrl.u32 %v1239, 7
        %v1241 = vsub.s32 %v1238, %v1240
        %v1242 = vrot.slane %v1234, %v1241
        %v1244 = vunpack.c.l.s4 1934713408
        %v1245 = vunpack.c.0.s8 %v1244
        %v1246 = vlaneseq
        %v1247 = vshrl.u32 %v1246, 7
        %v1248 = vsub.s32 %v1245, %v1247
        %v1249 = vrot.slane %v1235, %v1248
        %v1250 = vcombine.low %v1185, %v1201
        %v1251 = vcombine.high %v1185, %v1201
        %v1253 = vunpack.c.l.s4 1934713408
        %v1254 = vunpack.c.0.s8 %v1253
        %v1255 = vlaneseq
        %v1256 = vshrl.u32 %v1255, 7
        %v1257 = vsub.s32 %v1254, %v1256
        %v1258 = vrot.slane %v1250, %v1257
        %v1260 = vunpack.c.l.s4 1934713408
        %v1261 = vunpack.c.0.s8 %v1260
        %v1262 = vlaneseq
        %v1263 = vshrl.u32 %v1262, 7
        %v1264 = vsub.s32 %v1261, %v1263
        %v1265 = vrot.slane %v1251, %v1264
        %v1266 = vcombine.low %v1210, %v1242
        %v1267 = vcombine.high %v1210, %v1242
        %v1268 = vcombine.low %v1217, %v1249
        %v1269 = vcombine.high %v1217, %v1249
        %v1270 = vcombine.low %v1226, %v1258
        %v1271 = vcombine.high %v1226, %v1258
        %v1272 = vcombine.low %v1233, %v1265
        %v1273 = vcombine.high %v1233, %v1265
        %v1274 = vcombine.low %v455, %v1105
        %v1275 = vcombine.high %v455, %v1105
        %v1277 = vunpack.c.l.s4 1983009808
        %v1278 = vunpack.c.0.s8 %v1277
        %v1279 = vlaneseq
        %v1280 = vshrl.u32 %v1279, 7
        %v1281 = vsub.s32 %v1278, %v1280
        %v1282 = vrot.slane %v1274, %v1281
        %v1284 = vunpack.c.l.s4 1983009808
        %v1285 = vunpack.c.0.s8 %v1284
        %v1286 = vlaneseq
        %v1287 = vshrl.u32 %v1286, 7
        %v1288 = vsub.s32 %v1285, %v1287
        %v1289 = vrot.slane %v1275, %v1288
        %v1290 = vcombine.low %v1099, %v1111
        %v1291 = vcombine.high %v1099, %v1111
        %v1293 = vunpack.c.l.s4 1983009808
        %v1294 = vunpack.c.0.s8 %v1293
        %v1295 = vlaneseq
        %v1296 = vshrl.u32 %v1295, 7
        %v1297 = vsub.s32 %v1294, %v1296
        %v1298 = vrot.slane %v1290, %v1297
        %v1300 = vunpack.c.l.s4 1983009808
        %v1301 = vunpack.c.0.s8 %v1300
        %v1302 = vlaneseq
        %v1303 = vshrl.u32 %v1302, 7
        %v1304 = vsub.s32 %v1301, %v1303
        %v1305 = vrot.slane %v1291, %v1304
        %v1306 = vcombine.low %v1117, %v1129
        %v1307 = vcombine.high %v1117, %v1129
        %v1309 = vunpack.c.l.s4 1983009808
        %v1310 = vunpack.c.0.s8 %v1309
        %v1311 = vlaneseq
        %v1312 = vshrl.u32 %v1311, 7
        %v1313 = vsub.s32 %v1310, %v1312
        %v1314 = vrot.slane %v1306, %v1313
        %v1316 = vunpack.c.l.s4 1983009808
        %v1317 = vunpack.c.0.s8 %v1316
        %v1318 = vlaneseq
        %v1319 = vshrl.u32 %v1318, 7
        %v1320 = vsub.s32 %v1317, %v1319
        %v1321 = vrot.slane %v1307, %v1320
        %v1322 = vcombine.low %v1123, %v1135
        %v1323 = vcombine.high %v1123, %v1135
        %v1325 = vunpack.c.l.s4 1983009808
        %v1326 = vunpack.c.0.s8 %v1325
        %v1327 = vlaneseq
        %v1328 = vshrl.u32 %v1327, 7
        %v1329 = vsub.s32 %v1326, %v1328
        %v1330 = vrot.slane %v1322, %v1329
        %v1332 = vunpack.c.l.s4 1983009808
        %v1333 = vunpack.c.0.s8 %v1332
        %v1334 = vlaneseq
        %v1335 = vshrl.u32 %v1334, 7
        %v1336 = vsub.s32 %v1333, %v1335
        %v1337 = vrot.slane %v1323, %v1336
        %v1338 = vcombine.low %v1282, %v1298
        %v1339 = vcombine.high %v1282, %v1298
        %v1341 = vunpack.c.l.s4 1934713408
        %v1342 = vunpack.c.0.s8 %v1341
        %v1343 = vlaneseq
        %v1344 = vshrl.u32 %v1343, 7
        %v1345 = vsub.s32 %v1342, %v1344
        %v1346 = vrot.slane %v1338, %v1345
        %v1348 = vunpack.c.l.s4 1934713408
        %v1349 = vunpack.c.0.s8 %v1348
        %v1350 = vlaneseq
        %v1351 = vshrl.u32 %v1350, 7
        %v1352 = vsub.s32 %v1349, %v1351
        %v1353 = vrot.slane %v1339, %v1352
        %v1354 = vcombine.low %v1289, %v1305
        %v1355 = vcombine.high %v1289, %v1305
        %v1357 = vunpack.c.l.s4 1934713408
        %v1358 = vunpack.c.0.s8 %v1357
        %v1359 = vlaneseq
        %v1360 = vshrl.u32 %v1359, 7
        %v1361 = vsub.s32 %v1358, %v1360
        %v1362 = vrot.slane %v1354, %v1361
        %v1364 = vunpack.c.l.s4 1934713408
        %v1365 = vunpack.c.0.s8 %v1364
        %v1366 = vlaneseq
        %v1367 = vshrl.u32 %v1366, 7
        %v1368 = vsub.s32 %v1365, %v1367
        %v1369 = vrot.slane %v1355, %v1368
        %v1370 = vcombine.low %v1314, %v1330
        %v1371 = vcombine.high %v1314, %v1330
        %v1373 = vunpack.c.l.s4 1934713408
        %v1374 = vunpack.c.0.s8 %v1373
        %v1375 = vlaneseq
        %v1376 = vshrl.u32 %v1375, 7
        %v1377 = vsub.s32 %v1374, %v1376
        %v1378 = vrot.slane %v1370, %v1377
        %v1380 = vunpack.c.l.s4 1934713408
        %v1381 = vunpack.c.0.s8 %v1380
        %v1382 = vlaneseq
        %v1383 = vshrl.u32 %v1382, 7
        %v1384 = vsub.s32 %v1381, %v1383
        %v1385 = vrot.slane %v1371, %v1384
        %v1386 = vcombine.low %v1321, %v1337
        %v1387 = vcombine.high %v1321, %v1337
        %v1389 = vunpack.c.l.s4 1934713408
        %v1390 = vunpack.c.0.s8 %v1389
        %v1391 = vlaneseq
        %v1392 = vshrl.u32 %v1391, 7
        %v1393 = vsub.s32 %v1390, %v1392
        %v1394 = vrot.slane %v1386, %v1393
        %v1396 = vunpack.c.l.s4 1934713408
        %v1397 = vunpack.c.0.s8 %v1396
        %v1398 = vlaneseq
        %v1399 = vshrl.u32 %v1398, 7
        %v1400 = vsub.s32 %v1397, %v1399
        %v1401 = vrot.slane %v1387, %v1400
        %v1402 = vcombine.low %v1346, %v1378
        %v1403 = vcombine.high %v1346, %v1378
        %v1404 = vcombine.low %v1353, %v1385
        %v1405 = vcombine.high %v1353, %v1385
        %v1406 = vcombine.low %v1362, %v1394
        %v1407 = vcombine.high %v1362, %v1394
        %v1408 = vcombine.low %v1369, %v1401
        %v1409 = vcombine.high %v1369, %v1401
        %v1410 = vcombine.low %v1266, %v1268
        %v1411 = vcombine.high %v1266, %v1268
        %v1413 = vunpack.c.l.s4 1983009808
        %v1414 = vunpack.c.0.s8 %v1413
        %v1415 = vlaneseq
        %v1416 = vshrl.u32 %v1415, 7
        %v1417 = vsub.s32 %v1414, %v1416
        %v1418 = vrot.slane %v1410, %v1417
        %v1420 = vunpack.c.l.s4 1983009808
        %v1421 = vunpack.c.0.s8 %v1420
        %v1422 = vlaneseq
        %v1423 = vshrl.u32 %v1422, 7
        %v1424 = vsub.s32 %v1421, %v1423
        %v1425 = vrot.slane %v1411, %v1424
        %v1426 = vcombine.low %v1267, %v1269
        %v1427 = vcombine.high %v1267, %v1269
        %v1429 = vunpack.c.l.s4 1983009808
        %v1430 = vunpack.c.0.s8 %v1429
        %v1431 = vlaneseq
        %v1432 = vshrl.u32 %v1431, 7
        %v1433 = vsub.s32 %v1430, %v1432
        %v1434 = vrot.slane %v1426, %v1433
        %v1436 = vunpack.c.l.s4 1983009808
        %v1437 = vunpack.c.0.s8 %v1436
        %v1438 = vlaneseq
        %v1439 = vshrl.u32 %v1438, 7
        %v1440 = vsub.s32 %v1437, %v1439
        %v1441 = vrot.slane %v1427, %v1440
        %v1442 = vcombine.low %v1270, %v1272
        %v1443 = vcombine.high %v1270, %v1272
        %v1445 = vunpack.c.l.s4 1983009808
        %v1446 = vunpack.c.0.s8 %v1445
        %v1447 = vlaneseq
        %v1448 = vshrl.u32 %v1447, 7
        %v1449 = vsub.s32 %v1446, %v1448
        %v1450 = vrot.slane %v1442, %v1449
        %v1452 = vunpack.c.l.s4 1983009808
        %v1453 = vunpack.c.0.s8 %v1452
        %v1454 = vlaneseq
        %v1455 = vshrl.u32 %v1454, 7
        %v1456 = vsub.s32 %v1453, %v1455
        %v1457 = vrot.slane %v1443, %v1456
        %v1458 = vcombine.low %v1271, %v1273
        %v1459 = vcombine.high %v1271, %v1273
        %v1461 = vunpack.c.l.s4 1983009808
        %v1462 = vunpack.c.0.s8 %v1461
        %v1463 = vlaneseq
        %v1464 = vshrl.u32 %v1463, 7
        %v1465 = vsub.s32 %v1462, %v1464
        %v1466 = vrot.slane %v1458, %v1465
        %v1468 = vunpack.c.l.s4 1983009808
        %v1469 = vunpack.c.0.s8 %v1468
        %v1470 = vlaneseq
        %v1471 = vshrl.u32 %v1470, 7
        %v1472 = vsub.s32 %v1469, %v1471
        %v1473 = vrot.slane %v1459, %v1472
        %v1474 = vcombine.low %v1418, %v1434
        %v1475 = vcombine.high %v1418, %v1434
        %v1477 = vunpack.c.l.s4 1934713408
        %v1478 = vunpack.c.0.s8 %v1477
        %v1479 = vlaneseq
        %v1480 = vshrl.u32 %v1479, 7
        %v1481 = vsub.s32 %v1478, %v1480
        %v1482 = vrot.slane %v1474, %v1481
        %v1484 = vunpack.c.l.s4 1934713408
        %v1485 = vunpack.c.0.s8 %v1484
        %v1486 = vlaneseq
        %v1487 = vshrl.u32 %v1486, 7
        %v1488 = vsub.s32 %v1485, %v1487
        %v1489 = vrot.slane %v1475, %v1488
        %v1490 = vcombine.low %v1425, %v1441
        %v1491 = vcombine.high %v1425, %v1441
        %v1493 = vunpack.c.l.s4 1934713408
        %v1494 = vunpack.c.0.s8 %v1493
        %v1495 = vlaneseq
        %v1496 = vshrl.u32 %v1495, 7
        %v1497 = vsub.s32 %v1494, %v1496
        %v1498 = vrot.slane %v1490, %v1497
        %v1500 = vunpack.c.l.s4 1934713408
        %v1501 = vunpack.c.0.s8 %v1500
        %v1502 = vlaneseq
        %v1503 = vshrl.u32 %v1502, 7
        %v1504 = vsub.s32 %v1501, %v1503
        %v1505 = vrot.slane %v1491, %v1504
        %v1506 = vcombine.low %v1450, %v1466
        %v1507 = vcombine.high %v1450, %v1466
        %v1509 = vunpack.c.l.s4 1934713408
        %v1510 = vunpack.c.0.s8 %v1509
        %v1511 = vlaneseq
        %v1512 = vshrl.u32 %v1511, 7
        %v1513 = vsub.s32 %v1510, %v1512
        %v1514 = vrot.slane %v1506, %v1513
        %v1516 = vunpack.c.l.s4 1934713408
        %v1517 = vunpack.c.0.s8 %v1516
        %v1518 = vlaneseq
        %v1519 = vshrl.u32 %v1518, 7
        %v1520 = vsub.s32 %v1517, %v1519
        %v1521 = vrot.slane %v1507, %v1520
        %v1522 = vcombine.low %v1457, %v1473
        %v1523 = vcombine.high %v1457, %v1473
        %v1525 = vunpack.c.l.s4 1934713408
        %v1526 = vunpack.c.0.s8 %v1525
        %v1527 = vlaneseq
        %v1528 = vshrl.u32 %v1527, 7
        %v1529 = vsub.s32 %v1526, %v1528
        %v1530 = vrot.slane %v1522, %v1529
        %v1532 = vunpack.c.l.s4 1934713408
        %v1533 = vunpack.c.0.s8 %v1532
        %v1534 = vlaneseq
        %v1535 = vshrl.u32 %v1534, 7
        %v1536 = vsub.s32 %v1533, %v1535
        %v1537 = vrot.slane %v1523, %v1536
        %v1538 = vcombine.low %v1482, %v1514
        %v1539 = vcombine.high %v1482, %v1514
        %v1540 = vcombine.low %v1489, %v1521
        %v1541 = vcombine.high %v1489, %v1521
        %v1542 = vcombine.low %v1498, %v1530
        %v1543 = vcombine.high %v1498, %v1530
        %v1544 = vcombine.low %v1505, %v1537
        %v1545 = vcombine.high %v1505, %v1537
        %v1546 = vcombine.low %v1402, %v1404
        %v1547 = vcombine.high %v1402, %v1404
        %v1549 = vunpack.c.l.s4 1983009808
        %v1550 = vunpack.c.0.s8 %v1549
        %v1551 = vlaneseq
        %v1552 = vshrl.u32 %v1551, 7
        %v1553 = vsub.s32 %v1550, %v1552
        %v1554 = vrot.slane %v1546, %v1553
        %v1556 = vunpack.c.l.s4 1983009808
        %v1557 = vunpack.c.0.s8 %v1556
        %v1558 = vlaneseq
        %v1559 = vshrl.u32 %v1558, 7
        %v1560 = vsub.s32 %v1557, %v1559
        %v1561 = vrot.slane %v1547, %v1560
        %v1562 = vcombine.low %v1403, %v1405
        %v1563 = vcombine.high %v1403, %v1405
        %v1565 = vunpack.c.l.s4 1983009808
        %v1566 = vunpack.c.0.s8 %v1565
        %v1567 = vlaneseq
        %v1568 = vshrl.u32 %v1567, 7
        %v1569 = vsub.s32 %v1566, %v1568
        %v1570 = vrot.slane %v1562, %v1569
        %v1572 = vunpack.c.l.s4 1983009808
        %v1573 = vunpack.c.0.s8 %v1572
        %v1574 = vlaneseq
        %v1575 = vshrl.u32 %v1574, 7
        %v1576 = vsub.s32 %v1573, %v1575
        %v1577 = vrot.slane %v1563, %v1576
        %v1578 = vcombine.low %v1406, %v1408
        %v1579 = vcombine.high %v1406, %v1408
        %v1581 = vunpack.c.l.s4 1983009808
        %v1582 = vunpack.c.0.s8 %v1581
        %v1583 = vlaneseq
        %v1584 = vshrl.u32 %v1583, 7
        %v1585 = vsub.s32 %v1582, %v1584
        %v1586 = vrot.slane %v1578, %v1585
        %v1588 = vunpack.c.l.s4 1983009808
        %v1589 = vunpack.c.0.s8 %v1588
        %v1590 = vlaneseq
        %v1591 = vshrl.u32 %v1590, 7
        %v1592 = vsub.s32 %v1589, %v1591
        %v1593 = vrot.slane %v1579, %v1592
        %v1594 = vcombine.low %v1407, %v1409
        %v1595 = vcombine.high %v1407, %v1409
        %v1597 = vunpack.c.l.s4 1983009808
        %v1598 = vunpack.c.0.s8 %v1597
        %v1599 = vlaneseq
        %v1600 = vshrl.u32 %v1599, 7
        %v1601 = vsub.s32 %v1598, %v1600
        %v1602 = vrot.slane %v1594, %v1601
        %v1604 = vunpack.c.l.s4 1983009808
        %v1605 = vunpack.c.0.s8 %v1604
        %v1606 = vlaneseq
        %v1607 = vshrl.u32 %v1606, 7
        %v1608 = vsub.s32 %v1605, %v1607
        %v1609 = vrot.slane %v1595, %v1608
        %v1610 = vcombine.low %v1554, %v1570
        %v1611 = vcombine.high %v1554, %v1570
        %v1613 = vunpack.c.l.s4 1934713408
        %v1614 = vunpack.c.0.s8 %v1613
        %v1615 = vlaneseq
        %v1616 = vshrl.u32 %v1615, 7
        %v1617 = vsub.s32 %v1614, %v1616
        %v1618 = vrot.slane %v1610, %v1617
        %v1620 = vunpack.c.l.s4 1934713408
        %v1621 = vunpack.c.0.s8 %v1620
        %v1622 = vlaneseq
        %v1623 = vshrl.u32 %v1622, 7
        %v1624 = vsub.s32 %v1621, %v1623
        %v1625 = vrot.slane %v1611, %v1624
        %v1626 = vcombine.low %v1561, %v1577
        %v1627 = vcombine.high %v1561, %v1577
        %v1629 = vunpack.c.l.s4 1934713408
        %v1630 = vunpack.c.0.s8 %v1629
        %v1631 = vlaneseq
        %v1632 = vshrl.u32 %v1631, 7
        %v1633 = vsub.s32 %v1630, %v1632
        %v1634 = vrot.slane %v1626, %v1633
        %v1636 = vunpack.c.l.s4 1934713408
        %v1637 = vunpack.c.0.s8 %v1636
        %v1638 = vlaneseq
        %v1639 = vshrl.u32 %v1638, 7
        %v1640 = vsub.s32 %v1637, %v1639
        %v1641 = vrot.slane %v1627, %v1640
        %v1642 = vcombine.low %v1586, %v1602
        %v1643 = vcombine.high %v1586, %v1602
        %v1645 = vunpack.c.l.s4 1934713408
        %v1646 = vunpack.c.0.s8 %v1645
        %v1647 = vlaneseq
        %v1648 = vshrl.u32 %v1647, 7
        %v1649 = vsub.s32 %v1646, %v1648
        %v1650 = vrot.slane %v1642, %v1649
        %v1652 = vunpack.c.l.s4 1934713408
        %v1653 = vunpack.c.0.s8 %v1652
        %v1654 = vlaneseq
        %v1655 = vshrl.u32 %v1654, 7
        %v1656 = vsub.s32 %v1653, %v1655
        %v1657 = vrot.slane %v1643, %v1656
        %v1658 = vcombine.low %v1593, %v1609
        %v1659 = vcombine.high %v1593, %v1609
        %v1661 = vunpack.c.l.s4 1934713408
        %v1662 = vunpack.c.0.s8 %v1661
        %v1663 = vlaneseq
        %v1664 = vshrl.u32 %v1663, 7
        %v1665 = vsub.s32 %v1662, %v1664
        %v1666 = vrot.slane %v1658, %v1665
        %v1668 = vunpack.c.l.s4 1934713408
        %v1669 = vunpack.c.0.s8 %v1668
        %v1670 = vlaneseq
        %v1671 = vshrl.u32 %v1670, 7
        %v1672 = vsub.s32 %v1669, %v1671
        %v1673 = vrot.slane %v1659, %v1672
        %v1674 = vcombine.low %v1618, %v1650
        %v1675 = vcombine.high %v1618, %v1650
        %v1676 = vcombine.low %v1625, %v1657
        %v1677 = vcombine.high %v1625, %v1657
        %v1678 = vcombine.low %v1634, %v1666
        %v1679 = vcombine.high %v1634, %v1666
        %v1680 = vcombine.low %v1641, %v1673
        %v1681 = vcombine.high %v1641, %v1673
        %v1682 = vpack.c.bf16 %v1674, %v1538
        %v1683 = vpack.c.bf16 %v1675, %v1539
        %v1684 = vpack.c.bf16 %v1676, %v1540
        %v1685 = vpack.c.bf16 %v1677, %v1541
        %v1686 = vpack.c.bf16 %v1678, %v1542
        %v1687 = vpack.c.bf16 %v1679, %v1543
        %v1688 = vpack.c.bf16 %v1680, %v1544
        %v1689 = vpack.c.bf16 %v1681, %v1545
        %1692 = vrot.lane.b32.xlu0 %v492, 112
        %v1693 = vpop.permute.xlu0 %1692
        %1694 = vrot.lane.b32.xlu0 %v495, 112
        %v1695 = vpop.permute.xlu0 %1694
        %1698 = vrot.lane.b32.xlu0 %v492, 96
        %v1699 = vpop.permute.xlu0 %1698
        %1700 = vrot.lane.b32.xlu0 %v495, 96
        %v1701 = vpop.permute.xlu0 %1700
        %1704 = vrot.lane.b32.xlu0 %v492, 80
        %v1705 = vpop.permute.xlu0 %1704
        %1706 = vrot.lane.b32.xlu0 %v495, 80
        %v1707 = vpop.permute.xlu0 %1706
        %1710 = vrot.lane.b32.xlu0 %v492, 64
        %v1711 = vpop.permute.xlu0 %1710
        %1712 = vrot.lane.b32.xlu0 %v495, 64
        %v1713 = vpop.permute.xlu0 %1712
        %1716 = vrot.lane.b32.xlu0 %v492, 48
        %v1717 = vpop.permute.xlu0 %1716
        %1718 = vrot.lane.b32.xlu0 %v495, 48
        %v1719 = vpop.permute.xlu0 %1718
        %1722 = vrot.lane.b32.xlu0 %v492, 32
        %v1723 = vpop.permute.xlu0 %1722
        %1724 = vrot.lane.b32.xlu0 %v495, 32
        %v1725 = vpop.permute.xlu0 %1724
        %1728 = vrot.lane.b32.xlu0 %v492, 16
        %v1729 = vpop.permute.xlu0 %1728
        %1730 = vrot.lane.b32.xlu0 %v495, 16
        %v1731 = vpop.permute.xlu0 %1730
        %v1734 = vcombine.low %v492, %v1699
        %v1735 = vcombine.high %v492, %v1699
        %v1737 = vunpack.c.l.s4 1983009808
        %v1738 = vunpack.c.0.s8 %v1737
        %v1739 = vlaneseq
        %v1740 = vshrl.u32 %v1739, 7
        %v1741 = vsub.s32 %v1738, %v1740
        %v1742 = vrot.slane %v1734, %v1741
        %v1744 = vunpack.c.l.s4 1983009808
        %v1745 = vunpack.c.0.s8 %v1744
        %v1746 = vlaneseq
        %v1747 = vshrl.u32 %v1746, 7
        %v1748 = vsub.s32 %v1745, %v1747
        %v1749 = vrot.slane %v1735, %v1748
        %v1750 = vcombine.low %v1693, %v1705
        %v1751 = vcombine.high %v1693, %v1705
        %v1753 = vunpack.c.l.s4 1983009808
        %v1754 = vunpack.c.0.s8 %v1753
        %v1755 = vlaneseq
        %v1756 = vshrl.u32 %v1755, 7
        %v1757 = vsub.s32 %v1754, %v1756
        %v1758 = vrot.slane %v1750, %v1757
        %v1760 = vunpack.c.l.s4 1983009808
        %v1761 = vunpack.c.0.s8 %v1760
        %v1762 = vlaneseq
        %v1763 = vshrl.u32 %v1762, 7
        %v1764 = vsub.s32 %v1761, %v1763
        %v1765 = vrot.slane %v1751, %v1764
        %v1766 = vcombine.low %v1711, %v1723
        %v1767 = vcombine.high %v1711, %v1723
        %v1769 = vunpack.c.l.s4 1983009808
        %v1770 = vunpack.c.0.s8 %v1769
        %v1771 = vlaneseq
        %v1772 = vshrl.u32 %v1771, 7
        %v1773 = vsub.s32 %v1770, %v1772
        %v1774 = vrot.slane %v1766, %v1773
        %v1776 = vunpack.c.l.s4 1983009808
        %v1777 = vunpack.c.0.s8 %v1776
        %v1778 = vlaneseq
        %v1779 = vshrl.u32 %v1778, 7
        %v1780 = vsub.s32 %v1777, %v1779
        %v1781 = vrot.slane %v1767, %v1780
        %v1782 = vcombine.low %v1717, %v1729
        %v1783 = vcombine.high %v1717, %v1729
        %v1785 = vunpack.c.l.s4 1983009808
        %v1786 = vunpack.c.0.s8 %v1785
        %v1787 = vlaneseq
        %v1788 = vshrl.u32 %v1787, 7
        %v1789 = vsub.s32 %v1786, %v1788
        %v1790 = vrot.slane %v1782, %v1789
        %v1792 = vunpack.c.l.s4 1983009808
        %v1793 = vunpack.c.0.s8 %v1792
        %v1794 = vlaneseq
        %v1795 = vshrl.u32 %v1794, 7
        %v1796 = vsub.s32 %v1793, %v1795
        %v1797 = vrot.slane %v1783, %v1796
        %v1798 = vcombine.low %v1742, %v1758
        %v1799 = vcombine.high %v1742, %v1758
        %v1801 = vunpack.c.l.s4 1934713408
        %v1802 = vunpack.c.0.s8 %v1801
        %v1803 = vlaneseq
        %v1804 = vshrl.u32 %v1803, 7
        %v1805 = vsub.s32 %v1802, %v1804
        %v1806 = vrot.slane %v1798, %v1805
        %v1808 = vunpack.c.l.s4 1934713408
        %v1809 = vunpack.c.0.s8 %v1808
        %v1810 = vlaneseq
        %v1811 = vshrl.u32 %v1810, 7
        %v1812 = vsub.s32 %v1809, %v1811
        %v1813 = vrot.slane %v1799, %v1812
        %v1814 = vcombine.low %v1749, %v1765
        %v1815 = vcombine.high %v1749, %v1765
        %v1817 = vunpack.c.l.s4 1934713408
        %v1818 = vunpack.c.0.s8 %v1817
        %v1819 = vlaneseq
        %v1820 = vshrl.u32 %v1819, 7
        %v1821 = vsub.s32 %v1818, %v1820
        %v1822 = vrot.slane %v1814, %v1821
        %v1824 = vunpack.c.l.s4 1934713408
        %v1825 = vunpack.c.0.s8 %v1824
        %v1826 = vlaneseq
        %v1827 = vshrl.u32 %v1826, 7
        %v1828 = vsub.s32 %v1825, %v1827
        %v1829 = vrot.slane %v1815, %v1828
        %v1830 = vcombine.low %v1774, %v1790
        %v1831 = vcombine.high %v1774, %v1790
        %v1833 = vunpack.c.l.s4 1934713408
        %v1834 = vunpack.c.0.s8 %v1833
        %v1835 = vlaneseq
        %v1836 = vshrl.u32 %v1835, 7
        %v1837 = vsub.s32 %v1834, %v1836
        %v1838 = vrot.slane %v1830, %v1837
        %v1840 = vunpack.c.l.s4 1934713408
        %v1841 = vunpack.c.0.s8 %v1840
        %v1842 = vlaneseq
        %v1843 = vshrl.u32 %v1842, 7
        %v1844 = vsub.s32 %v1841, %v1843
        %v1845 = vrot.slane %v1831, %v1844
        %v1846 = vcombine.low %v1781, %v1797
        %v1847 = vcombine.high %v1781, %v1797
        %v1849 = vunpack.c.l.s4 1934713408
        %v1850 = vunpack.c.0.s8 %v1849
        %v1851 = vlaneseq
        %v1852 = vshrl.u32 %v1851, 7
        %v1853 = vsub.s32 %v1850, %v1852
        %v1854 = vrot.slane %v1846, %v1853
        %v1856 = vunpack.c.l.s4 1934713408
        %v1857 = vunpack.c.0.s8 %v1856
        %v1858 = vlaneseq
        %v1859 = vshrl.u32 %v1858, 7
        %v1860 = vsub.s32 %v1857, %v1859
        %v1861 = vrot.slane %v1847, %v1860
        %v1862 = vcombine.low %v1806, %v1838
        %v1863 = vcombine.high %v1806, %v1838
        %v1864 = vcombine.low %v1813, %v1845
        %v1865 = vcombine.high %v1813, %v1845
        %v1866 = vcombine.low %v1822, %v1854
        %v1867 = vcombine.high %v1822, %v1854
        %v1868 = vcombine.low %v1829, %v1861
        %v1869 = vcombine.high %v1829, %v1861
        %v1870 = vcombine.low %v495, %v1701
        %v1871 = vcombine.high %v495, %v1701
        %v1873 = vunpack.c.l.s4 1983009808
        %v1874 = vunpack.c.0.s8 %v1873
        %v1875 = vlaneseq
        %v1876 = vshrl.u32 %v1875, 7
        %v1877 = vsub.s32 %v1874, %v1876
        %v1878 = vrot.slane %v1870, %v1877
        %v1880 = vunpack.c.l.s4 1983009808
        %v1881 = vunpack.c.0.s8 %v1880
        %v1882 = vlaneseq
        %v1883 = vshrl.u32 %v1882, 7
        %v1884 = vsub.s32 %v1881, %v1883
        %v1885 = vrot.slane %v1871, %v1884
        %v1886 = vcombine.low %v1695, %v1707
        %v1887 = vcombine.high %v1695, %v1707
        %v1889 = vunpack.c.l.s4 1983009808
        %v1890 = vunpack.c.0.s8 %v1889
        %v1891 = vlaneseq
        %v1892 = vshrl.u32 %v1891, 7
        %v1893 = vsub.s32 %v1890, %v1892
        %v1894 = vrot.slane %v1886, %v1893
        %v1896 = vunpack.c.l.s4 1983009808
        %v1897 = vunpack.c.0.s8 %v1896
        %v1898 = vlaneseq
        %v1899 = vshrl.u32 %v1898, 7
        %v1900 = vsub.s32 %v1897, %v1899
        %v1901 = vrot.slane %v1887, %v1900
        %v1902 = vcombine.low %v1713, %v1725
        %v1903 = vcombine.high %v1713, %v1725
        %v1905 = vunpack.c.l.s4 1983009808
        %v1906 = vunpack.c.0.s8 %v1905
        %v1907 = vlaneseq
        %v1908 = vshrl.u32 %v1907, 7
        %v1909 = vsub.s32 %v1906, %v1908
        %v1910 = vrot.slane %v1902, %v1909
        %v1912 = vunpack.c.l.s4 1983009808
        %v1913 = vunpack.c.0.s8 %v1912
        %v1914 = vlaneseq
        %v1915 = vshrl.u32 %v1914, 7
        %v1916 = vsub.s32 %v1913, %v1915
        %v1917 = vrot.slane %v1903, %v1916
        %v1918 = vcombine.low %v1719, %v1731
        %v1919 = vcombine.high %v1719, %v1731
        %v1921 = vunpack.c.l.s4 1983009808
        %v1922 = vunpack.c.0.s8 %v1921
        %v1923 = vlaneseq
        %v1924 = vshrl.u32 %v1923, 7
        %v1925 = vsub.s32 %v1922, %v1924
        %v1926 = vrot.slane %v1918, %v1925
        %v1928 = vunpack.c.l.s4 1983009808
        %v1929 = vunpack.c.0.s8 %v1928
        %v1930 = vlaneseq
        %v1931 = vshrl.u32 %v1930, 7
        %v1932 = vsub.s32 %v1929, %v1931
        %v1933 = vrot.slane %v1919, %v1932
        %v1934 = vcombine.low %v1878, %v1894
        %v1935 = vcombine.high %v1878, %v1894
        %v1937 = vunpack.c.l.s4 1934713408
        %v1938 = vunpack.c.0.s8 %v1937
        %v1939 = vlaneseq
        %v1940 = vshrl.u32 %v1939, 7
        %v1941 = vsub.s32 %v1938, %v1940
        %v1942 = vrot.slane %v1934, %v1941
        %v1944 = vunpack.c.l.s4 1934713408
        %v1945 = vunpack.c.0.s8 %v1944
        %v1946 = vlaneseq
        %v1947 = vshrl.u32 %v1946, 7
        %v1948 = vsub.s32 %v1945, %v1947
        %v1949 = vrot.slane %v1935, %v1948
        %v1950 = vcombine.low %v1885, %v1901
        %v1951 = vcombine.high %v1885, %v1901
        %v1953 = vunpack.c.l.s4 1934713408
        %v1954 = vunpack.c.0.s8 %v1953
        %v1955 = vlaneseq
        %v1956 = vshrl.u32 %v1955, 7
        %v1957 = vsub.s32 %v1954, %v1956
        %v1958 = vrot.slane %v1950, %v1957
        %v1960 = vunpack.c.l.s4 1934713408
        %v1961 = vunpack.c.0.s8 %v1960
        %v1962 = vlaneseq
        %v1963 = vshrl.u32 %v1962, 7
        %v1964 = vsub.s32 %v1961, %v1963
        %v1965 = vrot.slane %v1951, %v1964
        %v1966 = vcombine.low %v1910, %v1926
        %v1967 = vcombine.high %v1910, %v1926
        %v1969 = vunpack.c.l.s4 1934713408
        %v1970 = vunpack.c.0.s8 %v1969
        %v1971 = vlaneseq
        %v1972 = vshrl.u32 %v1971, 7
        %v1973 = vsub.s32 %v1970, %v1972
        %v1974 = vrot.slane %v1966, %v1973
        %v1976 = vunpack.c.l.s4 1934713408
        %v1977 = vunpack.c.0.s8 %v1976
        %v1978 = vlaneseq
        %v1979 = vshrl.u32 %v1978, 7
        %v1980 = vsub.s32 %v1977, %v1979
        %v1981 = vrot.slane %v1967, %v1980
        %v1982 = vcombine.low %v1917, %v1933
        %v1983 = vcombine.high %v1917, %v1933
        %v1985 = vunpack.c.l.s4 1934713408
        %v1986 = vunpack.c.0.s8 %v1985
        %v1987 = vlaneseq
        %v1988 = vshrl.u32 %v1987, 7
        %v1989 = vsub.s32 %v1986, %v1988
        %v1990 = vrot.slane %v1982, %v1989
        %v1992 = vunpack.c.l.s4 1934713408
        %v1993 = vunpack.c.0.s8 %v1992
        %v1994 = vlaneseq
        %v1995 = vshrl.u32 %v1994, 7
        %v1996 = vsub.s32 %v1993, %v1995
        %v1997 = vrot.slane %v1983, %v1996
        %v1998 = vcombine.low %v1942, %v1974
        %v1999 = vcombine.high %v1942, %v1974
        %v2000 = vcombine.low %v1949, %v1981
        %v2001 = vcombine.high %v1949, %v1981
        %v2002 = vcombine.low %v1958, %v1990
        %v2003 = vcombine.high %v1958, %v1990
        %v2004 = vcombine.low %v1965, %v1997
        %v2005 = vcombine.high %v1965, %v1997
        %v2006 = vcombine.low %v1862, %v1864
        %v2007 = vcombine.high %v1862, %v1864
        %v2009 = vunpack.c.l.s4 1983009808
        %v2010 = vunpack.c.0.s8 %v2009
        %v2011 = vlaneseq
        %v2012 = vshrl.u32 %v2011, 7
        %v2013 = vsub.s32 %v2010, %v2012
        %v2014 = vrot.slane %v2006, %v2013
        %v2016 = vunpack.c.l.s4 1983009808
        %v2017 = vunpack.c.0.s8 %v2016
        %v2018 = vlaneseq
        %v2019 = vshrl.u32 %v2018, 7
        %v2020 = vsub.s32 %v2017, %v2019
        %v2021 = vrot.slane %v2007, %v2020
        %v2022 = vcombine.low %v1863, %v1865
        %v2023 = vcombine.high %v1863, %v1865
        %v2025 = vunpack.c.l.s4 1983009808
        %v2026 = vunpack.c.0.s8 %v2025
        %v2027 = vlaneseq
        %v2028 = vshrl.u32 %v2027, 7
        %v2029 = vsub.s32 %v2026, %v2028
        %v2030 = vrot.slane %v2022, %v2029
        %v2032 = vunpack.c.l.s4 1983009808
        %v2033 = vunpack.c.0.s8 %v2032
        %v2034 = vlaneseq
        %v2035 = vshrl.u32 %v2034, 7
        %v2036 = vsub.s32 %v2033, %v2035
        %v2037 = vrot.slane %v2023, %v2036
        %v2038 = vcombine.low %v1866, %v1868
        %v2039 = vcombine.high %v1866, %v1868
        %v2041 = vunpack.c.l.s4 1983009808
        %v2042 = vunpack.c.0.s8 %v2041
        %v2043 = vlaneseq
        %v2044 = vshrl.u32 %v2043, 7
        %v2045 = vsub.s32 %v2042, %v2044
        %v2046 = vrot.slane %v2038, %v2045
        %v2048 = vunpack.c.l.s4 1983009808
        %v2049 = vunpack.c.0.s8 %v2048
        %v2050 = vlaneseq
        %v2051 = vshrl.u32 %v2050, 7
        %v2052 = vsub.s32 %v2049, %v2051
        %v2053 = vrot.slane %v2039, %v2052
        %v2054 = vcombine.low %v1867, %v1869
        %v2055 = vcombine.high %v1867, %v1869
        %v2057 = vunpack.c.l.s4 1983009808
        %v2058 = vunpack.c.0.s8 %v2057
        %v2059 = vlaneseq
        %v2060 = vshrl.u32 %v2059, 7
        %v2061 = vsub.s32 %v2058, %v2060
        %v2062 = vrot.slane %v2054, %v2061
        %v2064 = vunpack.c.l.s4 1983009808
        %v2065 = vunpack.c.0.s8 %v2064
        %v2066 = vlaneseq
        %v2067 = vshrl.u32 %v2066, 7
        %v2068 = vsub.s32 %v2065, %v2067
        %v2069 = vrot.slane %v2055, %v2068
        %v2070 = vcombine.low %v2014, %v2030
        %v2071 = vcombine.high %v2014, %v2030
        %v2073 = vunpack.c.l.s4 1934713408
        %v2074 = vunpack.c.0.s8 %v2073
        %v2075 = vlaneseq
        %v2076 = vshrl.u32 %v2075, 7
        %v2077 = vsub.s32 %v2074, %v2076
        %v2078 = vrot.slane %v2070, %v2077
        %v2080 = vunpack.c.l.s4 1934713408
        %v2081 = vunpack.c.0.s8 %v2080
        %v2082 = vlaneseq
        %v2083 = vshrl.u32 %v2082, 7
        %v2084 = vsub.s32 %v2081, %v2083
        %v2085 = vrot.slane %v2071, %v2084
        %v2086 = vcombine.low %v2021, %v2037
        %v2087 = vcombine.high %v2021, %v2037
        %v2089 = vunpack.c.l.s4 1934713408
        %v2090 = vunpack.c.0.s8 %v2089
        %v2091 = vlaneseq
        %v2092 = vshrl.u32 %v2091, 7
        %v2093 = vsub.s32 %v2090, %v2092
        %v2094 = vrot.slane %v2086, %v2093
        %v2096 = vunpack.c.l.s4 1934713408
        %v2097 = vunpack.c.0.s8 %v2096
        %v2098 = vlaneseq
        %v2099 = vshrl.u32 %v2098, 7
        %v2100 = vsub.s32 %v2097, %v2099
        %v2101 = vrot.slane %v2087, %v2100
        %v2102 = vcombine.low %v2046, %v2062
        %v2103 = vcombine.high %v2046, %v2062
        %v2105 = vunpack.c.l.s4 1934713408
        %v2106 = vunpack.c.0.s8 %v2105
        %v2107 = vlaneseq
        %v2108 = vshrl.u32 %v2107, 7
        %v2109 = vsub.s32 %v2106, %v2108
        %v2110 = vrot.slane %v2102, %v2109
        %v2112 = vunpack.c.l.s4 1934713408
        %v2113 = vunpack.c.0.s8 %v2112
        %v2114 = vlaneseq
        %v2115 = vshrl.u32 %v2114, 7
        %v2116 = vsub.s32 %v2113, %v2115
        %v2117 = vrot.slane %v2103, %v2116
        %v2118 = vcombine.low %v2053, %v2069
        %v2119 = vcombine.high %v2053, %v2069
        %v2121 = vunpack.c.l.s4 1934713408
        %v2122 = vunpack.c.0.s8 %v2121
        %v2123 = vlaneseq
        %v2124 = vshrl.u32 %v2123, 7
        %v2125 = vsub.s32 %v2122, %v2124
        %v2126 = vrot.slane %v2118, %v2125
        %v2128 = vunpack.c.l.s4 1934713408
        %v2129 = vunpack.c.0.s8 %v2128
        %v2130 = vlaneseq
        %v2131 = vshrl.u32 %v2130, 7
        %v2132 = vsub.s32 %v2129, %v2131
        %v2133 = vrot.slane %v2119, %v2132
        %v2134 = vcombine.low %v2078, %v2110
        %v2135 = vcombine.high %v2078, %v2110
        %v2136 = vcombine.low %v2085, %v2117
        %v2137 = vcombine.high %v2085, %v2117
        %v2138 = vcombine.low %v2094, %v2126
        %v2139 = vcombine.high %v2094, %v2126
        %v2140 = vcombine.low %v2101, %v2133
        %v2141 = vcombine.high %v2101, %v2133
        %v2142 = vcombine.low %v1998, %v2000
        %v2143 = vcombine.high %v1998, %v2000
        %v2145 = vunpack.c.l.s4 1983009808
        %v2146 = vunpack.c.0.s8 %v2145
        %v2147 = vlaneseq
        %v2148 = vshrl.u32 %v2147, 7
        %v2149 = vsub.s32 %v2146, %v2148
        %v2150 = vrot.slane %v2142, %v2149
        %v2152 = vunpack.c.l.s4 1983009808
        %v2153 = vunpack.c.0.s8 %v2152
        %v2154 = vlaneseq
        %v2155 = vshrl.u32 %v2154, 7
        %v2156 = vsub.s32 %v2153, %v2155
        %v2157 = vrot.slane %v2143, %v2156
        %v2158 = vcombine.low %v1999, %v2001
        %v2159 = vcombine.high %v1999, %v2001
        %v2161 = vunpack.c.l.s4 1983009808
        %v2162 = vunpack.c.0.s8 %v2161
        %v2163 = vlaneseq
        %v2164 = vshrl.u32 %v2163, 7
        %v2165 = vsub.s32 %v2162, %v2164
        %v2166 = vrot.slane %v2158, %v2165
        %v2168 = vunpack.c.l.s4 1983009808
        %v2169 = vunpack.c.0.s8 %v2168
        %v2170 = vlaneseq
        %v2171 = vshrl.u32 %v2170, 7
        %v2172 = vsub.s32 %v2169, %v2171
        %v2173 = vrot.slane %v2159, %v2172
        %v2174 = vcombine.low %v2002, %v2004
        %v2175 = vcombine.high %v2002, %v2004
        %v2177 = vunpack.c.l.s4 1983009808
        %v2178 = vunpack.c.0.s8 %v2177
        %v2179 = vlaneseq
        %v2180 = vshrl.u32 %v2179, 7
        %v2181 = vsub.s32 %v2178, %v2180
        %v2182 = vrot.slane %v2174, %v2181
        %v2184 = vunpack.c.l.s4 1983009808
        %v2185 = vunpack.c.0.s8 %v2184
        %v2186 = vlaneseq
        %v2187 = vshrl.u32 %v2186, 7
        %v2188 = vsub.s32 %v2185, %v2187
        %v2189 = vrot.slane %v2175, %v2188
        %v2190 = vcombine.low %v2003, %v2005
        %v2191 = vcombine.high %v2003, %v2005
        %v2193 = vunpack.c.l.s4 1983009808
        %v2194 = vunpack.c.0.s8 %v2193
        %v2195 = vlaneseq
        %v2196 = vshrl.u32 %v2195, 7
        %v2197 = vsub.s32 %v2194, %v2196
        %v2198 = vrot.slane %v2190, %v2197
        %v2200 = vunpack.c.l.s4 1983009808
        %v2201 = vunpack.c.0.s8 %v2200
        %v2202 = vlaneseq
        %v2203 = vshrl.u32 %v2202, 7
        %v2204 = vsub.s32 %v2201, %v2203
        %v2205 = vrot.slane %v2191, %v2204
        %v2206 = vcombine.low %v2150, %v2166
        %v2207 = vcombine.high %v2150, %v2166
        %v2209 = vunpack.c.l.s4 1934713408
        %v2210 = vunpack.c.0.s8 %v2209
        %v2211 = vlaneseq
        %v2212 = vshrl.u32 %v2211, 7
        %v2213 = vsub.s32 %v2210, %v2212
        %v2214 = vrot.slane %v2206, %v2213
        %v2216 = vunpack.c.l.s4 1934713408
        %v2217 = vunpack.c.0.s8 %v2216
        %v2218 = vlaneseq
        %v2219 = vshrl.u32 %v2218, 7
        %v2220 = vsub.s32 %v2217, %v2219
        %v2221 = vrot.slane %v2207, %v2220
        %v2222 = vcombine.low %v2157, %v2173
        %v2223 = vcombine.high %v2157, %v2173
        %v2225 = vunpack.c.l.s4 1934713408
        %v2226 = vunpack.c.0.s8 %v2225
        %v2227 = vlaneseq
        %v2228 = vshrl.u32 %v2227, 7
        %v2229 = vsub.s32 %v2226, %v2228
        %v2230 = vrot.slane %v2222, %v2229
        %v2232 = vunpack.c.l.s4 1934713408
        %v2233 = vunpack.c.0.s8 %v2232
        %v2234 = vlaneseq
        %v2235 = vshrl.u32 %v2234, 7
        %v2236 = vsub.s32 %v2233, %v2235
        %v2237 = vrot.slane %v2223, %v2236
        %v2238 = vcombine.low %v2182, %v2198
        %v2239 = vcombine.high %v2182, %v2198
        %v2241 = vunpack.c.l.s4 1934713408
        %v2242 = vunpack.c.0.s8 %v2241
        %v2243 = vlaneseq
        %v2244 = vshrl.u32 %v2243, 7
        %v2245 = vsub.s32 %v2242, %v2244
        %v2246 = vrot.slane %v2238, %v2245
        %v2248 = vunpack.c.l.s4 1934713408
        %v2249 = vunpack.c.0.s8 %v2248
        %v2250 = vlaneseq
        %v2251 = vshrl.u32 %v2250, 7
        %v2252 = vsub.s32 %v2249, %v2251
        %v2253 = vrot.slane %v2239, %v2252
        %v2254 = vcombine.low %v2189, %v2205
        %v2255 = vcombine.high %v2189, %v2205
        %v2257 = vunpack.c.l.s4 1934713408
        %v2258 = vunpack.c.0.s8 %v2257
        %v2259 = vlaneseq
        %v2260 = vshrl.u32 %v2259, 7
        %v2261 = vsub.s32 %v2258, %v2260
        %v2262 = vrot.slane %v2254, %v2261
        %v2264 = vunpack.c.l.s4 1934713408
        %v2265 = vunpack.c.0.s8 %v2264
        %v2266 = vlaneseq
        %v2267 = vshrl.u32 %v2266, 7
        %v2268 = vsub.s32 %v2265, %v2267
        %v2269 = vrot.slane %v2255, %v2268
        %v2270 = vcombine.low %v2214, %v2246
        %v2271 = vcombine.high %v2214, %v2246
        %v2272 = vcombine.low %v2221, %v2253
        %v2273 = vcombine.high %v2221, %v2253
        %v2274 = vcombine.low %v2230, %v2262
        %v2275 = vcombine.high %v2230, %v2262
        %v2276 = vcombine.low %v2237, %v2269
        %v2277 = vcombine.high %v2237, %v2269
        %v2278 = vpack.c.bf16 %v2270, %v2134
        %v2279 = vpack.c.bf16 %v2271, %v2135
        %v2280 = vpack.c.bf16 %v2272, %v2136
        %v2281 = vpack.c.bf16 %v2273, %v2137
        %v2282 = vpack.c.bf16 %v2274, %v2138
        %v2283 = vpack.c.bf16 %v2275, %v2139
        %v2284 = vpack.c.bf16 %v2276, %v2140
        %v2285 = vpack.c.bf16 %v2277, %v2141
        %vm2286 = vcmask 130048
        %v2288 = vsel %vm2286, %v1086, 0
        %v2291 = vsel %vm2286, %v1682, 0
        %2293 = vmatprep.subr.bf16.mxu0 0
        %2294 = vmatpush1.bf16.xpose.msra.mxu0 %v2291
        %2295 = vmatprep.subr.bf16.mxu0 0
        %2296 = vmatpush1.bf16.xpose.msra.mxu0 0
        %2297 = vmatprep.subr.bf16.mxu0 0
        %2298 = vmatpush1.bf16.xpose.msra.mxu0 0
        %2299 = vmatprep.subr.bf16.mxu0 0
        %2300 = vmatpush1.bf16.xpose.msra.mxu0 0
        %2301 = vmatprep.subr.bf16.mxu0 0
        %2302 = vmatpush1.bf16.xpose.msra.mxu0 0
        %2303 = vmatprep.subr.bf16.mxu0 0
        %2304 = vmatpush1.bf16.xpose.msra.mxu0 0
        %2305 = vmatprep.subr.bf16.mxu0 0
        %2306 = vmatpush1.bf16.xpose.msra.mxu0 0
        %2307 = vmatprep.subr.bf16.mxu0 0
        %2308 = vmatpush1.bf16.xpose.msra.mxu0 0
        %2309 = vmatprep.subr.bf16.mxu0 0
        %2310 = vmatpush1.bf16.xpose.msra.mxu0 0
        %2311 = vmatprep.subr.bf16.mxu0 0
        %2312 = vmatpush1.bf16.xpose.msra.mxu0 0
        %2313 = vmatprep.subr.bf16.mxu0 0
        %2314 = vmatpush1.bf16.xpose.msra.mxu0 0
        %2315 = vmatprep.subr.bf16.mxu0 0
        %2316 = vmatpush1.bf16.xpose.msra.mxu0 0
        %2317 = vmatprep.subr.bf16.mxu0 0
        %2318 = vmatpush1.bf16.xpose.msra.mxu0 0
        %2319 = vmatprep.subr.bf16.mxu0 0
        %2320 = vmatpush1.bf16.xpose.msra.mxu0 0
        %2321 = vmatprep.subr.bf16.mxu0 0
        %2322 = vmatpush1.bf16.xpose.msra.mxu0 0
        %2323 = vmatprep.subr.bf16.mxu0 0
        %2324 = vmatpush1.bf16.xpose.msra.mxu0 0
        %2325 = vmatprep.mubr.bf16.mxu0 0
        %2326 = vmatmul.mubr.bf16.gmra.mrb[0].mxu0 %v2288
        %v2327 = vpop.f32.mrb[0].mxu0
        %v2328 = vadd.f32 0.0, %v2327
        %v2329 = vpop.f32.mrb[0].mxu0
        %v2330 = vpop.f32.mrb[0].mxu0
        %v2331 = vadd.f32 0.0, %v2330
        %v2332 = vpop.f32.mrb[0].mxu0
        %2333 = vdwg.mxu0
        %v2335 = vsel %vm2286, %v1087, 0
        %v2338 = vsel %vm2286, %v1683, 0
        %2340 = vmatprep.subr.bf16.mxu0 0
        %2341 = vmatpush1.bf16.xpose.msra.mxu0 %v2338
        %2342 = vmatprep.subr.bf16.mxu0 0
        %2343 = vmatpush1.bf16.xpose.msra.mxu0 0
        %2344 = vmatprep.subr.bf16.mxu0 0
        %2345 = vmatpush1.bf16.xpose.msra.mxu0 0
        %2346 = vmatprep.subr.bf16.mxu0 0
        %2347 = vmatpush1.bf16.xpose.msra.mxu0 0
        %2348 = vmatprep.subr.bf16.mxu0 0
        %2349 = vmatpush1.bf16.xpose.msra.mxu0 0
        %2350 = vmatprep.subr.bf16.mxu0 0
        %2351 = vmatpush1.bf16.xpose.msra.mxu0 0
        %2352 = vmatprep.subr.bf16.mxu0 0
        %2353 = vmatpush1.bf16.xpose.msra.mxu0 0
        %2354 = vmatprep.subr.bf16.mxu0 0
        %2355 = vmatpush1.bf16.xpose.msra.mxu0 0
        %2356 = vmatprep.subr.bf16.mxu0 0
        %2357 = vmatpush1.bf16.xpose.msra.mxu0 0
        %2358 = vmatprep.subr.bf16.mxu0 0
        %2359 = vmatpush1.bf16.xpose.msra.mxu0 0
        %2360 = vmatprep.subr.bf16.mxu0 0
        %2361 = vmatpush1.bf16.xpose.msra.mxu0 0
        %2362 = vmatprep.subr.bf16.mxu0 0
        %2363 = vmatpush1.bf16.xpose.msra.mxu0 0
        %2364 = vmatprep.subr.bf16.mxu0 0
        %2365 = vmatpush1.bf16.xpose.msra.mxu0 0
        %2366 = vmatprep.subr.bf16.mxu0 0
        %2367 = vmatpush1.bf16.xpose.msra.mxu0 0
        %2368 = vmatprep.subr.bf16.mxu0 0
        %2369 = vmatpush1.bf16.xpose.msra.mxu0 0
        %2370 = vmatprep.subr.bf16.mxu0 0
        %2371 = vmatpush1.bf16.xpose.msra.mxu0 0
        %2372 = vmatprep.mubr.bf16.mxu0 0
        %2373 = vmatmul.mubr.bf16.gmra.mrb[0].mxu0 %v2335
        %v2374 = vpop.f32.mrb[0].mxu0
        %v2375 = vadd.f32 0.0, %v2374
        %v2376 = vpop.f32.mrb[0].mxu0
        %v2377 = vpop.f32.mrb[0].mxu0
        %v2378 = vadd.f32 0.0, %v2377
        %v2379 = vpop.f32.mrb[0].mxu0
        %2380 = vdwg.mxu0
        %v2382 = vsel %vm2286, %v1088, 0
        %v2385 = vsel %vm2286, %v1684, 0
        %2387 = vmatprep.subr.bf16.mxu0 0
        %2388 = vmatpush1.bf16.xpose.msra.mxu0 %v2385
        %2389 = vmatprep.subr.bf16.mxu0 0
        %2390 = vmatpush1.bf16.xpose.msra.mxu0 0
        %2391 = vmatprep.subr.bf16.mxu0 0
        %2392 = vmatpush1.bf16.xpose.msra.mxu0 0
        %2393 = vmatprep.subr.bf16.mxu0 0
        %2394 = vmatpush1.bf16.xpose.msra.mxu0 0
        %2395 = vmatprep.subr.bf16.mxu0 0
        %2396 = vmatpush1.bf16.xpose.msra.mxu0 0
        %2397 = vmatprep.subr.bf16.mxu0 0
        %2398 = vmatpush1.bf16.xpose.msra.mxu0 0
        %2399 = vmatprep.subr.bf16.mxu0 0
        %2400 = vmatpush1.bf16.xpose.msra.mxu0 0
        %2401 = vmatprep.subr.bf16.mxu0 0
        %2402 = vmatpush1.bf16.xpose.msra.mxu0 0
        %2403 = vmatprep.subr.bf16.mxu0 0
        %2404 = vmatpush1.bf16.xpose.msra.mxu0 0
        %2405 = vmatprep.subr.bf16.mxu0 0
        %2406 = vmatpush1.bf16.xpose.msra.mxu0 0
        %2407 = vmatprep.subr.bf16.mxu0 0
        %2408 = vmatpush1.bf16.xpose.msra.mxu0 0
        %2409 = vmatprep.subr.bf16.mxu0 0
        %2410 = vmatpush1.bf16.xpose.msra.mxu0 0
        %2411 = vmatprep.subr.bf16.mxu0 0
        %2412 = vmatpush1.bf16.xpose.msra.mxu0 0
        %2413 = vmatprep.subr.bf16.mxu0 0
        %2414 = vmatpush1.bf16.xpose.msra.mxu0 0
        %2415 = vmatprep.subr.bf16.mxu0 0
        %2416 = vmatpush1.bf16.xpose.msra.mxu0 0
        %2417 = vmatprep.subr.bf16.mxu0 0
        %2418 = vmatpush1.bf16.xpose.msra.mxu0 0
        %2419 = vmatprep.mubr.bf16.mxu0 0
        %2420 = vmatmul.mubr.bf16.gmra.mrb[0].mxu0 %v2382
        %v2421 = vpop.f32.mrb[0].mxu0
        %v2422 = vadd.f32 0.0, %v2421
        %v2423 = vpop.f32.mrb[0].mxu0
        %v2424 = vpop.f32.mrb[0].mxu0
        %v2425 = vadd.f32 0.0, %v2424
        %v2426 = vpop.f32.mrb[0].mxu0
        %2427 = vdwg.mxu0
        %v2429 = vsel %vm2286, %v1089, 0
        %v2432 = vsel %vm2286, %v1685, 0
        %2434 = vmatprep.subr.bf16.mxu0 0
        %2435 = vmatpush1.bf16.xpose.msra.mxu0 %v2432
        %2436 = vmatprep.subr.bf16.mxu0 0
        %2437 = vmatpush1.bf16.xpose.msra.mxu0 0
        %2438 = vmatprep.subr.bf16.mxu0 0
        %2439 = vmatpush1.bf16.xpose.msra.mxu0 0
        %2440 = vmatprep.subr.bf16.mxu0 0
        %2441 = vmatpush1.bf16.xpose.msra.mxu0 0
        %2442 = vmatprep.subr.bf16.mxu0 0
        %2443 = vmatpush1.bf16.xpose.msra.mxu0 0
        %2444 = vmatprep.subr.bf16.mxu0 0
        %2445 = vmatpush1.bf16.xpose.msra.mxu0 0
        %2446 = vmatprep.subr.bf16.mxu0 0
        %2447 = vmatpush1.bf16.xpose.msra.mxu0 0
        %2448 = vmatprep.subr.bf16.mxu0 0
        %2449 = vmatpush1.bf16.xpose.msra.mxu0 0
        %2450 = vmatprep.subr.bf16.mxu0 0
        %2451 = vmatpush1.bf16.xpose.msra.mxu0 0
        %2452 = vmatprep.subr.bf16.mxu0 0
        %2453 = vmatpush1.bf16.xpose.msra.mxu0 0
        %2454 = vmatprep.subr.bf16.mxu0 0
        %2455 = vmatpush1.bf16.xpose.msra.mxu0 0
        %2456 = vmatprep.subr.bf16.mxu0 0
        %2457 = vmatpush1.bf16.xpose.msra.mxu0 0
        %2458 = vmatprep.subr.bf16.mxu0 0
        %2459 = vmatpush1.bf16.xpose.msra.mxu0 0
        %2460 = vmatprep.subr.bf16.mxu0 0
        %2461 = vmatpush1.bf16.xpose.msra.mxu0 0
        %2462 = vmatprep.subr.bf16.mxu0 0
        %2463 = vmatpush1.bf16.xpose.msra.mxu0 0
        %2464 = vmatprep.subr.bf16.mxu0 0
        %2465 = vmatpush1.bf16.xpose.msra.mxu0 0
        %2466 = vmatprep.mubr.bf16.mxu0 0
        %2467 = vmatmul.mubr.bf16.gmra.mrb[0].mxu0 %v2429
        %v2468 = vpop.f32.mrb[0].mxu0
        %v2469 = vadd.f32 0.0, %v2468
        %v2470 = vpop.f32.mrb[0].mxu0
        %v2471 = vpop.f32.mrb[0].mxu0
        %v2472 = vadd.f32 0.0, %v2471
        %v2473 = vpop.f32.mrb[0].mxu0
        %2474 = vdwg.mxu0
        %v2476 = vsel %vm2286, %v1090, 0
        %v2479 = vsel %vm2286, %v1686, 0
        %2481 = vmatprep.subr.bf16.mxu0 0
        %2482 = vmatpush1.bf16.xpose.msra.mxu0 %v2479
        %2483 = vmatprep.subr.bf16.mxu0 0
        %2484 = vmatpush1.bf16.xpose.msra.mxu0 0
        %2485 = vmatprep.subr.bf16.mxu0 0
        %2486 = vmatpush1.bf16.xpose.msra.mxu0 0
        %2487 = vmatprep.subr.bf16.mxu0 0
        %2488 = vmatpush1.bf16.xpose.msra.mxu0 0
        %2489 = vmatprep.subr.bf16.mxu0 0
        %2490 = vmatpush1.bf16.xpose.msra.mxu0 0
        %2491 = vmatprep.subr.bf16.mxu0 0
        %2492 = vmatpush1.bf16.xpose.msra.mxu0 0
        %2493 = vmatprep.subr.bf16.mxu0 0
        %2494 = vmatpush1.bf16.xpose.msra.mxu0 0
        %2495 = vmatprep.subr.bf16.mxu0 0
        %2496 = vmatpush1.bf16.xpose.msra.mxu0 0
        %2497 = vmatprep.subr.bf16.mxu0 0
        %2498 = vmatpush1.bf16.xpose.msra.mxu0 0
        %2499 = vmatprep.subr.bf16.mxu0 0
        %2500 = vmatpush1.bf16.xpose.msra.mxu0 0
        %2501 = vmatprep.subr.bf16.mxu0 0
        %2502 = vmatpush1.bf16.xpose.msra.mxu0 0
        %2503 = vmatprep.subr.bf16.mxu0 0
        %2504 = vmatpush1.bf16.xpose.msra.mxu0 0
        %2505 = vmatprep.subr.bf16.mxu0 0
        %2506 = vmatpush1.bf16.xpose.msra.mxu0 0
        %2507 = vmatprep.subr.bf16.mxu0 0
        %2508 = vmatpush1.bf16.xpose.msra.mxu0 0
        %2509 = vmatprep.subr.bf16.mxu0 0
        %2510 = vmatpush1.bf16.xpose.msra.mxu0 0
        %2511 = vmatprep.subr.bf16.mxu0 0
        %2512 = vmatpush1.bf16.xpose.msra.mxu0 0
        %2513 = vmatprep.mubr.bf16.mxu0 0
        %2514 = vmatmul.mubr.bf16.gmra.mrb[0].mxu0 %v2476
        %v2515 = vpop.f32.mrb[0].mxu0
        %v2516 = vadd.f32 0.0, %v2515
        %v2517 = vpop.f32.mrb[0].mxu0
        %v2518 = vpop.f32.mrb[0].mxu0
        %v2519 = vadd.f32 0.0, %v2518
        %v2520 = vpop.f32.mrb[0].mxu0
        %2521 = vdwg.mxu0
        %v2523 = vsel %vm2286, %v1091, 0
        %v2526 = vsel %vm2286, %v1687, 0
        %2528 = vmatprep.subr.bf16.mxu0 0
        %2529 = vmatpush1.bf16.xpose.msra.mxu0 %v2526
        %2530 = vmatprep.subr.bf16.mxu0 0
        %2531 = vmatpush1.bf16.xpose.msra.mxu0 0
        %2532 = vmatprep.subr.bf16.mxu0 0
        %2533 = vmatpush1.bf16.xpose.msra.mxu0 0
        %2534 = vmatprep.subr.bf16.mxu0 0
        %2535 = vmatpush1.bf16.xpose.msra.mxu0 0
        %2536 = vmatprep.subr.bf16.mxu0 0
        %2537 = vmatpush1.bf16.xpose.msra.mxu0 0
        %2538 = vmatprep.subr.bf16.mxu0 0
        %2539 = vmatpush1.bf16.xpose.msra.mxu0 0
        %2540 = vmatprep.subr.bf16.mxu0 0
        %2541 = vmatpush1.bf16.xpose.msra.mxu0 0
        %2542 = vmatprep.subr.bf16.mxu0 0
        %2543 = vmatpush1.bf16.xpose.msra.mxu0 0
        %2544 = vmatprep.subr.bf16.mxu0 0
        %2545 = vmatpush1.bf16.xpose.msra.mxu0 0
        %2546 = vmatprep.subr.bf16.mxu0 0
        %2547 = vmatpush1.bf16.xpose.msra.mxu0 0
        %2548 = vmatprep.subr.bf16.mxu0 0
        %2549 = vmatpush1.bf16.xpose.msra.mxu0 0
        %2550 = vmatprep.subr.bf16.mxu0 0
        %2551 = vmatpush1.bf16.xpose.msra.mxu0 0
        %2552 = vmatprep.subr.bf16.mxu0 0
        %2553 = vmatpush1.bf16.xpose.msra.mxu0 0
        %2554 = vmatprep.subr.bf16.mxu0 0
        %2555 = vmatpush1.bf16.xpose.msra.mxu0 0
        %2556 = vmatprep.subr.bf16.mxu0 0
        %2557 = vmatpush1.bf16.xpose.msra.mxu0 0
        %2558 = vmatprep.subr.bf16.mxu0 0
        %2559 = vmatpush1.bf16.xpose.msra.mxu0 0
        %2560 = vmatprep.mubr.bf16.mxu0 0
        %2561 = vmatmul.mubr.bf16.gmra.mrb[0].mxu0 %v2523
        %v2562 = vpop.f32.mrb[0].mxu0
        %v2563 = vadd.f32 0.0, %v2562
        %v2564 = vpop.f32.mrb[0].mxu0
        %v2565 = vpop.f32.mrb[0].mxu0
        %v2566 = vadd.f32 0.0, %v2565
        %v2567 = vpop.f32.mrb[0].mxu0
        %2568 = vdwg.mxu0
        %v2570 = vsel %vm2286, %v1092, 0
        %v2573 = vsel %vm2286, %v1688, 0
        %2575 = vmatprep.subr.bf16.mxu0 0
        %2576 = vmatpush1.bf16.xpose.msra.mxu0 %v2573
        %2577 = vmatprep.subr.bf16.mxu0 0
        %2578 = vmatpush1.bf16.xpose.msra.mxu0 0
        %2579 = vmatprep.subr.bf16.mxu0 0
        %2580 = vmatpush1.bf16.xpose.msra.mxu0 0
        %2581 = vmatprep.subr.bf16.mxu0 0
        %2582 = vmatpush1.bf16.xpose.msra.mxu0 0
        %2583 = vmatprep.subr.bf16.mxu0 0
        %2584 = vmatpush1.bf16.xpose.msra.mxu0 0
        %2585 = vmatprep.subr.bf16.mxu0 0
        %2586 = vmatpush1.bf16.xpose.msra.mxu0 0
        %2587 = vmatprep.subr.bf16.mxu0 0
        %2588 = vmatpush1.bf16.xpose.msra.mxu0 0
        %2589 = vmatprep.subr.bf16.mxu0 0
        %2590 = vmatpush1.bf16.xpose.msra.mxu0 0
        %2591 = vmatprep.subr.bf16.mxu0 0
        %2592 = vmatpush1.bf16.xpose.msra.mxu0 0
        %2593 = vmatprep.subr.bf16.mxu0 0
        %2594 = vmatpush1.bf16.xpose.msra.mxu0 0
        %2595 = vmatprep.subr.bf16.mxu0 0
        %2596 = vmatpush1.bf16.xpose.msra.mxu0 0
        %2597 = vmatprep.subr.bf16.mxu0 0
        %2598 = vmatpush1.bf16.xpose.msra.mxu0 0
        %2599 = vmatprep.subr.bf16.mxu0 0
        %2600 = vmatpush1.bf16.xpose.msra.mxu0 0
        %2601 = vmatprep.subr.bf16.mxu0 0
        %2602 = vmatpush1.bf16.xpose.msra.mxu0 0
        %2603 = vmatprep.subr.bf16.mxu0 0
        %2604 = vmatpush1.bf16.xpose.msra.mxu0 0
        %2605 = vmatprep.subr.bf16.mxu0 0
        %2606 = vmatpush1.bf16.xpose.msra.mxu0 0
        %2607 = vmatprep.mubr.bf16.mxu0 0
        %2608 = vmatmul.mubr.bf16.gmra.mrb[0].mxu0 %v2570
        %v2609 = vpop.f32.mrb[0].mxu0
        %v2610 = vadd.f32 0.0, %v2609
        %v2611 = vpop.f32.mrb[0].mxu0
        %v2612 = vpop.f32.mrb[0].mxu0
        %v2613 = vadd.f32 0.0, %v2612
        %v2614 = vpop.f32.mrb[0].mxu0
        %2615 = vdwg.mxu0
        %v2617 = vsel %vm2286, %v1093, 0
        %v2620 = vsel %vm2286, %v1689, 0
        %2622 = vmatprep.subr.bf16.mxu0 0
        %2623 = vmatpush1.bf16.xpose.msra.mxu0 %v2620
        %2624 = vmatprep.subr.bf16.mxu0 0
        %2625 = vmatpush1.bf16.xpose.msra.mxu0 0
        %2626 = vmatprep.subr.bf16.mxu0 0
        %2627 = vmatpush1.bf16.xpose.msra.mxu0 0
        %2628 = vmatprep.subr.bf16.mxu0 0
        %2629 = vmatpush1.bf16.xpose.msra.mxu0 0
        %2630 = vmatprep.subr.bf16.mxu0 0
        %2631 = vmatpush1.bf16.xpose.msra.mxu0 0
        %2632 = vmatprep.subr.bf16.mxu0 0
        %2633 = vmatpush1.bf16.xpose.msra.mxu0 0
        %2634 = vmatprep.subr.bf16.mxu0 0
        %2635 = vmatpush1.bf16.xpose.msra.mxu0 0
        %2636 = vmatprep.subr.bf16.mxu0 0
        %2637 = vmatpush1.bf16.xpose.msra.mxu0 0
        %2638 = vmatprep.subr.bf16.mxu0 0
        %2639 = vmatpush1.bf16.xpose.msra.mxu0 0
        %2640 = vmatprep.subr.bf16.mxu0 0
        %2641 = vmatpush1.bf16.xpose.msra.mxu0 0
        %2642 = vmatprep.subr.bf16.mxu0 0
        %2643 = vmatpush1.bf16.xpose.msra.mxu0 0
        %2644 = vmatprep.subr.bf16.mxu0 0
        %2645 = vmatpush1.bf16.xpose.msra.mxu0 0
        %2646 = vmatprep.subr.bf16.mxu0 0
        %2647 = vmatpush1.bf16.xpose.msra.mxu0 0
        %2648 = vmatprep.subr.bf16.mxu0 0
        %2649 = vmatpush1.bf16.xpose.msra.mxu0 0
        %2650 = vmatprep.subr.bf16.mxu0 0
        %2651 = vmatpush1.bf16.xpose.msra.mxu0 0
        %2652 = vmatprep.subr.bf16.mxu0 0
        %2653 = vmatpush1.bf16.xpose.msra.mxu0 0
        %2654 = vmatprep.mubr.bf16.mxu0 0
        %2655 = vmatmul.mubr.bf16.gmra.mrb[0].mxu0 %v2617
        %v2656 = vpop.f32.mrb[0].mxu0
        %v2657 = vadd.f32 0.0, %v2656
        %v2658 = vpop.f32.mrb[0].mxu0
        %v2659 = vpop.f32.mrb[0].mxu0
        %v2660 = vadd.f32 0.0, %v2659
        %v2661 = vpop.f32.mrb[0].mxu0
        %2662 = vdwg.mxu0
        %v2663 = vsel %vm2286, %v2328, -inf
        %2664 = vmax.xlane.f32.xlu0 %v2663
        %v2665 = vpop.xlane.xlu0 %2664
        %v2666 = vsel %vm2286, %v2331, -inf
        %2667 = vmax.xlane.f32.xlu0 %v2666
        %v2668 = vpop.xlane.xlu0 %2667
        %v2669 = vsel %vm2286, %v2375, -inf
        %2670 = vmax.xlane.f32.xlu0 %v2669
        %v2671 = vpop.xlane.xlu0 %2670
        %v2672 = vsel %vm2286, %v2378, -inf
        %2673 = vmax.xlane.f32.xlu0 %v2672
        %v2674 = vpop.xlane.xlu0 %2673
        %v2675 = vsel %vm2286, %v2422, -inf
        %2676 = vmax.xlane.f32.xlu0 %v2675
        %v2677 = vpop.xlane.xlu0 %2676
        %v2678 = vsel %vm2286, %v2425, -inf
        %2679 = vmax.xlane.f32.xlu0 %v2678
        %v2680 = vpop.xlane.xlu0 %2679
        %v2681 = vsel %vm2286, %v2469, -inf
        %2682 = vmax.xlane.f32.xlu0 %v2681
        %v2683 = vpop.xlane.xlu0 %2682
        %v2684 = vsel %vm2286, %v2472, -inf
        %2685 = vmax.xlane.f32.xlu0 %v2684
        %v2686 = vpop.xlane.xlu0 %2685
        %v2687 = vsel %vm2286, %v2516, -inf
        %2688 = vmax.xlane.f32.xlu0 %v2687
        %v2689 = vpop.xlane.xlu0 %2688
        %v2690 = vsel %vm2286, %v2519, -inf
        %2691 = vmax.xlane.f32.xlu0 %v2690
        %v2692 = vpop.xlane.xlu0 %2691
        %v2693 = vsel %vm2286, %v2563, -inf
        %2694 = vmax.xlane.f32.xlu0 %v2693
        %v2695 = vpop.xlane.xlu0 %2694
        %v2696 = vsel %vm2286, %v2566, -inf
        %2697 = vmax.xlane.f32.xlu0 %v2696
        %v2698 = vpop.xlane.xlu0 %2697
        %v2699 = vsel %vm2286, %v2610, -inf
        %2700 = vmax.xlane.f32.xlu0 %v2699
        %v2701 = vpop.xlane.xlu0 %2700
        %v2702 = vsel %vm2286, %v2613, -inf
        %2703 = vmax.xlane.f32.xlu0 %v2702
        %v2704 = vpop.xlane.xlu0 %2703
        %v2705 = vsel %vm2286, %v2657, -inf
        %2706 = vmax.xlane.f32.xlu0 %v2705
        %v2707 = vpop.xlane.xlu0 %2706
        %v2708 = vsel %vm2286, %v2660, -inf
        %2709 = vmax.xlane.f32.xlu0 %v2708
        %v2710 = vpop.xlane.xlu0 %2709
        %v2711 = vsub.f32 %v2328, %v2665
        %v2712 = vsub.f32 %v2331, %v2668
        %v2713 = vsub.f32 %v2375, %v2671
        %v2714 = vsub.f32 %v2378, %v2674
        %v2715 = vsub.f32 %v2422, %v2677
        %v2716 = vsub.f32 %v2425, %v2680
        %v2717 = vsub.f32 %v2469, %v2683
        %v2718 = vsub.f32 %v2472, %v2686
        %v2719 = vsub.f32 %v2516, %v2689
        %v2720 = vsub.f32 %v2519, %v2692
        %v2721 = vsub.f32 %v2563, %v2695
        %v2722 = vsub.f32 %v2566, %v2698
        %v2723 = vsub.f32 %v2610, %v2701
        %v2724 = vsub.f32 %v2613, %v2704
        %v2725 = vsub.f32 %v2657, %v2707
        %v2726 = vsub.f32 %v2660, %v2710
        %v2727 = vmul.f32 %v2711, 1.442695
        %v2728 = vpow.pop %v2727
        %v2729 = vmul.f32 %v2712, 1.442695
        %v2730 = vpow.pop %v2729
        %v2731 = vmul.f32 %v2713, 1.442695
        %v2732 = vpow.pop %v2731
        %v2733 = vmul.f32 %v2714, 1.442695
        %v2734 = vpow.pop %v2733
        %v2735 = vmul.f32 %v2715, 1.442695
        %v2736 = vpow.pop %v2735
        %v2737 = vmul.f32 %v2716, 1.442695
        %v2738 = vpow.pop %v2737
        %v2739 = vmul.f32 %v2717, 1.442695
        %v2740 = vpow.pop %v2739
        %v2741 = vmul.f32 %v2718, 1.442695
        %v2742 = vpow.pop %v2741
        %v2743 = vmul.f32 %v2719, 1.442695
        %v2744 = vpow.pop %v2743
        %v2745 = vmul.f32 %v2720, 1.442695
        %v2746 = vpow.pop %v2745
        %v2747 = vmul.f32 %v2721, 1.442695
        %v2748 = vpow.pop %v2747
        %v2749 = vmul.f32 %v2722, 1.442695
        %v2750 = vpow.pop %v2749
        %v2751 = vmul.f32 %v2723, 1.442695
        %v2752 = vpow.pop %v2751
        %v2753 = vmul.f32 %v2724, 1.442695
        %v2754 = vpow.pop %v2753
        %v2755 = vmul.f32 %v2725, 1.442695
        %v2756 = vpow.pop %v2755
        %v2757 = vmul.f32 %v2726, 1.442695
        %v2758 = vpow.pop %v2757
        %v2759 = vsel %vm2286, %v2728, 0.0
        %2760 = vadd.xlane.f32.xlu0 %v2759
        %v2761 = vpop.xlane.xlu0 %2760
        %v2762 = vsel %vm2286, %v2730, 0.0
        %2763 = vadd.xlane.f32.xlu0 %v2762
        %v2764 = vpop.xlane.xlu0 %2763
        %v2765 = vsel %vm2286, %v2732, 0.0
        %2766 = vadd.xlane.f32.xlu0 %v2765
        %v2767 = vpop.xlane.xlu0 %2766
        %v2768 = vsel %vm2286, %v2734, 0.0
        %2769 = vadd.xlane.f32.xlu0 %v2768
        %v2770 = vpop.xlane.xlu0 %2769
        %v2771 = vsel %vm2286, %v2736, 0.0
        %2772 = vadd.xlane.f32.xlu0 %v2771
        %v2773 = vpop.xlane.xlu0 %2772
        %v2774 = vsel %vm2286, %v2738, 0.0
        %2775 = vadd.xlane.f32.xlu0 %v2774
        %v2776 = vpop.xlane.xlu0 %2775
        %v2777 = vsel %vm2286, %v2740, 0.0
        %2778 = vadd.xlane.f32.xlu0 %v2777
        %v2779 = vpop.xlane.xlu0 %2778
        %v2780 = vsel %vm2286, %v2742, 0.0
        %2781 = vadd.xlane.f32.xlu0 %v2780
        %v2782 = vpop.xlane.xlu0 %2781
        %v2783 = vsel %vm2286, %v2744, 0.0
        %2784 = vadd.xlane.f32.xlu0 %v2783
        %v2785 = vpop.xlane.xlu0 %2784
        %v2786 = vsel %vm2286, %v2746, 0.0
        %2787 = vadd.xlane.f32.xlu0 %v2786
        %v2788 = vpop.xlane.xlu0 %2787
        %v2789 = vsel %vm2286, %v2748, 0.0
        %2790 = vadd.xlane.f32.xlu0 %v2789
        %v2791 = vpop.xlane.xlu0 %2790
        %v2792 = vsel %vm2286, %v2750, 0.0
        %2793 = vadd.xlane.f32.xlu0 %v2792
        %v2794 = vpop.xlane.xlu0 %2793
        %v2795 = vsel %vm2286, %v2752, 0.0
        %2796 = vadd.xlane.f32.xlu0 %v2795
        %v2797 = vpop.xlane.xlu0 %2796
        %v2798 = vsel %vm2286, %v2754, 0.0
        %2799 = vadd.xlane.f32.xlu0 %v2798
        %v2800 = vpop.xlane.xlu0 %2799
        %v2801 = vsel %vm2286, %v2756, 0.0
        %2802 = vadd.xlane.f32.xlu0 %v2801
        %v2803 = vpop.xlane.xlu0 %2802
        %v2804 = vsel %vm2286, %v2758, 0.0
        %2805 = vadd.xlane.f32.xlu0 %v2804
        %v2806 = vpop.xlane.xlu0 %2805
        %v2807 = vrcp.pop %v2761
        %v2808 = vrcp.pop %v2764
        %v2809 = vrcp.pop %v2767
        %v2810 = vrcp.pop %v2770
        %v2811 = vrcp.pop %v2773
        %v2812 = vrcp.pop %v2776
        %v2813 = vrcp.pop %v2779
        %v2814 = vrcp.pop %v2782
        %v2815 = vrcp.pop %v2785
        %v2816 = vrcp.pop %v2788
        %v2817 = vrcp.pop %v2791
        %v2818 = vrcp.pop %v2794
        %v2819 = vrcp.pop %v2797
        %v2820 = vrcp.pop %v2800
        %v2821 = vrcp.pop %v2803
        %v2822 = vrcp.pop %v2806
        %v2823 = vmul.f32 %v2728, %v2807
        %v2824 = vmul.f32 %v2730, %v2808
        %v2825 = vmul.f32 %v2732, %v2809
        %v2826 = vmul.f32 %v2734, %v2810
        %v2827 = vmul.f32 %v2736, %v2811
        %v2828 = vmul.f32 %v2738, %v2812
        %v2829 = vmul.f32 %v2740, %v2813
        %v2830 = vmul.f32 %v2742, %v2814
        %v2831 = vmul.f32 %v2744, %v2815
        %v2832 = vmul.f32 %v2746, %v2816
        %v2833 = vmul.f32 %v2748, %v2817
        %v2834 = vmul.f32 %v2750, %v2818
        %v2835 = vmul.f32 %v2752, %v2819
        %v2836 = vmul.f32 %v2754, %v2820
        %v2837 = vmul.f32 %v2756, %v2821
        %v2838 = vmul.f32 %v2758, %v2822
        %v2839 = vpack.c.bf16 %v2824, %v2823
        %v2840 = vpack.c.bf16 %v2826, %v2825
        %v2841 = vpack.c.bf16 %v2828, %v2827
        %v2842 = vpack.c.bf16 %v2830, %v2829
        %v2843 = vpack.c.bf16 %v2832, %v2831
        %v2844 = vpack.c.bf16 %v2834, %v2833
        %v2845 = vpack.c.bf16 %v2836, %v2835
        %v2846 = vpack.c.bf16 %v2838, %v2837
        %v2848 = vsel %vm2286, %v2839, 0
        %2850 = vmatprep.subr.bf16.mxu0 0
        %2851 = vmatpush1.bf16.msra.mxu0 %v2278
        %2852 = vmatprep.subr.bf16.mxu0 0
        %2853 = vmatpush1.bf16.msra.mxu0 0
        %2854 = vmatprep.subr.bf16.mxu0 0
        %2855 = vmatpush1.bf16.msra.mxu0 0
        %2856 = vmatprep.subr.bf16.mxu0 0
        %2857 = vmatpush1.bf16.msra.mxu0 0
        %2858 = vmatprep.subr.bf16.mxu0 0
        %2859 = vmatpush1.bf16.msra.mxu0 0
        %2860 = vmatprep.subr.bf16.mxu0 0
        %2861 = vmatpush1.bf16.msra.mxu0 0
        %2862 = vmatprep.subr.bf16.mxu0 0
        %2863 = vmatpush1.bf16.msra.mxu0 0
        %2864 = vmatprep.subr.bf16.mxu0 0
        %2865 = vmatpush1.bf16.msra.mxu0 0
        %2866 = vmatprep.subr.bf16.mxu0 0
        %2867 = vmatpush1.bf16.msra.mxu0 0
        %2868 = vmatprep.subr.bf16.mxu0 0
        %2869 = vmatpush1.bf16.msra.mxu0 0
        %2870 = vmatprep.subr.bf16.mxu0 0
        %2871 = vmatpush1.bf16.msra.mxu0 0
        %2872 = vmatprep.subr.bf16.mxu0 0
        %2873 = vmatpush1.bf16.msra.mxu0 0
        %2874 = vmatprep.subr.bf16.mxu0 0
        %2875 = vmatpush1.bf16.msra.mxu0 0
        %2876 = vmatprep.subr.bf16.mxu0 0
        %2877 = vmatpush1.bf16.msra.mxu0 0
        %2878 = vmatprep.subr.bf16.mxu0 0
        %2879 = vmatpush1.bf16.msra.mxu0 0
        %2880 = vmatprep.subr.bf16.mxu0 0
        %2881 = vmatpush1.bf16.msra.mxu0 0
        %2882 = vmatprep.mubr.bf16.mxu0 0
        %2883 = vmatmul.mubr.bf16.gmra.mrb[0].mxu0 %v2848
        %v2884 = vpop.f32.mrb[0].mxu0
        %v2885 = vadd.f32 0.0, %v2884
        %v2886 = vpop.f32.mrb[0].mxu0
        %v2887 = vpop.f32.mrb[0].mxu0
        %v2888 = vadd.f32 0.0, %v2887
        %v2889 = vpop.f32.mrb[0].mxu0
        %2890 = vdwg.mxu0
        %v2892 = vsel %vm2286, %v2840, 0
        %2894 = vmatprep.subr.bf16.mxu0 0
        %2895 = vmatpush1.bf16.msra.mxu0 %v2279
        %2896 = vmatprep.subr.bf16.mxu0 0
        %2897 = vmatpush1.bf16.msra.mxu0 0
        %2898 = vmatprep.subr.bf16.mxu0 0
        %2899 = vmatpush1.bf16.msra.mxu0 0
        %2900 = vmatprep.subr.bf16.mxu0 0
        %2901 = vmatpush1.bf16.msra.mxu0 0
        %2902 = vmatprep.subr.bf16.mxu0 0
        %2903 = vmatpush1.bf16.msra.mxu0 0
        %2904 = vmatprep.subr.bf16.mxu0 0
        %2905 = vmatpush1.bf16.msra.mxu0 0
        %2906 = vmatprep.subr.bf16.mxu0 0
        %2907 = vmatpush1.bf16.msra.mxu0 0
        %2908 = vmatprep.subr.bf16.mxu0 0
        %2909 = vmatpush1.bf16.msra.mxu0 0
        %2910 = vmatprep.subr.bf16.mxu0 0
        %2911 = vmatpush1.bf16.msra.mxu0 0
        %2912 = vmatprep.subr.bf16.mxu0 0
        %2913 = vmatpush1.bf16.msra.mxu0 0
        %2914 = vmatprep.subr.bf16.mxu0 0
        %2915 = vmatpush1.bf16.msra.mxu0 0
        %2916 = vmatprep.subr.bf16.mxu0 0
        %2917 = vmatpush1.bf16.msra.mxu0 0
        %2918 = vmatprep.subr.bf16.mxu0 0
        %2919 = vmatpush1.bf16.msra.mxu0 0
        %2920 = vmatprep.subr.bf16.mxu0 0
        %2921 = vmatpush1.bf16.msra.mxu0 0
        %2922 = vmatprep.subr.bf16.mxu0 0
        %2923 = vmatpush1.bf16.msra.mxu0 0
        %2924 = vmatprep.subr.bf16.mxu0 0
        %2925 = vmatpush1.bf16.msra.mxu0 0
        %2926 = vmatprep.mubr.bf16.mxu0 0
        %2927 = vmatmul.mubr.bf16.gmra.mrb[0].mxu0 %v2892
        %v2928 = vpop.f32.mrb[0].mxu0
        %v2929 = vadd.f32 0.0, %v2928
        %v2930 = vpop.f32.mrb[0].mxu0
        %v2931 = vpop.f32.mrb[0].mxu0
        %v2932 = vadd.f32 0.0, %v2931
        %v2933 = vpop.f32.mrb[0].mxu0
        %2934 = vdwg.mxu0
        %v2936 = vsel %vm2286, %v2841, 0
        %2938 = vmatprep.subr.bf16.mxu0 0
        %2939 = vmatpush1.bf16.msra.mxu0 %v2280
        %2940 = vmatprep.subr.bf16.mxu0 0
        %2941 = vmatpush1.bf16.msra.mxu0 0
        %2942 = vmatprep.subr.bf16.mxu0 0
        %2943 = vmatpush1.bf16.msra.mxu0 0
        %2944 = vmatprep.subr.bf16.mxu0 0
        %2945 = vmatpush1.bf16.msra.mxu0 0
        %2946 = vmatprep.subr.bf16.mxu0 0
        %2947 = vmatpush1.bf16.msra.mxu0 0
        %2948 = vmatprep.subr.bf16.mxu0 0
        %2949 = vmatpush1.bf16.msra.mxu0 0
        %2950 = vmatprep.subr.bf16.mxu0 0
        %2951 = vmatpush1.bf16.msra.mxu0 0
        %2952 = vmatprep.subr.bf16.mxu0 0
        %2953 = vmatpush1.bf16.msra.mxu0 0
        %2954 = vmatprep.subr.bf16.mxu0 0
        %2955 = vmatpush1.bf16.msra.mxu0 0
        %2956 = vmatprep.subr.bf16.mxu0 0
        %2957 = vmatpush1.bf16.msra.mxu0 0
        %2958 = vmatprep.subr.bf16.mxu0 0
        %2959 = vmatpush1.bf16.msra.mxu0 0
        %2960 = vmatprep.subr.bf16.mxu0 0
        %2961 = vmatpush1.bf16.msra.mxu0 0
        %2962 = vmatprep.subr.bf16.mxu0 0
        %2963 = vmatpush1.bf16.msra.mxu0 0
        %2964 = vmatprep.subr.bf16.mxu0 0
        %2965 = vmatpush1.bf16.msra.mxu0 0
        %2966 = vmatprep.subr.bf16.mxu0 0
        %2967 = vmatpush1.bf16.msra.mxu0 0
        %2968 = vmatprep.subr.bf16.mxu0 0
        %2969 = vmatpush1.bf16.msra.mxu0 0
        %2970 = vmatprep.mubr.bf16.mxu0 0
        %2971 = vmatmul.mubr.bf16.gmra.mrb[0].mxu0 %v2936
        %v2972 = vpop.f32.mrb[0].mxu0
        %v2973 = vadd.f32 0.0, %v2972
        %v2974 = vpop.f32.mrb[0].mxu0
        %v2975 = vpop.f32.mrb[0].mxu0
        %v2976 = vadd.f32 0.0, %v2975
        %v2977 = vpop.f32.mrb[0].mxu0
        %2978 = vdwg.mxu0
        %v2980 = vsel %vm2286, %v2842, 0
        %2982 = vmatprep.subr.bf16.mxu0 0
        %2983 = vmatpush1.bf16.msra.mxu0 %v2281
        %2984 = vmatprep.subr.bf16.mxu0 0
        %2985 = vmatpush1.bf16.msra.mxu0 0
        %2986 = vmatprep.subr.bf16.mxu0 0
        %2987 = vmatpush1.bf16.msra.mxu0 0
        %2988 = vmatprep.subr.bf16.mxu0 0
        %2989 = vmatpush1.bf16.msra.mxu0 0
        %2990 = vmatprep.subr.bf16.mxu0 0
        %2991 = vmatpush1.bf16.msra.mxu0 0
        %2992 = vmatprep.subr.bf16.mxu0 0
        %2993 = vmatpush1.bf16.msra.mxu0 0
        %2994 = vmatprep.subr.bf16.mxu0 0
        %2995 = vmatpush1.bf16.msra.mxu0 0
        %2996 = vmatprep.subr.bf16.mxu0 0
        %2997 = vmatpush1.bf16.msra.mxu0 0
        %2998 = vmatprep.subr.bf16.mxu0 0
        %2999 = vmatpush1.bf16.msra.mxu0 0
        %3000 = vmatprep.subr.bf16.mxu0 0
        %3001 = vmatpush1.bf16.msra.mxu0 0
        %3002 = vmatprep.subr.bf16.mxu0 0
        %3003 = vmatpush1.bf16.msra.mxu0 0
        %3004 = vmatprep.subr.bf16.mxu0 0
        %3005 = vmatpush1.bf16.msra.mxu0 0
        %3006 = vmatprep.subr.bf16.mxu0 0
        %3007 = vmatpush1.bf16.msra.mxu0 0
        %3008 = vmatprep.subr.bf16.mxu0 0
        %3009 = vmatpush1.bf16.msra.mxu0 0
        %3010 = vmatprep.subr.bf16.mxu0 0
        %3011 = vmatpush1.bf16.msra.mxu0 0
        %3012 = vmatprep.subr.bf16.mxu0 0
        %3013 = vmatpush1.bf16.msra.mxu0 0
        %3014 = vmatprep.mubr.bf16.mxu0 0
        %3015 = vmatmul.mubr.bf16.gmra.mrb[0].mxu0 %v2980
        %v3016 = vpop.f32.mrb[0].mxu0
        %v3017 = vadd.f32 0.0, %v3016
        %v3018 = vpop.f32.mrb[0].mxu0
        %v3019 = vpop.f32.mrb[0].mxu0
        %v3020 = vadd.f32 0.0, %v3019
        %v3021 = vpop.f32.mrb[0].mxu0
        %3022 = vdwg.mxu0
        %v3024 = vsel %vm2286, %v2843, 0
        %3026 = vmatprep.subr.bf16.mxu0 0
        %3027 = vmatpush1.bf16.msra.mxu0 %v2282
        %3028 = vmatprep.subr.bf16.mxu0 0
        %3029 = vmatpush1.bf16.msra.mxu0 0
        %3030 = vmatprep.subr.bf16.mxu0 0
        %3031 = vmatpush1.bf16.msra.mxu0 0
        %3032 = vmatprep.subr.bf16.mxu0 0
        %3033 = vmatpush1.bf16.msra.mxu0 0
        %3034 = vmatprep.subr.bf16.mxu0 0
        %3035 = vmatpush1.bf16.msra.mxu0 0
        %3036 = vmatprep.subr.bf16.mxu0 0
        %3037 = vmatpush1.bf16.msra.mxu0 0
        %3038 = vmatprep.subr.bf16.mxu0 0
        %3039 = vmatpush1.bf16.msra.mxu0 0
        %3040 = vmatprep.subr.bf16.mxu0 0
        %3041 = vmatpush1.bf16.msra.mxu0 0
        %3042 = vmatprep.subr.bf16.mxu0 0
        %3043 = vmatpush1.bf16.msra.mxu0 0
        %3044 = vmatprep.subr.bf16.mxu0 0
        %3045 = vmatpush1.bf16.msra.mxu0 0
        %3046 = vmatprep.subr.bf16.mxu0 0
        %3047 = vmatpush1.bf16.msra.mxu0 0
        %3048 = vmatprep.subr.bf16.mxu0 0
        %3049 = vmatpush1.bf16.msra.mxu0 0
        %3050 = vmatprep.subr.bf16.mxu0 0
        %3051 = vmatpush1.bf16.msra.mxu0 0
        %3052 = vmatprep.subr.bf16.mxu0 0
        %3053 = vmatpush1.bf16.msra.mxu0 0
        %3054 = vmatprep.subr.bf16.mxu0 0
        %3055 = vmatpush1.bf16.msra.mxu0 0
        %3056 = vmatprep.subr.bf16.mxu0 0
        %3057 = vmatpush1.bf16.msra.mxu0 0
        %3058 = vmatprep.mubr.bf16.mxu0 0
        %3059 = vmatmul.mubr.bf16.gmra.mrb[0].mxu0 %v3024
        %v3060 = vpop.f32.mrb[0].mxu0
        %v3061 = vadd.f32 0.0, %v3060
        %v3062 = vpop.f32.mrb[0].mxu0
        %v3063 = vpop.f32.mrb[0].mxu0
        %v3064 = vadd.f32 0.0, %v3063
        %v3065 = vpop.f32.mrb[0].mxu0
        %3066 = vdwg.mxu0
        %v3068 = vsel %vm2286, %v2844, 0
        %3070 = vmatprep.subr.bf16.mxu0 0
        %3071 = vmatpush1.bf16.msra.mxu0 %v2283
        %3072 = vmatprep.subr.bf16.mxu0 0
        %3073 = vmatpush1.bf16.msra.mxu0 0
        %3074 = vmatprep.subr.bf16.mxu0 0
        %3075 = vmatpush1.bf16.msra.mxu0 0
        %3076 = vmatprep.subr.bf16.mxu0 0
        %3077 = vmatpush1.bf16.msra.mxu0 0
        %3078 = vmatprep.subr.bf16.mxu0 0
        %3079 = vmatpush1.bf16.msra.mxu0 0
        %3080 = vmatprep.subr.bf16.mxu0 0
        %3081 = vmatpush1.bf16.msra.mxu0 0
        %3082 = vmatprep.subr.bf16.mxu0 0
        %3083 = vmatpush1.bf16.msra.mxu0 0
        %3084 = vmatprep.subr.bf16.mxu0 0
        %3085 = vmatpush1.bf16.msra.mxu0 0
        %3086 = vmatprep.subr.bf16.mxu0 0
        %3087 = vmatpush1.bf16.msra.mxu0 0
        %3088 = vmatprep.subr.bf16.mxu0 0
        %3089 = vmatpush1.bf16.msra.mxu0 0
        %3090 = vmatprep.subr.bf16.mxu0 0
        %3091 = vmatpush1.bf16.msra.mxu0 0
        %3092 = vmatprep.subr.bf16.mxu0 0
        %3093 = vmatpush1.bf16.msra.mxu0 0
        %3094 = vmatprep.subr.bf16.mxu0 0
        %3095 = vmatpush1.bf16.msra.mxu0 0
        %3096 = vmatprep.subr.bf16.mxu0 0
        %3097 = vmatpush1.bf16.msra.mxu0 0
        %3098 = vmatprep.subr.bf16.mxu0 0
        %3099 = vmatpush1.bf16.msra.mxu0 0
        %3100 = vmatprep.subr.bf16.mxu0 0
        %3101 = vmatpush1.bf16.msra.mxu0 0
        %3102 = vmatprep.mubr.bf16.mxu0 0
        %3103 = vmatmul.mubr.bf16.gmra.mrb[0].mxu0 %v3068
        %v3104 = vpop.f32.mrb[0].mxu0
        %v3105 = vadd.f32 0.0, %v3104
        %v3106 = vpop.f32.mrb[0].mxu0
        %v3107 = vpop.f32.mrb[0].mxu0
        %v3108 = vadd.f32 0.0, %v3107
        %v3109 = vpop.f32.mrb[0].mxu0
        %3110 = vdwg.mxu0
        %v3112 = vsel %vm2286, %v2845, 0
        %3114 = vmatprep.subr.bf16.mxu0 0
        %3115 = vmatpush1.bf16.msra.mxu0 %v2284
        %3116 = vmatprep.subr.bf16.mxu0 0
        %3117 = vmatpush1.bf16.msra.mxu0 0
        %3118 = vmatprep.subr.bf16.mxu0 0
        %3119 = vmatpush1.bf16.msra.mxu0 0
        %3120 = vmatprep.subr.bf16.mxu0 0
        %3121 = vmatpush1.bf16.msra.mxu0 0
        %3122 = vmatprep.subr.bf16.mxu0 0
        %3123 = vmatpush1.bf16.msra.mxu0 0
        %3124 = vmatprep.subr.bf16.mxu0 0
        %3125 = vmatpush1.bf16.msra.mxu0 0
        %3126 = vmatprep.subr.bf16.mxu0 0
        %3127 = vmatpush1.bf16.msra.mxu0 0
        %3128 = vmatprep.subr.bf16.mxu0 0
        %3129 = vmatpush1.bf16.msra.mxu0 0
        %3130 = vmatprep.subr.bf16.mxu0 0
        %3131 = vmatpush1.bf16.msra.mxu0 0
        %3132 = vmatprep.subr.bf16.mxu0 0
        %3133 = vmatpush1.bf16.msra.mxu0 0
        %3134 = vmatprep.subr.bf16.mxu0 0
        %3135 = vmatpush1.bf16.msra.mxu0 0
        %3136 = vmatprep.subr.bf16.mxu0 0
        %3137 = vmatpush1.bf16.msra.mxu0 0
        %3138 = vmatprep.subr.bf16.mxu0 0
        %3139 = vmatpush1.bf16.msra.mxu0 0
        %3140 = vmatprep.subr.bf16.mxu0 0
        %3141 = vmatpush1.bf16.msra.mxu0 0
        %3142 = vmatprep.subr.bf16.mxu0 0
        %3143 = vmatpush1.bf16.msra.mxu0 0
        %3144 = vmatprep.subr.bf16.mxu0 0
        %3145 = vmatpush1.bf16.msra.mxu0 0
        %3146 = vmatprep.mubr.bf16.mxu0 0
        %3147 = vmatmul.mubr.bf16.gmra.mrb[0].mxu0 %v3112
        %v3148 = vpop.f32.mrb[0].mxu0
        %v3149 = vadd.f32 0.0, %v3148
        %v3150 = vpop.f32.mrb[0].mxu0
        %v3151 = vpop.f32.mrb[0].mxu0
        %v3152 = vadd.f32 0.0, %v3151
        %v3153 = vpop.f32.mrb[0].mxu0
        %3154 = vdwg.mxu0
        %v3156 = vsel %vm2286, %v2846, 0
        %3158 = vmatprep.subr.bf16.mxu0 0
        %3159 = vmatpush1.bf16.msra.mxu0 %v2285
        %3160 = vmatprep.subr.bf16.mxu0 0
        %3161 = vmatpush1.bf16.msra.mxu0 0
        %3162 = vmatprep.subr.bf16.mxu0 0
        %3163 = vmatpush1.bf16.msra.mxu0 0
        %3164 = vmatprep.subr.bf16.mxu0 0
        %3165 = vmatpush1.bf16.msra.mxu0 0
        %3166 = vmatprep.subr.bf16.mxu0 0
        %3167 = vmatpush1.bf16.msra.mxu0 0
        %3168 = vmatprep.subr.bf16.mxu0 0
        %3169 = vmatpush1.bf16.msra.mxu0 0
        %3170 = vmatprep.subr.bf16.mxu0 0
        %3171 = vmatpush1.bf16.msra.mxu0 0
        %3172 = vmatprep.subr.bf16.mxu0 0
        %3173 = vmatpush1.bf16.msra.mxu0 0
        %3174 = vmatprep.subr.bf16.mxu0 0
        %3175 = vmatpush1.bf16.msra.mxu0 0
        %3176 = vmatprep.subr.bf16.mxu0 0
        %3177 = vmatpush1.bf16.msra.mxu0 0
        %3178 = vmatprep.subr.bf16.mxu0 0
        %3179 = vmatpush1.bf16.msra.mxu0 0
        %3180 = vmatprep.subr.bf16.mxu0 0
        %3181 = vmatpush1.bf16.msra.mxu0 0
        %3182 = vmatprep.subr.bf16.mxu0 0
        %3183 = vmatpush1.bf16.msra.mxu0 0
        %3184 = vmatprep.subr.bf16.mxu0 0
        %3185 = vmatpush1.bf16.msra.mxu0 0
        %3186 = vmatprep.subr.bf16.mxu0 0
        %3187 = vmatpush1.bf16.msra.mxu0 0
        %3188 = vmatprep.subr.bf16.mxu0 0
        %3189 = vmatpush1.bf16.msra.mxu0 0
        %3190 = vmatprep.mubr.bf16.mxu0 0
        %3191 = vmatmul.mubr.bf16.gmra.mrb[0].mxu0 %v3156
        %v3192 = vpop.f32.mrb[0].mxu0
        %v3193 = vadd.f32 0.0, %v3192
        %v3194 = vpop.f32.mrb[0].mxu0
        %v3195 = vpop.f32.mrb[0].mxu0
        %v3196 = vadd.f32 0.0, %v3195
        %v3197 = vpop.f32.mrb[0].mxu0
        %3198 = vdwg.mxu0
        %v3199 = vcombine.low %v2885, %v2973
        %v3200 = vcombine.high %v2885, %v2973
        %v3202 = vunpack.c.l.s4 1983009808
        %v3203 = vunpack.c.0.s8 %v3202
        %v3204 = vlaneseq
        %v3205 = vshrl.u32 %v3204, 7
        %v3206 = vsub.s32 %v3203, %v3205
        %v3207 = vrot.slane %v3199, %v3206
        %v3209 = vunpack.c.l.s4 1983009808
        %v3210 = vunpack.c.0.s8 %v3209
        %v3211 = vlaneseq
        %v3212 = vshrl.u32 %v3211, 7
        %v3213 = vsub.s32 %v3210, %v3212
        %v3214 = vrot.slane %v3200, %v3213
        %v3215 = vcombine.low %v2929, %v3017
        %v3216 = vcombine.high %v2929, %v3017
        %v3218 = vunpack.c.l.s4 1983009808
        %v3219 = vunpack.c.0.s8 %v3218
        %v3220 = vlaneseq
        %v3221 = vshrl.u32 %v3220, 7
        %v3222 = vsub.s32 %v3219, %v3221
        %v3223 = vrot.slane %v3215, %v3222
        %v3225 = vunpack.c.l.s4 1983009808
        %v3226 = vunpack.c.0.s8 %v3225
        %v3227 = vlaneseq
        %v3228 = vshrl.u32 %v3227, 7
        %v3229 = vsub.s32 %v3226, %v3228
        %v3230 = vrot.slane %v3216, %v3229
        %v3231 = vcombine.low %v3061, %v3149
        %v3232 = vcombine.high %v3061, %v3149
        %v3234 = vunpack.c.l.s4 1983009808
        %v3235 = vunpack.c.0.s8 %v3234
        %v3236 = vlaneseq
        %v3237 = vshrl.u32 %v3236, 7
        %v3238 = vsub.s32 %v3235, %v3237
        %v3239 = vrot.slane %v3231, %v3238
        %v3241 = vunpack.c.l.s4 1983009808
        %v3242 = vunpack.c.0.s8 %v3241
        %v3243 = vlaneseq
        %v3244 = vshrl.u32 %v3243, 7
        %v3245 = vsub.s32 %v3242, %v3244
        %v3246 = vrot.slane %v3232, %v3245
        %v3247 = vcombine.low %v3105, %v3193
        %v3248 = vcombine.high %v3105, %v3193
        %v3250 = vunpack.c.l.s4 1983009808
        %v3251 = vunpack.c.0.s8 %v3250
        %v3252 = vlaneseq
        %v3253 = vshrl.u32 %v3252, 7
        %v3254 = vsub.s32 %v3251, %v3253
        %v3255 = vrot.slane %v3247, %v3254
        %v3257 = vunpack.c.l.s4 1983009808
        %v3258 = vunpack.c.0.s8 %v3257
        %v3259 = vlaneseq
        %v3260 = vshrl.u32 %v3259, 7
        %v3261 = vsub.s32 %v3258, %v3260
        %v3262 = vrot.slane %v3248, %v3261
        %v3263 = vcombine.low %v3207, %v3223
        %v3264 = vcombine.high %v3207, %v3223
        %v3266 = vunpack.c.l.s4 1934713408
        %v3267 = vunpack.c.0.s8 %v3266
        %v3268 = vlaneseq
        %v3269 = vshrl.u32 %v3268, 7
        %v3270 = vsub.s32 %v3267, %v3269
        %v3271 = vrot.slane %v3263, %v3270
        %v3273 = vunpack.c.l.s4 1934713408
        %v3274 = vunpack.c.0.s8 %v3273
        %v3275 = vlaneseq
        %v3276 = vshrl.u32 %v3275, 7
        %v3277 = vsub.s32 %v3274, %v3276
        %v3278 = vrot.slane %v3264, %v3277
        %v3279 = vcombine.low %v3214, %v3230
        %v3280 = vcombine.high %v3214, %v3230
        %v3282 = vunpack.c.l.s4 1934713408
        %v3283 = vunpack.c.0.s8 %v3282
        %v3284 = vlaneseq
        %v3285 = vshrl.u32 %v3284, 7
        %v3286 = vsub.s32 %v3283, %v3285
        %v3287 = vrot.slane %v3279, %v3286
        %v3289 = vunpack.c.l.s4 1934713408
        %v3290 = vunpack.c.0.s8 %v3289
        %v3291 = vlaneseq
        %v3292 = vshrl.u32 %v3291, 7
        %v3293 = vsub.s32 %v3290, %v3292
        %v3294 = vrot.slane %v3280, %v3293
        %v3295 = vcombine.low %v3239, %v3255
        %v3296 = vcombine.high %v3239, %v3255
        %v3298 = vunpack.c.l.s4 1934713408
        %v3299 = vunpack.c.0.s8 %v3298
        %v3300 = vlaneseq
        %v3301 = vshrl.u32 %v3300, 7
        %v3302 = vsub.s32 %v3299, %v3301
        %v3303 = vrot.slane %v3295, %v3302
        %v3305 = vunpack.c.l.s4 1934713408
        %v3306 = vunpack.c.0.s8 %v3305
        %v3307 = vlaneseq
        %v3308 = vshrl.u32 %v3307, 7
        %v3309 = vsub.s32 %v3306, %v3308
        %v3310 = vrot.slane %v3296, %v3309
        %v3311 = vcombine.low %v3246, %v3262
        %v3312 = vcombine.high %v3246, %v3262
        %v3314 = vunpack.c.l.s4 1934713408
        %v3315 = vunpack.c.0.s8 %v3314
        %v3316 = vlaneseq
        %v3317 = vshrl.u32 %v3316, 7
        %v3318 = vsub.s32 %v3315, %v3317
        %v3319 = vrot.slane %v3311, %v3318
        %v3321 = vunpack.c.l.s4 1934713408
        %v3322 = vunpack.c.0.s8 %v3321
        %v3323 = vlaneseq
        %v3324 = vshrl.u32 %v3323, 7
        %v3325 = vsub.s32 %v3322, %v3324
        %v3326 = vrot.slane %v3312, %v3325
        %v3327 = vcombine.low %v3271, %v3303
        %v3328 = vcombine.high %v3271, %v3303
        %v3329 = vcombine.low %v3278, %v3310
        %v3330 = vcombine.high %v3278, %v3310
        %v3331 = vcombine.low %v3287, %v3319
        %v3332 = vcombine.high %v3287, %v3319
        %v3333 = vcombine.low %v3294, %v3326
        %v3334 = vcombine.high %v3294, %v3326
        %v3335 = vcombine.low %v2888, %v2976
        %v3336 = vcombine.high %v2888, %v2976
        %v3338 = vunpack.c.l.s4 1983009808
        %v3339 = vunpack.c.0.s8 %v3338
        %v3340 = vlaneseq
        %v3341 = vshrl.u32 %v3340, 7
        %v3342 = vsub.s32 %v3339, %v3341
        %v3343 = vrot.slane %v3335, %v3342
        %v3345 = vunpack.c.l.s4 1983009808
        %v3346 = vunpack.c.0.s8 %v3345
        %v3347 = vlaneseq
        %v3348 = vshrl.u32 %v3347, 7
        %v3349 = vsub.s32 %v3346, %v3348
        %v3350 = vrot.slane %v3336, %v3349
        %v3351 = vcombine.low %v2932, %v3020
        %v3352 = vcombine.high %v2932, %v3020
        %v3354 = vunpack.c.l.s4 1983009808
        %v3355 = vunpack.c.0.s8 %v3354
        %v3356 = vlaneseq
        %v3357 = vshrl.u32 %v3356, 7
        %v3358 = vsub.s32 %v3355, %v3357
        %v3359 = vrot.slane %v3351, %v3358
        %v3361 = vunpack.c.l.s4 1983009808
        %v3362 = vunpack.c.0.s8 %v3361
        %v3363 = vlaneseq
        %v3364 = vshrl.u32 %v3363, 7
        %v3365 = vsub.s32 %v3362, %v3364
        %v3366 = vrot.slane %v3352, %v3365
        %v3367 = vcombine.low %v3064, %v3152
        %v3368 = vcombine.high %v3064, %v3152
        %v3370 = vunpack.c.l.s4 1983009808
        %v3371 = vunpack.c.0.s8 %v3370
        %v3372 = vlaneseq
        %v3373 = vshrl.u32 %v3372, 7
        %v3374 = vsub.s32 %v3371, %v3373
        %v3375 = vrot.slane %v3367, %v3374
        %v3377 = vunpack.c.l.s4 1983009808
        %v3378 = vunpack.c.0.s8 %v3377
        %v3379 = vlaneseq
        %v3380 = vshrl.u32 %v3379, 7
        %v3381 = vsub.s32 %v3378, %v3380
        %v3382 = vrot.slane %v3368, %v3381
        %v3383 = vcombine.low %v3108, %v3196
        %v3384 = vcombine.high %v3108, %v3196
        %v3386 = vunpack.c.l.s4 1983009808
        %v3387 = vunpack.c.0.s8 %v3386
        %v3388 = vlaneseq
        %v3389 = vshrl.u32 %v3388, 7
        %v3390 = vsub.s32 %v3387, %v3389
        %v3391 = vrot.slane %v3383, %v3390
        %v3393 = vunpack.c.l.s4 1983009808
        %v3394 = vunpack.c.0.s8 %v3393
        %v3395 = vlaneseq
        %v3396 = vshrl.u32 %v3395, 7
        %v3397 = vsub.s32 %v3394, %v3396
        %v3398 = vrot.slane %v3384, %v3397
        %v3399 = vcombine.low %v3343, %v3359
        %v3400 = vcombine.high %v3343, %v3359
        %v3402 = vunpack.c.l.s4 1934713408
        %v3403 = vunpack.c.0.s8 %v3402
        %v3404 = vlaneseq
        %v3405 = vshrl.u32 %v3404, 7
        %v3406 = vsub.s32 %v3403, %v3405
        %v3407 = vrot.slane %v3399, %v3406
        %v3409 = vunpack.c.l.s4 1934713408
        %v3410 = vunpack.c.0.s8 %v3409
        %v3411 = vlaneseq
        %v3412 = vshrl.u32 %v3411, 7
        %v3413 = vsub.s32 %v3410, %v3412
        %v3414 = vrot.slane %v3400, %v3413
        %v3415 = vcombine.low %v3350, %v3366
        %v3416 = vcombine.high %v3350, %v3366
        %v3418 = vunpack.c.l.s4 1934713408
        %v3419 = vunpack.c.0.s8 %v3418
        %v3420 = vlaneseq
        %v3421 = vshrl.u32 %v3420, 7
        %v3422 = vsub.s32 %v3419, %v3421
        %v3423 = vrot.slane %v3415, %v3422
        %v3425 = vunpack.c.l.s4 1934713408
        %v3426 = vunpack.c.0.s8 %v3425
        %v3427 = vlaneseq
        %v3428 = vshrl.u32 %v3427, 7
        %v3429 = vsub.s32 %v3426, %v3428
        %v3430 = vrot.slane %v3416, %v3429
        %v3431 = vcombine.low %v3375, %v3391
        %v3432 = vcombine.high %v3375, %v3391
        %v3434 = vunpack.c.l.s4 1934713408
        %v3435 = vunpack.c.0.s8 %v3434
        %v3436 = vlaneseq
        %v3437 = vshrl.u32 %v3436, 7
        %v3438 = vsub.s32 %v3435, %v3437
        %v3439 = vrot.slane %v3431, %v3438
        %v3441 = vunpack.c.l.s4 1934713408
        %v3442 = vunpack.c.0.s8 %v3441
        %v3443 = vlaneseq
        %v3444 = vshrl.u32 %v3443, 7
        %v3445 = vsub.s32 %v3442, %v3444
        %v3446 = vrot.slane %v3432, %v3445
        %v3447 = vcombine.low %v3382, %v3398
        %v3448 = vcombine.high %v3382, %v3398
        %v3450 = vunpack.c.l.s4 1934713408
        %v3451 = vunpack.c.0.s8 %v3450
        %v3452 = vlaneseq
        %v3453 = vshrl.u32 %v3452, 7
        %v3454 = vsub.s32 %v3451, %v3453
        %v3455 = vrot.slane %v3447, %v3454
        %v3457 = vunpack.c.l.s4 1934713408
        %v3458 = vunpack.c.0.s8 %v3457
        %v3459 = vlaneseq
        %v3460 = vshrl.u32 %v3459, 7
        %v3461 = vsub.s32 %v3458, %v3460
        %v3462 = vrot.slane %v3448, %v3461
        %v3463 = vcombine.low %v3407, %v3439
        %v3464 = vcombine.high %v3407, %v3439
        %v3465 = vcombine.low %v3414, %v3446
        %v3466 = vcombine.high %v3414, %v3446
        %v3467 = vcombine.low %v3423, %v3455
        %v3468 = vcombine.high %v3423, %v3455
        %v3469 = vcombine.low %v3430, %v3462
        %v3470 = vcombine.high %v3430, %v3462
        %v3471 = vcombine.low %v3327, %v3329
        %v3472 = vcombine.high %v3327, %v3329
        %v3474 = vunpack.c.l.s4 1983009808
        %v3475 = vunpack.c.0.s8 %v3474
        %v3476 = vlaneseq
        %v3477 = vshrl.u32 %v3476, 7
        %v3478 = vsub.s32 %v3475, %v3477
        %v3479 = vrot.slane %v3471, %v3478
        %v3481 = vunpack.c.l.s4 1983009808
        %v3482 = vunpack.c.0.s8 %v3481
        %v3483 = vlaneseq
        %v3484 = vshrl.u32 %v3483, 7
        %v3485 = vsub.s32 %v3482, %v3484
        %v3486 = vrot.slane %v3472, %v3485
        %v3487 = vcombine.low %v3328, %v3330
        %v3488 = vcombine.high %v3328, %v3330
        %v3490 = vunpack.c.l.s4 1983009808
        %v3491 = vunpack.c.0.s8 %v3490
        %v3492 = vlaneseq
        %v3493 = vshrl.u32 %v3492, 7
        %v3494 = vsub.s32 %v3491, %v3493
        %v3495 = vrot.slane %v3487, %v3494
        %v3497 = vunpack.c.l.s4 1983009808
        %v3498 = vunpack.c.0.s8 %v3497
        %v3499 = vlaneseq
        %v3500 = vshrl.u32 %v3499, 7
        %v3501 = vsub.s32 %v3498, %v3500
        %v3502 = vrot.slane %v3488, %v3501
        %v3503 = vcombine.low %v3331, %v3333
        %v3504 = vcombine.high %v3331, %v3333
        %v3506 = vunpack.c.l.s4 1983009808
        %v3507 = vunpack.c.0.s8 %v3506
        %v3508 = vlaneseq
        %v3509 = vshrl.u32 %v3508, 7
        %v3510 = vsub.s32 %v3507, %v3509
        %v3511 = vrot.slane %v3503, %v3510
        %v3513 = vunpack.c.l.s4 1983009808
        %v3514 = vunpack.c.0.s8 %v3513
        %v3515 = vlaneseq
        %v3516 = vshrl.u32 %v3515, 7
        %v3517 = vsub.s32 %v3514, %v3516
        %v3518 = vrot.slane %v3504, %v3517
        %v3519 = vcombine.low %v3332, %v3334
        %v3520 = vcombine.high %v3332, %v3334
        %v3522 = vunpack.c.l.s4 1983009808
        %v3523 = vunpack.c.0.s8 %v3522
        %v3524 = vlaneseq
        %v3525 = vshrl.u32 %v3524, 7
        %v3526 = vsub.s32 %v3523, %v3525
        %v3527 = vrot.slane %v3519, %v3526
        %v3529 = vunpack.c.l.s4 1983009808
        %v3530 = vunpack.c.0.s8 %v3529
        %v3531 = vlaneseq
        %v3532 = vshrl.u32 %v3531, 7
        %v3533 = vsub.s32 %v3530, %v3532
        %v3534 = vrot.slane %v3520, %v3533
        %v3535 = vcombine.low %v3479, %v3495
        %v3536 = vcombine.high %v3479, %v3495
        %v3538 = vunpack.c.l.s4 1934713408
        %v3539 = vunpack.c.0.s8 %v3538
        %v3540 = vlaneseq
        %v3541 = vshrl.u32 %v3540, 7
        %v3542 = vsub.s32 %v3539, %v3541
        %v3543 = vrot.slane %v3535, %v3542
        %v3545 = vunpack.c.l.s4 1934713408
        %v3546 = vunpack.c.0.s8 %v3545
        %v3547 = vlaneseq
        %v3548 = vshrl.u32 %v3547, 7
        %v3549 = vsub.s32 %v3546, %v3548
        %v3550 = vrot.slane %v3536, %v3549
        %v3551 = vcombine.low %v3486, %v3502
        %v3552 = vcombine.high %v3486, %v3502
        %v3554 = vunpack.c.l.s4 1934713408
        %v3555 = vunpack.c.0.s8 %v3554
        %v3556 = vlaneseq
        %v3557 = vshrl.u32 %v3556, 7
        %v3558 = vsub.s32 %v3555, %v3557
        %v3559 = vrot.slane %v3551, %v3558
        %v3561 = vunpack.c.l.s4 1934713408
        %v3562 = vunpack.c.0.s8 %v3561
        %v3563 = vlaneseq
        %v3564 = vshrl.u32 %v3563, 7
        %v3565 = vsub.s32 %v3562, %v3564
        %v3566 = vrot.slane %v3552, %v3565
        %v3567 = vcombine.low %v3511, %v3527
        %v3568 = vcombine.high %v3511, %v3527
        %v3570 = vunpack.c.l.s4 1934713408
        %v3571 = vunpack.c.0.s8 %v3570
        %v3572 = vlaneseq
        %v3573 = vshrl.u32 %v3572, 7
        %v3574 = vsub.s32 %v3571, %v3573
        %v3575 = vrot.slane %v3567, %v3574
        %v3577 = vunpack.c.l.s4 1934713408
        %v3578 = vunpack.c.0.s8 %v3577
        %v3579 = vlaneseq
        %v3580 = vshrl.u32 %v3579, 7
        %v3581 = vsub.s32 %v3578, %v3580
        %v3582 = vrot.slane %v3568, %v3581
        %v3583 = vcombine.low %v3518, %v3534
        %v3584 = vcombine.high %v3518, %v3534
        %v3586 = vunpack.c.l.s4 1934713408
        %v3587 = vunpack.c.0.s8 %v3586
        %v3588 = vlaneseq
        %v3589 = vshrl.u32 %v3588, 7
        %v3590 = vsub.s32 %v3587, %v3589
        %v3591 = vrot.slane %v3583, %v3590
        %v3593 = vunpack.c.l.s4 1934713408
        %v3594 = vunpack.c.0.s8 %v3593
        %v3595 = vlaneseq
        %v3596 = vshrl.u32 %v3595, 7
        %v3597 = vsub.s32 %v3594, %v3596
        %v3598 = vrot.slane %v3584, %v3597
        %v3599 = vcombine.low %v3543, %v3575
        %v3600 = vcombine.high %v3543, %v3575
        %v3601 = vcombine.low %v3550, %v3582
        %v3602 = vcombine.high %v3550, %v3582
        %v3603 = vcombine.low %v3559, %v3591
        %v3604 = vcombine.high %v3559, %v3591
        %v3605 = vcombine.low %v3566, %v3598
        %v3606 = vcombine.high %v3566, %v3598
        %v3607 = vcombine.low %v3463, %v3465
        %v3608 = vcombine.high %v3463, %v3465
        %v3610 = vunpack.c.l.s4 1983009808
        %v3611 = vunpack.c.0.s8 %v3610
        %v3612 = vlaneseq
        %v3613 = vshrl.u32 %v3612, 7
        %v3614 = vsub.s32 %v3611, %v3613
        %v3615 = vrot.slane %v3607, %v3614
        %v3617 = vunpack.c.l.s4 1983009808
        %v3618 = vunpack.c.0.s8 %v3617
        %v3619 = vlaneseq
        %v3620 = vshrl.u32 %v3619, 7
        %v3621 = vsub.s32 %v3618, %v3620
        %v3622 = vrot.slane %v3608, %v3621
        %v3623 = vcombine.low %v3464, %v3466
        %v3624 = vcombine.high %v3464, %v3466
        %v3626 = vunpack.c.l.s4 1983009808
        %v3627 = vunpack.c.0.s8 %v3626
        %v3628 = vlaneseq
        %v3629 = vshrl.u32 %v3628, 7
        %v3630 = vsub.s32 %v3627, %v3629
        %v3631 = vrot.slane %v3623, %v3630
        %v3633 = vunpack.c.l.s4 1983009808
        %v3634 = vunpack.c.0.s8 %v3633
        %v3635 = vlaneseq
        %v3636 = vshrl.u32 %v3635, 7
        %v3637 = vsub.s32 %v3634, %v3636
        %v3638 = vrot.slane %v3624, %v3637
        %v3639 = vcombine.low %v3467, %v3469
        %v3640 = vcombine.high %v3467, %v3469
        %v3642 = vunpack.c.l.s4 1983009808
        %v3643 = vunpack.c.0.s8 %v3642
        %v3644 = vlaneseq
        %v3645 = vshrl.u32 %v3644, 7
        %v3646 = vsub.s32 %v3643, %v3645
        %v3647 = vrot.slane %v3639, %v3646
        %v3649 = vunpack.c.l.s4 1983009808
        %v3650 = vunpack.c.0.s8 %v3649
        %v3651 = vlaneseq
        %v3652 = vshrl.u32 %v3651, 7
        %v3653 = vsub.s32 %v3650, %v3652
        %v3654 = vrot.slane %v3640, %v3653
        %v3655 = vcombine.low %v3468, %v3470
        %v3656 = vcombine.high %v3468, %v3470
        %v3658 = vunpack.c.l.s4 1983009808
        %v3659 = vunpack.c.0.s8 %v3658
        %v3660 = vlaneseq
        %v3661 = vshrl.u32 %v3660, 7
        %v3662 = vsub.s32 %v3659, %v3661
        %v3663 = vrot.slane %v3655, %v3662
        %v3665 = vunpack.c.l.s4 1983009808
        %v3666 = vunpack.c.0.s8 %v3665
        %v3667 = vlaneseq
        %v3668 = vshrl.u32 %v3667, 7
        %v3669 = vsub.s32 %v3666, %v3668
        %v3670 = vrot.slane %v3656, %v3669
        %v3671 = vcombine.low %v3615, %v3631
        %v3672 = vcombine.high %v3615, %v3631
        %v3674 = vunpack.c.l.s4 1934713408
        %v3675 = vunpack.c.0.s8 %v3674
        %v3676 = vlaneseq
        %v3677 = vshrl.u32 %v3676, 7
        %v3678 = vsub.s32 %v3675, %v3677
        %v3679 = vrot.slane %v3671, %v3678
        %v3681 = vunpack.c.l.s4 1934713408
        %v3682 = vunpack.c.0.s8 %v3681
        %v3683 = vlaneseq
        %v3684 = vshrl.u32 %v3683, 7
        %v3685 = vsub.s32 %v3682, %v3684
        %v3686 = vrot.slane %v3672, %v3685
        %v3687 = vcombine.low %v3622, %v3638
        %v3688 = vcombine.high %v3622, %v3638
        %v3690 = vunpack.c.l.s4 1934713408
        %v3691 = vunpack.c.0.s8 %v3690
        %v3692 = vlaneseq
        %v3693 = vshrl.u32 %v3692, 7
        %v3694 = vsub.s32 %v3691, %v3693
        %v3695 = vrot.slane %v3687, %v3694
        %v3697 = vunpack.c.l.s4 1934713408
        %v3698 = vunpack.c.0.s8 %v3697
        %v3699 = vlaneseq
        %v3700 = vshrl.u32 %v3699, 7
        %v3701 = vsub.s32 %v3698, %v3700
        %v3702 = vrot.slane %v3688, %v3701
        %v3703 = vcombine.low %v3647, %v3663
        %v3704 = vcombine.high %v3647, %v3663
        %v3706 = vunpack.c.l.s4 1934713408
        %v3707 = vunpack.c.0.s8 %v3706
        %v3708 = vlaneseq
        %v3709 = vshrl.u32 %v3708, 7
        %v3710 = vsub.s32 %v3707, %v3709
        %v3711 = vrot.slane %v3703, %v3710
        %v3713 = vunpack.c.l.s4 1934713408
        %v3714 = vunpack.c.0.s8 %v3713
        %v3715 = vlaneseq
        %v3716 = vshrl.u32 %v3715, 7
        %v3717 = vsub.s32 %v3714, %v3716
        %v3718 = vrot.slane %v3704, %v3717
        %v3719 = vcombine.low %v3654, %v3670
        %v3720 = vcombine.high %v3654, %v3670
        %v3722 = vunpack.c.l.s4 1934713408
        %v3723 = vunpack.c.0.s8 %v3722
        %v3724 = vlaneseq
        %v3725 = vshrl.u32 %v3724, 7
        %v3726 = vsub.s32 %v3723, %v3725
        %v3727 = vrot.slane %v3719, %v3726
        %v3729 = vunpack.c.l.s4 1934713408
        %v3730 = vunpack.c.0.s8 %v3729
        %v3731 = vlaneseq
        %v3732 = vshrl.u32 %v3731, 7
        %v3733 = vsub.s32 %v3730, %v3732
        %v3734 = vrot.slane %v3720, %v3733
        %v3735 = vcombine.low %v3679, %v3711
        %v3736 = vcombine.high %v3679, %v3711
        %v3737 = vcombine.low %v3686, %v3718
        %v3738 = vcombine.high %v3686, %v3718
        %v3739 = vcombine.low %v3695, %v3727
        %v3740 = vcombine.high %v3695, %v3727
        %v3741 = vcombine.low %v3702, %v3734
        %v3742 = vcombine.high %v3702, %v3734
        %3745 = vrot.lane.b32.xlu0 %v3600, 16
        %v3746 = vpop.permute.xlu0 %3745
        %3747 = vrot.lane.b32.xlu0 %v3736, 16
        %v3748 = vpop.permute.xlu0 %3747
        %3753 = vrot.lane.b32.xlu0 %v3601, 32
        %v3754 = vpop.permute.xlu0 %3753
        %3755 = vrot.lane.b32.xlu0 %v3737, 32
        %v3756 = vpop.permute.xlu0 %3755
        %3761 = vrot.lane.b32.xlu0 %v3602, 48
        %v3762 = vpop.permute.xlu0 %3761
        %3763 = vrot.lane.b32.xlu0 %v3738, 48
        %v3764 = vpop.permute.xlu0 %3763
        %3769 = vrot.lane.b32.xlu0 %v3603, 64
        %v3770 = vpop.permute.xlu0 %3769
        %3771 = vrot.lane.b32.xlu0 %v3739, 64
        %v3772 = vpop.permute.xlu0 %3771
        %3777 = vrot.lane.b32.xlu0 %v3604, 80
        %v3778 = vpop.permute.xlu0 %3777
        %3779 = vrot.lane.b32.xlu0 %v3740, 80
        %v3780 = vpop.permute.xlu0 %3779
        %3785 = vrot.lane.b32.xlu0 %v3605, 96
        %v3786 = vpop.permute.xlu0 %3785
        %3787 = vrot.lane.b32.xlu0 %v3741, 96
        %v3788 = vpop.permute.xlu0 %3787
        %3793 = vrot.lane.b32.xlu0 %v3606, 112
        %v3794 = vpop.permute.xlu0 %3793
        %3795 = vrot.lane.b32.xlu0 %v3742, 112
        %v3796 = vpop.permute.xlu0 %3795
        %v3799 = vsel %vm2286, %v3599, %v3746
        %v3800 = vsel %vm2286, %v3735, %v3748
        %vm3801 = vcmask 261120
        %v3802 = vsel %vm3801, %v3799, %v3754
        %v3803 = vsel %vm3801, %v3800, %v3756
        %vm3804 = vcmask 392192
        %v3805 = vsel %vm3804, %v3802, %v3762
        %v3806 = vsel %vm3804, %v3803, %v3764
        %vm3807 = vcmask 523264
        %v3808 = vsel %vm3807, %v3805, %v3770
        %v3809 = vsel %vm3807, %v3806, %v3772
        %vm3810 = vcmask 654336
        %v3811 = vsel %vm3810, %v3808, %v3778
        %v3812 = vsel %vm3810, %v3809, %v3780
        %vm3813 = vcmask 785408
        %v3814 = vsel %vm3813, %v3811, %v3786
        %v3815 = vsel %vm3813, %v3812, %v3788
        %vm3816 = vcmask 916480
        %v3817 = vsel %vm3816, %v3814, %v3794
        %v3818 = vsel %vm3816, %v3815, %v3796
        %v3819 = vpack.c.bf16 %v3818, %v3817
        %v3820 = vld [vmem:[#allocation7] sm:$0xf]
        %v3821 = vld [vmem:[#allocation7 + $0x4] sm:$0xf]
        %v3822 = vld [vmem:[#allocation7 + $0x8] sm:$0xf]
        %v3823 = vld [vmem:[#allocation7 + $0xc] sm:$0xf]
        %v3824 = vld [vmem:[#allocation7 + $0x10] sm:$0xf]
        %v3825 = vld [vmem:[#allocation7 + $0x14] sm:$0xf]
        %v3826 = vld [vmem:[#allocation7 + $0x18] sm:$0xf]
        %v3827 = vld [vmem:[#allocation7 + $0x1c] sm:$0xf]
        %v3828 = vld [vmem:[#allocation7 + $0x20] sm:$0xf]
        %v3829 = vld [vmem:[#allocation7 + $0x24] sm:$0xf]
        %v3830 = vld [vmem:[#allocation7 + $0x28] sm:$0xf]
        %v3831 = vld [vmem:[#allocation7 + $0x2c] sm:$0xf]
        %v3832 = vld [vmem:[#allocation7 + $0x30] sm:$0xf]
        %v3833 = vld [vmem:[#allocation7 + $0x34] sm:$0xf]
        %v3834 = vld [vmem:[#allocation7 + $0x38] sm:$0xf]
        %v3835 = vld [vmem:[#allocation7 + $0x3c] sm:$0xf]
        %v3836 = vld [vmem:[%s3] sm:$0x1]
        %v3838 = vlaneseq
        %v3839 = vshrl.u32 %v3838, 7
        %v3840 = vsub.s32 0, %v3839
        %v3841 = vrot.slane %v3836, %v3840
        %v3859 = vunpack.c.l.b16 %v3820
        %v3860 = vunpack.c.l.b16 %v3821
        %v3861 = vunpack.c.l.b16 %v3822
        %v3862 = vunpack.c.l.b16 %v3823
        %v3863 = vunpack.c.l.b16 %v3824
        %v3864 = vunpack.c.l.b16 %v3825
        %v3865 = vunpack.c.l.b16 %v3826
        %v3866 = vunpack.c.l.b16 %v3827
        %v3867 = vunpack.c.l.b16 %v3828
        %v3868 = vunpack.c.l.b16 %v3829
        %v3869 = vunpack.c.l.b16 %v3830
        %v3870 = vunpack.c.l.b16 %v3831
        %v3871 = vunpack.c.l.b16 %v3832
        %v3872 = vunpack.c.l.b16 %v3833
        %v3873 = vunpack.c.l.b16 %v3834
        %v3874 = vunpack.c.l.b16 %v3835
        %v3875 = vpack.c.b16 %v3860, %v3859
        %v3876 = vpack.c.b16 %v3862, %v3861
        %v3877 = vpack.c.b16 %v3864, %v3863
        %v3878 = vpack.c.b16 %v3866, %v3865
        %v3879 = vpack.c.b16 %v3868, %v3867
        %v3880 = vpack.c.b16 %v3870, %v3869
        %v3881 = vpack.c.b16 %v3872, %v3871
        %v3882 = vpack.c.b16 %v3874, %v3873
        %3891 = vmatprep.subr.bf16.mxu0 0
        %3892 = vmatpush1.bf16.msra.mxu0 %v3875
        %3893 = vmatprep.subr.bf16.mxu0 0
        %3894 = vmatpush1.bf16.msra.mxu0 %v3876
        %3895 = vmatprep.subr.bf16.mxu0 0
        %3896 = vmatpush1.bf16.msra.mxu0 %v3877
        %3897 = vmatprep.subr.bf16.mxu0 0
        %3898 = vmatpush1.bf16.msra.mxu0 %v3878
        %3899 = vmatprep.subr.bf16.mxu0 0
        %3900 = vmatpush1.bf16.msra.mxu0 %v3879
        %3901 = vmatprep.subr.bf16.mxu0 0
        %3902 = vmatpush1.bf16.msra.mxu0 %v3880
        %3903 = vmatprep.subr.bf16.mxu0 0
        %3904 = vmatpush1.bf16.msra.mxu0 %v3881
        %3905 = vmatprep.subr.bf16.mxu0 0
        %3906 = vmatpush1.bf16.msra.mxu0 %v3882
        %3907 = vmatprep.subr.bf16.mxu0 0
        %3908 = vmatpush1.bf16.msra.mxu0 0
        %3909 = vmatprep.subr.bf16.mxu0 0
        %3910 = vmatpush1.bf16.msra.mxu0 0
        %3911 = vmatprep.subr.bf16.mxu0 0
        %3912 = vmatpush1.bf16.msra.mxu0 0
        %3913 = vmatprep.subr.bf16.mxu0 0
        %3914 = vmatpush1.bf16.msra.mxu0 0
        %3915 = vmatprep.subr.bf16.mxu0 0
        %3916 = vmatpush1.bf16.msra.mxu0 0
        %3917 = vmatprep.subr.bf16.mxu0 0
        %3918 = vmatpush1.bf16.msra.mxu0 0
        %3919 = vmatprep.subr.bf16.mxu0 0
        %3920 = vmatpush1.bf16.msra.mxu0 0
        %3921 = vmatprep.subr.bf16.mxu0 0
        %3922 = vmatpush1.bf16.msra.mxu0 0
        %3923 = vmatprep.mubr.bf16.mxu0 0
        %3924 = vmatmul.mubr.bf16.gmra.mrb[0].mxu0 %v3819
        %v3925 = vpop.f32.mrb[0].mxu0
        %v3926 = vadd.f32 %v3841, %v3925
        %v3927 = vpop.f32.mrb[0].mxu0
        %v3928 = vpop.f32.mrb[0].mxu0
        %v3929 = vadd.f32 %v3841, %v3928
        %v3930 = vpop.f32.mrb[0].mxu0
        %3931 = vdwg.mxu0
        %3932 = vst [vmem:[%s244] sm:$0xff] %v3926
        %3933 = vst [vmem:[%s244 + $0x8] sm:$0xff] %v3929
        %s3934 = sand.u32 %s119, 1
        %s3935 = scalar_lea.sflag [#allocation4], %s3934
        %s3936 = sand.u32 %s119, 1
        %s3937 = smul.addr %s3936, 16
        %s3938 = scalar_lea.vmem [#allocation8], %s3937
        // Predicated region
        $region49: #{tpu_custom_call.1} parent=35 // pred_check
          %p3939 = pneg %p129
        $region50: #{tpu_custom_call.1} parent=35 // pred_check_branch
          %3941 = sbr.rel (%p3939) target = $region52
        $region51: #{tpu_custom_call.1} parent=35 // pred_region
          %s3943 = ssub.s32 256, 256
          %3944 = vsyncadd %s3935, %s3943
          %s3945 = smul.addr %s22, 2
          %s3946 = smul.addr %s3945, 128
          %s3947 = scalar_lea.hbm %s4, %s3946
          %s3948 = sshll.u32 %s3938, 4
          %s3949 = int_to_ptr.vmem [resolvable:$true] %s3948
          %3954 = dma.vmem_to_hbm [thread:$0]  %s3949, 256, %s3947, %s3935, 128, 128, 8
        $region52: #{tpu_custom_call.1} parent=35 // pred_fallthru
          _
      $region36: #{tpu_custom_call.1} parent=5 // pred_fallthru
        _
      %p3955 = scmp.le.s32.totalorder 2, %s17
      // Predicated region
      $region53: #{tpu_custom_call.1} parent=5 // pred_check
        %p3956 = pneg %p3955
      $region54: #{tpu_custom_call.1} parent=5 // pred_check_branch
        %3958 = sbr.rel (%p3956) target = $region56
      $region55: #{tpu_custom_call.1} parent=5 // pred_region
        %s3959 = ssub.s32 %s17, 2
        // Predicated region
        $region57: #{tpu_custom_call.1} parent=55 // pred_check
          %p3960 = pneg %p135
        $region58: #{tpu_custom_call.1} parent=55 // pred_check_branch
          %3962 = sbr.rel (%p3960) target = $region60
        $region59: #{tpu_custom_call.1} parent=55 // pred_region
          %s3963 = sand.u32 %s120, 1
          %s3964 = scalar_lea.sflag [#allocation4], %s3963
          %s3965 = sand.u32 %s120, 1
          %s3966 = smul.addr %s3965, 16
          %s3967 = scalar_lea.vmem [#allocation8], %s3966
          %3968 = dma.done %s3964, 256
        $region60: #{tpu_custom_call.1} parent=55 // pred_fallthru
          _
      $region56: #{tpu_custom_call.1} parent=5 // pred_fallthru
        _
    $region6: #{tpu_custom_call.1} parent=1 // loop_footer
      %s21 = sadd.s32 1, %s17
    $region7: #{tpu_custom_call.1} parent=1 // loop_footer_branch
      %16 = sbr.rel target = $region3
    $region8: #{tpu_custom_call.1} parent=1 // loop_exit
      _
    %3969 = vsyncpa [#allocation3], 1
    %s3970 = scalar_lea.sflag [#allocation3], 1
    %3971 = vsyncpa %s3970, 1
    %3972 = vsyncpa [#allocation6], 1
    %3973 = vsyncpa [#allocation4], 1
    %s3974 = scalar_lea.sflag [#allocation4], 1
    %3975 = vsyncpa %s3974, 1

</llo_original>
